<compile_context>
chip_gen: v5e
topology: v5e:2x2
jax: 0.10.0
libtpu: 0.0.40
codegen_flags: <defaults>
</compile_context>

<pallas_src>
import functools

import jax
import jax.numpy as jnp
from jax import lax
from jax.experimental import pallas as pl
from jax.experimental.pallas import tpu as pltpu


def _round_up(x, m):
    return (x + m - 1) // m * m


# ---------------------------------------------------------------------------
# Kernel 1: GRU recurrence + last-valid-step gather + masked LayerNorm
# ---------------------------------------------------------------------------
def gru_ln_kernel(gx0_ref, h0_ref, whh0_ref, wcat_ref, gamma_ref, beta_ref,
                  ds_ref, out_ref, h_scr, last_scr, *, depth, D, Dp, Lc):
    # gx0_ref:  (Lc, tb, 3*Dp) bf16  hoisted layer-0 input gates for this chunk
    # h0_ref:   (depth, 1, Dp) f32   learned h_0 (broadcast over batch in-kernel)
    # whh0_ref: (Dp, 3*Dp) f32       layer-0 hidden->hidden, gates at Dp strides
    # wcat_ref: (max(depth-1,1), 2*Dp, 4*Dp) f32  fused [x|h] weights, cols
    #           [r | z | n_x | n_h] for layers >= 1
    # gamma/beta: (1, Dp) f32        LayerNorm affine (zero in padded lanes)
    # ds_ref:   (tb, 1) int32        valid lengths (>= 1 for real rows)
    # out_ref:  (tb, Dp) f32         LayerNorm(h_top[data_size-1])
    t_chunk = pl.program_id(1)
    n_tchunks = pl.num_programs(1)
    tb = out_ref.shape[0]

    @pl.when(t_chunk == 0)
    def _():
        for lyr in range(depth):
            h_scr[lyr] = jnp.broadcast_to(h0_ref[lyr], (tb, Dp))
        last_scr[...] = jnp.zeros_like(last_scr)

    whh0 = whh0_ref[...]
    ds = ds_ref[...]                                  # (tb, 1) int32
    t_base = t_chunk * Lc

    # chunk-local loop carry: per-layer hidden + running last-step output
    carry0 = tuple(h_scr[lyr] for lyr in range(depth)) + (last_scr[...],)

    def body(lt, carry):
        hs = carry[:depth]
        last = carry[depth]
        gx = gx0_ref[lt].astype(jnp.float32)          # (tb, 3*Dp), f32 math
        new_hs = []
        layer_in = None
        for lyr in range(depth):                      # static unroll over depth
            h_prev = hs[lyr]
            if lyr == 0:
                gh = jnp.dot(h_prev, whh0, preferred_element_type=jnp.float32)
                r = jax.nn.sigmoid(gx[:, 0:Dp] + gh[:, 0:Dp])
                z = jax.nn.sigmoid(gx[:, Dp:2 * Dp] + gh[:, Dp:2 * Dp])
                n = jnp.tanh(gx[:, 2 * Dp:3 * Dp] + r * gh[:, 2 * Dp:3 * Dp])
            else:
                # single fused MXU dot per layer-step (K = 2*Dp)
                xh = jnp.concatenate([layer_in, h_prev], axis=1)   # (tb, 2Dp)
                g4 = jnp.dot(xh, wcat_ref[lyr - 1],
                             preferred_element_type=jnp.float32)   # (tb, 4Dp)
                r = jax.nn.sigmoid(g4[:, 0:Dp])
                z = jax.nn.sigmoid(g4[:, Dp:2 * Dp])
                n = jnp.tanh(g4[:, 2 * Dp:3 * Dp] + r * g4[:, 3 * Dp:4 * Dp])
            h_new = n + z * (h_prev - n)              # one fewer VPU op
            new_hs.append(h_new)
            layer_in = h_new
        sel = (ds - 1) == (t_base + lt)               # (tb, 1)
        last = jnp.where(sel, layer_in, last)
        return tuple(new_hs) + (last,)

    carry = lax.fori_loop(0, Lc, body, carry0, unroll=min(Lc, 8))

    # persist state for the next time chunk (refs touched only here)
    for lyr in range(depth):
        h_scr[lyr] = carry[lyr]
    last_scr[...] = carry[depth]

    @pl.when(t_chunk == n_tchunks - 1)
    def _():
        h_last = carry[depth]                         # (tb, Dp), padded lanes = 0
        lane = lax.broadcasted_iota(jnp.int32, (1, Dp), 1)
        mask = (lane < D).astype(jnp.float32)
        mean = jnp.sum(h_last, axis=-1, keepdims=True) * (1.0 / D)
        diff = (h_last - mean) * mask                 # masked LayerNorm over D lanes
        var = jnp.sum(diff * diff, axis=-1, keepdims=True) * (1.0 / D)
        normed = diff * lax.rsqrt(var + 1e-5)
        out_ref[...] = normed * gamma_ref[...] + beta_ref[...]


# ---------------------------------------------------------------------------
# Kernel 2: output projection, tiled over n_loc
# ---------------------------------------------------------------------------
def proj_kernel(x_ref, w_ref, b_ref, o_ref):
    o_ref[...] = (jnp.dot(x_ref[...], w_ref[...],
                          preferred_element_type=jnp.float32)
                  + b_ref[...])


# ---------------------------------------------------------------------------
# One-time parameter layout prep (outside the hot path)
# ---------------------------------------------------------------------------
def prepare_params(params, *, proj_weight_dtype=jnp.bfloat16, tile_n=1024):
    emb = params["emb"].astype(jnp.float32)
    depth, _, D = params["h0"].shape
    n_loc = params["w_out"].shape[0]
    Dp = _round_up(D, 128)                            # gate-aligned lane padding

    def gate_cols(w):          # (3D, D) torch layout -> (D, 3*Dp), gates at Dp strides
        out = jnp.zeros((D, 3 * Dp), jnp.float32)
        for g in range(3):
            out = out.at[:, g * Dp:g * Dp + D].set(w[g * D:(g + 1) * D, :].T)
        return out

    wih = params["w_ih"].astype(jnp.float32)
    whh = params["w_hh"].astype(jnp.float32)

    wih0 = gate_cols(wih[0])                                            # (D, 3Dp)
    whh0 = jnp.zeros((Dp, 3 * Dp), jnp.float32).at[:D, :].set(gate_cols(whh[0]))

    # fused [x|h] weights for layers >= 1: columns [r | z | n_x | n_h]
    n_up = max(depth - 1, 1)
    wcat = jnp.zeros((n_up, 2 * Dp, 4 * Dp), jnp.float32)
    for l in range(1, depth):
        blk = jnp.zeros((2 * Dp, 4 * Dp), jnp.float32)
        for g in range(3):
            blk = blk.at[0:D, g * Dp:g * Dp + D].set(
                wih[l][g * D:(g + 1) * D, :].T)
        for g in range(2):
            blk = blk.at[Dp:Dp + D, g * Dp:g * Dp + D].set(
                whh[l][g * D:(g + 1) * D, :].T)
        blk = blk.at[Dp:Dp + D, 3 * Dp:3 * Dp + D].set(
            whh[l][2 * D:3 * D, :].T)
        wcat = wcat.at[l - 1].set(blk)

    h0 = jnp.zeros((depth, 1, Dp), jnp.float32).at[:, :, :D].set(
        params["h0"].astype(jnp.float32))
    gamma = jnp.zeros((1, Dp), jnp.float32).at[:, :D].set(params["ln_w"])
    beta = jnp.zeros((1, Dp), jnp.float32).at[:, :D].set(params["ln_b"])

    # projection weight: pre-transpose + pad ONCE (not per forward call), bf16
    tn = min(tile_n, _round_up(n_loc, 128))
    n_pad = _round_up(n_loc, tn)
    w_out = jnp.zeros((Dp, n_pad), proj_weight_dtype).at[:D, :n_loc].set(
        params["w_out"].T.astype(proj_weight_dtype))
    b_out = jnp.zeros((1, n_pad), jnp.float32).at[:, :n_loc].set(
        params["b_out"].astype(jnp.float32))

    return {
        "emb": emb, "wih0": wih0, "whh0": whh0, "wcat": wcat, "h0": h0,
        "gamma": gamma, "beta": beta, "w_out": w_out, "b_out": b_out,
        "D": D, "Dp": Dp, "depth": depth, "n_loc": n_loc,
        "n_pad": n_pad, "tile_n": tn,
    }


# ---------------------------------------------------------------------------
# Forward (eval-mode)
# ---------------------------------------------------------------------------
def gru4rec_forward(seq, data_size, prep):
    B, L = seq.shape
    D, Dp, depth = prep["D"], prep["Dp"], prep["depth"]
    n_loc, n_pad, tn = prep["n_loc"], prep["n_pad"], prep["tile_n"]

    # batch / time tiling
    tb = min(_round_up(B, 16), 128)                 # 16-sublane-aligned (bf16 safe)
    Bp = _round_up(B, tb)
    grid_b = Bp // tb
    Lc = min(L, 16)
    Lp = _round_up(L, Lc)
    grid_t = Lp // Lc

    # ---- plain-JAX glue: embedding gather (eval dropout = identity) and the
    # hoisted layer-0 input->hidden projection as one big matmul ----
    x = jnp.take(prep["emb"], seq, axis=0)                             # (B, L, D)
    gx0 = jnp.einsum("bld,de->lbe", x, prep["wih0"],
                     preferred_element_type=jnp.float32)               # (L, B, 3Dp)
    gx0 = gx0.astype(jnp.bfloat16)                  # stream to kernel in bf16
    gx0 = jnp.pad(gx0, ((0, Lp - L), (0, Bp - B), (0, 0)))

    # NOTE: rows with data_size == 0 (only batch-padding rows here) never match
    # the last-step select; real zero-length sequences are not supported.
    ds = jnp.pad(data_size.astype(jnp.int32), (0, Bp - B)).reshape(Bp, 1)

    # VMEM budget computed from the actual (double-buffered) block sizes
    blk_bytes = (
        2 * (Lc * tb * 3 * Dp * 2) +                       # gx0 (bf16)
        2 * (depth * 8 * Dp * 4) +                         # h0
        2 * (Dp * 3 * Dp * 4) +                            # whh0
        2 * (max(depth - 1, 1) * 2 * Dp * 4 * Dp * 4) +    # wcat
        4 * (8 * Dp * 4) +                                 # gamma/beta
        2 * (tb * 128 * 4) +                               # data_size
        2 * (tb * Dp * 4) +                                # output
        (depth + 1) * tb * Dp * 4)                         # scratch
    vmem_limit = int(min(2 * blk_bytes + (8 << 20), 64 * 1024 * 1024))

    cost_rnn = pl.CostEstimate(
        flops=int(2 * Lp * Bp * (Dp * 3 * Dp
                                 + max(depth - 1, 0) * 2 * Dp * 4 * Dp)),
        transcendentals=int(Lp * Bp * depth * 3 * Dp),
        bytes_accessed=int(gx0.size * 2 + Bp * Dp * 4
                           + (Dp * 3 * Dp
                              + max(depth - 1, 1) * 8 * Dp * Dp) * 4))

    kernel = functools.partial(gru_ln_kernel, depth=depth, D=D, Dp=Dp, Lc=Lc)
    normed = pl.pallas_call(
        kernel,
        out_shape=jax.ShapeDtypeStruct((Bp, Dp), jnp.float32),
        grid_spec=pltpu.PrefetchScalarGridSpec(
            num_scalar_prefetch=0,
            grid=(grid_b, grid_t),                  # batch parallel, time arbitrary
            in_specs=[
                pl.BlockSpec((Lc, tb, 3 * Dp), lambda b, t: (t, b, 0)),
                pl.BlockSpec((depth, 1, Dp), lambda b, t: (0, 0, 0)),
                pl.BlockSpec((Dp, 3 * Dp), lambda b, t: (0, 0)),
                pl.BlockSpec((max(depth - 1, 1), 2 * Dp, 4 * Dp),
                             lambda b, t: (0, 0, 0)),
                pl.BlockSpec((1, Dp), lambda b, t: (0, 0)),
                pl.BlockSpec((1, Dp), lambda b, t: (0, 0)),
                pl.BlockSpec((tb, 1), lambda b, t: (b, 0)),
            ],
            out_specs=pl.BlockSpec((tb, Dp), lambda b, t: (b, 0)),
            scratch_shapes=[
                pltpu.VMEM((depth, tb, Dp), jnp.float32),   # hidden state carry
                pltpu.VMEM((tb, Dp), jnp.float32),          # last-step top output
            ]),
        compiler_params=pltpu.CompilerParams(
            dimension_semantics=("parallel", "arbitrary"),
            vmem_limit_bytes=vmem_limit),
        cost_estimate=cost_rnn,
    )(gx0, prep["h0"], prep["whh0"], prep["wcat"], prep["gamma"],
      prep["beta"], ds)

    # ---- output projection over n_loc, lane-dense tiles, parallel grid ----
    normed_in = normed.astype(prep["w_out"].dtype)
    grid_n = n_pad // tn
    cost_proj = pl.CostEstimate(
        flops=int(2 * Bp * Dp * n_pad),
        transcendentals=0,
        bytes_accessed=int(prep["w_out"].size * prep["w_out"].dtype.itemsize
                           + Bp * Dp * normed_in.dtype.itemsize
                           + 4 * (n_pad + Bp * n_pad)))
    logits = pl.pallas_call(
        proj_kernel,
        out_shape=jax.ShapeDtypeStruct((Bp, n_pad), jnp.float32),
        grid=(grid_n,),
        in_specs=[
            pl.BlockSpec((Bp, Dp), lambda j: (0, 0)),       # normed (replicated)
            pl.BlockSpec((Dp, tn), lambda j: (0, j)),       # weight tile (bf16)
            pl.BlockSpec((1, tn), lambda j: (0, j)),        # bias tile
        ],
        out_specs=pl.BlockSpec((Bp, tn), lambda j: (0, j)),
        compiler_params=pltpu.CompilerParams(
            dimension_semantics=("parallel",)),
        cost_estimate=cost_proj,
    )(normed_in, prep["w_out"], prep["b_out"])

    return logits[:B, :n_loc]


# ---------------------------------------------------------------------------
# Pure-JAX reference (mirrors the PyTorch eval forward)
# ---------------------------------------------------------------------------
def gru4rec_reference(seq, data_size, params):
    emb = params["emb"]
    B, L = seq.shape
    depth = params["h0"].shape[0]
    D = emb.shape[1]
    x = jnp.take(emb, seq, axis=0)
    hs = [jnp.broadcast_to(params["h0"][l], (B, D)) for l in range(depth)]
    tops = []
    for t in range(L):
        layer_in = x[:, t, :]
        for l in range(depth):
            gx = layer_in @ params["w_ih"][l].T
            gh = hs[l] @ params["w_hh"][l].T
            r = jax.nn.sigmoid(gx[:, :D] + gh[:, :D])
            z = jax.nn.sigmoid(gx[:, D:2 * D] + gh[:, D:2 * D])
            n = jnp.tanh(gx[:, 2 * D:] + r * gh[:, 2 * D:])
            h_new = (1.0 - z) * n + z * hs[l]
            hs[l] = h_new
            layer_in = h_new
        tops.append(layer_in)
    out_seq = jnp.stack(tops, axis=1)
    mean = jnp.mean(out_seq, axis=-1, keepdims=True)
    var = jnp.mean((out_seq - mean) ** 2, axis=-1, keepdims=True)
    normed = (out_seq - mean) * lax.rsqrt(var + 1e-5)
    normed = normed * params["ln_w"] + params["ln_b"]
    gathered = normed[jnp.arange(B), data_size - 1, :]
    return gathered @ params["w_out"].T + params["b_out"]


def init_params(key, n_loc, d_model, depth):
    ks = jax.random.split(key, 6)
    bound = 1.0 / jnp.sqrt(d_model)
    emb = jax.random.normal(ks[0], (n_loc, d_model), jnp.float32)
    emb = emb.at[0].set(0.0)                          # padding_idx=0
    w_ih = jax.random.uniform(ks[1], (depth, 3 * d_model, d_model),
                              jnp.float32, -bound, bound)
    w_hh = jax.random.uniform(ks[2], (depth, 3 * d_model, d_model),
                              jnp.float32, -bound, bound)
    h0 = jax.random.normal(ks[3], (depth, 1, d_model), jnp.float32)
    w_out = jax.random.uniform(ks[4], (n_loc, d_model),
                               jnp.float32, -bound, bound)
    b_out = jax.random.uniform(ks[5], (n_loc,), jnp.float32, -bound, bound)
    return {
        "emb": emb, "w_ih": w_ih, "w_hh": w_hh, "h0": h0,
        "ln_w": jnp.ones((d_model,), jnp.float32),
        "ln_b": jnp.zeros((d_model,), jnp.float32),
        "w_out": w_out, "b_out": b_out,
    }


if __name__ == "__main__":
    n_loc, d_model, depth = 128, 64, 2
    B, L = 4, 8

    key = jax.random.PRNGKey(0)
    kp, ks = jax.random.split(key)
    params = init_params(kp, n_loc, d_model, depth)
    prep = prepare_params(params)                     # one-time layout prep

    seq = jax.random.randint(ks, (B, L), 0, n_loc, dtype=jnp.int32)
    data_size = jnp.array([L, 3, 5, 1], dtype=jnp.int32)   # valid lengths >= 1

    out = gru4rec_forward(seq, data_size, prep)
    out = jax.block_until_ready(out)

    ref = gru4rec_reference(seq, data_size, params)
    assert out.shape == (B, n_loc)
    assert jnp.all(jnp.isfinite(out))
    max_err = jnp.max(jnp.abs(out - ref))
    assert jnp.allclose(out, ref, atol=3e-2, rtol=3e-2), \
        f"max abs diff {max_err}"

    print("KERNEL_OK")
</pallas_src>

<mosaic_0001>
module attributes {stable_mosaic.version = 11 : i64} {
  func.func @gru_ln_kernel(%arg0: i32, %arg1: i32, %arg2: memref<8x16x384xbf16, #tpu.memory_space<vmem>>, %arg3: memref<2x1x128xf32, #tpu.memory_space<vmem>>, %arg4: memref<128x384xf32, #tpu.memory_space<vmem>>, %arg5: memref<1x256x512xf32, #tpu.memory_space<vmem>>, %arg6: memref<1x128xf32, #tpu.memory_space<vmem>>, %arg7: memref<1x128xf32, #tpu.memory_space<vmem>>, %arg8: memref<16x1xi32, #tpu.memory_space<vmem>>, %arg9: memref<16x128xf32, #tpu.memory_space<vmem>>, %arg10: memref<2x16x128xf32, #tpu.memory_space<vmem>>, %arg11: memref<16x128xf32, #tpu.memory_space<vmem>>) attributes {dimension_semantics = [#tpu.dimension_semantics<parallel>, #tpu.dimension_semantics<arbitrary>], iteration_bounds = array<i64: 1, 1>, scalar_prefetch = 0 : i64, scratch_operands = 2 : i64, tpu.core_type = #tpu.core_type<tc>, window_params = [{transform_indices = @transform_0, window_bounds = array<i64: 8, 16, 384>}, {pipeline_mode = #tpu.pipeline_mode<synchronous>, transform_indices = @transform_1, window_bounds = array<i64: 2, 1, 128>}, {pipeline_mode = #tpu.pipeline_mode<synchronous>, transform_indices = @transform_2, window_bounds = array<i64: 128, 384>}, {pipeline_mode = #tpu.pipeline_mode<synchronous>, transform_indices = @transform_3, window_bounds = array<i64: 1, 256, 512>}, {pipeline_mode = #tpu.pipeline_mode<synchronous>, transform_indices = @transform_4, window_bounds = array<i64: 1, 128>}, {pipeline_mode = #tpu.pipeline_mode<synchronous>, transform_indices = @transform_5, window_bounds = array<i64: 1, 128>}, {transform_indices = @transform_6, window_bounds = array<i64: 16, 1>}, {transform_indices = @transform_7, window_bounds = array<i64: 16, 128>}]} {
    %c0_i32 = arith.constant 0 : i32
    %0 = arith.cmpi eq, %arg1, %c0_i32 : i32
    %1 = arith.extui %0 : i1 to i32
    %c0_i32_0 = arith.constant 0 : i32
    %2 = arith.cmpi ne, %1, %c0_i32_0 : i32
    scf.if %2 {
      %c0_118 = arith.constant 0 : index
      %c0_119 = arith.constant 0 : index
      %c0_120 = arith.constant 0 : index
      %509 = vector.load %arg3[%c0_118, %c0_119, %c0_120] : memref<2x1x128xf32, #tpu.memory_space<vmem>>, vector<1x1x128xf32>
      %510 = vector.shape_cast %509 : vector<1x1x128xf32> to vector<1x128xf32>
      %511 = vector.shape_cast %510 : vector<1x128xf32> to vector<1x128xf32>
      %512 = vector.broadcast %511 : vector<1x128xf32> to vector<16x128xf32>
      %c0_121 = arith.constant 0 : index
      %c0_122 = arith.constant 0 : index
      %c0_123 = arith.constant 0 : index
      %513 = vector.load %arg10[%c0_121, %c0_122, %c0_123] : memref<2x16x128xf32, #tpu.memory_space<vmem>>, vector<1x16x128xf32>
      %514 = vector.shape_cast %513 : vector<1x16x128xf32> to vector<16x128xf32>
      %515 = vector.shape_cast %512 : vector<16x128xf32> to vector<1x16x128xf32>
      tpu.vector_store %arg10[%c0_121, %c0_122, %c0_123], %515 {strides = array<i32>} : memref<2x16x128xf32, #tpu.memory_space<vmem>>, vector<1x16x128xf32>,
      %c1_124 = arith.constant 1 : index
      %c0_125 = arith.constant 0 : index
      %c0_126 = arith.constant 0 : index
      %516 = vector.load %arg3[%c1_124, %c0_125, %c0_126] : memref<2x1x128xf32, #tpu.memory_space<vmem>>, vector<1x1x128xf32>
      %517 = vector.shape_cast %516 : vector<1x1x128xf32> to vector<1x128xf32>
      %518 = vector.shape_cast %517 : vector<1x128xf32> to vector<1x128xf32>
      %519 = vector.broadcast %518 : vector<1x128xf32> to vector<16x128xf32>
      %c1_127 = arith.constant 1 : index
      %c0_128 = arith.constant 0 : index
      %c0_129 = arith.constant 0 : index
      %520 = vector.load %arg10[%c1_127, %c0_128, %c0_129] : memref<2x16x128xf32, #tpu.memory_space<vmem>>, vector<1x16x128xf32>
      %521 = vector.shape_cast %520 : vector<1x16x128xf32> to vector<16x128xf32>
      %522 = vector.shape_cast %519 : vector<16x128xf32> to vector<1x16x128xf32>
      tpu.vector_store %arg10[%c1_127, %c0_128, %c0_129], %522 {strides = array<i32>} : memref<2x16x128xf32, #tpu.memory_space<vmem>>, vector<1x16x128xf32>,
      %cst_130 = arith.constant 0.000000e+00 : f32
      %523 = vector.broadcast %cst_130 : f32 to vector<16x128xf32>
      %c0_131 = arith.constant 0 : index
      %c0_132 = arith.constant 0 : index
      %524 = vector.load %arg11[%c0_131, %c0_132] : memref<16x128xf32, #tpu.memory_space<vmem>>, vector<16x128xf32>
      tpu.vector_store %arg11[%c0_131, %c0_132], %523 {strides = array<i32>} : memref<16x128xf32, #tpu.memory_space<vmem>>, vector<16x128xf32>,
    } else {
    }
    %c0 = arith.constant 0 : index
    %c0_1 = arith.constant 0 : index
    %3 = vector.load %arg4[%c0, %c0_1] : memref<128x384xf32, #tpu.memory_space<vmem>>, vector<128x384xf32>
    %c0_2 = arith.constant 0 : index
    %c0_3 = arith.constant 0 : index
    %4 = vector.load %arg8[%c0_2, %c0_3] : memref<16x1xi32, #tpu.memory_space<vmem>>, vector<16x1xi32>
    %c8_i32 = arith.constant 8 : i32
    %5 = arith.muli %arg1, %c8_i32 : i32
    %c0_4 = arith.constant 0 : index
    %c0_5 = arith.constant 0 : index
    %c0_6 = arith.constant 0 : index
    %6 = vector.load %arg10[%c0_4, %c0_5, %c0_6] : memref<2x16x128xf32, #tpu.memory_space<vmem>>, vector<1x16x128xf32>
    %7 = vector.shape_cast %6 : vector<1x16x128xf32> to vector<16x128xf32>
    %c1 = arith.constant 1 : index
    %c0_7 = arith.constant 0 : index
    %c0_8 = arith.constant 0 : index
    %8 = vector.load %arg10[%c1, %c0_7, %c0_8] : memref<2x16x128xf32, #tpu.memory_space<vmem>>, vector<1x16x128xf32>
    %9 = vector.shape_cast %8 : vector<1x16x128xf32> to vector<16x128xf32>
    %c0_9 = arith.constant 0 : index
    %c0_10 = arith.constant 0 : index
    %10 = vector.load %arg11[%c0_9, %c0_10] : memref<16x128xf32, #tpu.memory_space<vmem>>, vector<16x128xf32>
    %c0_i32_11 = arith.constant 0 : i32
    %11 = arith.index_cast %c0_i32_11 : i32 to index
    %c0_12 = arith.constant 0 : index
    %c0_13 = arith.constant 0 : index
    %12 = vector.load %arg2[%11, %c0_12, %c0_13] : memref<8x16x384xbf16, #tpu.memory_space<vmem>>, vector<1x16x384xbf16>
    %13 = vector.shape_cast %12 : vector<1x16x384xbf16> to vector<16x384xbf16>
    %14 = arith.extf %13 : vector<16x384xbf16> to vector<16x384xf32>
    %cst = arith.constant dense<0.000000e+00> : vector<16x384xf32>
    %15 = tpu.matmul %7, %3, %cst {dimension_numbers = #tpu.dot_dimension_numbers<[1], [0], [0], [1], [0, 0, 1, 1], [], []>} : vector<16x128xf32>, vector<128x384xf32>, vector<16x384xf32> -> vector<16x384xf32>
    %16 = vector.extract_strided_slice %14 {offsets = [0, 0], sizes = [16, 128], strides = [1, 1]} : vector<16x384xf32> to vector<16x128xf32>
    %17 = vector.extract_strided_slice %15 {offsets = [0, 0], sizes = [16, 128], strides = [1, 1]} : vector<16x384xf32> to vector<16x128xf32>
    %18 = arith.addf %16, %17 : vector<16x128xf32>
    %19 = arith.negf %18 : vector<16x128xf32>
    %20 = math.exp %19 : vector<16x128xf32>
    %cst_14 = arith.constant 1.000000e+00 : f32
    %21 = vector.broadcast %cst_14 : f32 to vector<16x128xf32>
    %22 = arith.addf %21, %20 : vector<16x128xf32>
    %23 = arith.divf %21, %22 : vector<16x128xf32>
    %24 = vector.extract_strided_slice %14 {offsets = [0, 128], sizes = [16, 128], strides = [1, 1]} : vector<16x384xf32> to vector<16x128xf32>
    %25 = vector.extract_strided_slice %15 {offsets = [0, 128], sizes = [16, 128], strides = [1, 1]} : vector<16x384xf32> to vector<16x128xf32>
    %26 = arith.addf %24, %25 : vector<16x128xf32>
    %27 = arith.negf %26 : vector<16x128xf32>
    %28 = math.exp %27 : vector<16x128xf32>
    %cst_15 = arith.constant 1.000000e+00 : f32
    %29 = vector.broadcast %cst_15 : f32 to vector<16x128xf32>
    %30 = arith.addf %29, %28 : vector<16x128xf32>
    %31 = arith.divf %29, %30 : vector<16x128xf32>
    %32 = vector.extract_strided_slice %14 {offsets = [0, 256], sizes = [16, 128], strides = [1, 1]} : vector<16x384xf32> to vector<16x128xf32>
    %33 = vector.extract_strided_slice %15 {offsets = [0, 256], sizes = [16, 128], strides = [1, 1]} : vector<16x384xf32> to vector<16x128xf32>
    %34 = arith.mulf %23, %33 : vector<16x128xf32>
    %35 = arith.addf %32, %34 : vector<16x128xf32>
    %36 = math.tanh %35 : vector<16x128xf32>
    %37 = arith.subf %7, %36 : vector<16x128xf32>
    %38 = arith.mulf %31, %37 : vector<16x128xf32>
    %39 = arith.addf %36, %38 : vector<16x128xf32>
    %40 = tpu.concatenate %39, %9 in 1 : vector<16x128xf32>, vector<16x128xf32> -> vector<16x256xf32>
    %c0_16 = arith.constant 0 : index
    %c0_17 = arith.constant 0 : index
    %c0_18 = arith.constant 0 : index
    %41 = vector.load %arg5[%c0_16, %c0_17, %c0_18] : memref<1x256x512xf32, #tpu.memory_space<vmem>>, vector<1x256x512xf32>
    %42 = vector.shape_cast %41 : vector<1x256x512xf32> to vector<256x512xf32>
    %cst_19 = arith.constant dense<0.000000e+00> : vector<16x512xf32>
    %43 = tpu.matmul %40, %42, %cst_19 {dimension_numbers = #tpu.dot_dimension_numbers<[1], [0], [0], [1], [0, 0, 1, 1], [], []>} : vector<16x256xf32>, vector<256x512xf32>, vector<16x512xf32> -> vector<16x512xf32>
    %44 = vector.extract_strided_slice %43 {offsets = [0, 0], sizes = [16, 128], strides = [1, 1]} : vector<16x512xf32> to vector<16x128xf32>
    %45 = arith.negf %44 : vector<16x128xf32>
    %46 = math.exp %45 : vector<16x128xf32>
    %cst_20 = arith.constant 1.000000e+00 : f32
    %47 = vector.broadcast %cst_20 : f32 to vector<16x128xf32>
    %48 = arith.addf %47, %46 : vector<16x128xf32>
    %49 = arith.divf %47, %48 : vector<16x128xf32>
    %50 = vector.extract_strided_slice %43 {offsets = [0, 128], sizes = [16, 128], strides = [1, 1]} : vector<16x512xf32> to vector<16x128xf32>
    %51 = arith.negf %50 : vector<16x128xf32>
    %52 = math.exp %51 : vector<16x128xf32>
    %cst_21 = arith.constant 1.000000e+00 : f32
    %53 = vector.broadcast %cst_21 : f32 to vector<16x128xf32>
    %54 = arith.addf %53, %52 : vector<16x128xf32>
    %55 = arith.divf %53, %54 : vector<16x128xf32>
    %56 = vector.extract_strided_slice %43 {offsets = [0, 256], sizes = [16, 128], strides = [1, 1]} : vector<16x512xf32> to vector<16x128xf32>
    %57 = vector.extract_strided_slice %43 {offsets = [0, 384], sizes = [16, 128], strides = [1, 1]} : vector<16x512xf32> to vector<16x128xf32>
    %58 = arith.mulf %49, %57 : vector<16x128xf32>
    %59 = arith.addf %56, %58 : vector<16x128xf32>
    %60 = math.tanh %59 : vector<16x128xf32>
    %61 = arith.subf %9, %60 : vector<16x128xf32>
    %62 = arith.mulf %55, %61 : vector<16x128xf32>
    %63 = arith.addf %60, %62 : vector<16x128xf32>
    %c1_i32 = arith.constant 1 : i32
    %64 = vector.broadcast %c1_i32 : i32 to vector<16x1xi32>
    %65 = arith.subi %4, %64 : vector<16x1xi32>
    %66 = arith.addi %5, %c0_i32_11 : i32
    %67 = vector.broadcast %66 : i32 to vector<16x1xi32>
    %68 = arith.cmpi eq, %65, %67 : vector<16x1xi32>
    %69 = vector.shape_cast %68 : vector<16x1xi1> to vector<16x1xi1>
    %70 = vector.broadcast %69 : vector<16x1xi1> to vector<16x128xi1>
    %71 = arith.select %70, %63, %10 : vector<16x128xi1>, vector<16x128xf32>
    %c1_i32_22 = arith.constant 1 : i32
    %72 = arith.index_cast %c1_i32_22 : i32 to index
    %c0_23 = arith.constant 0 : index
    %c0_24 = arith.constant 0 : index
    %73 = vector.load %arg2[%72, %c0_23, %c0_24] : memref<8x16x384xbf16, #tpu.memory_space<vmem>>, vector<1x16x384xbf16>
    %74 = vector.shape_cast %73 : vector<1x16x384xbf16> to vector<16x384xbf16>
    %75 = arith.extf %74 : vector<16x384xbf16> to vector<16x384xf32>
    %cst_25 = arith.constant dense<0.000000e+00> : vector<16x384xf32>
    %76 = tpu.matmul %39, %3, %cst_25 {dimension_numbers = #tpu.dot_dimension_numbers<[1], [0], [0], [1], [0, 0, 1, 1], [], []>} : vector<16x128xf32>, vector<128x384xf32>, vector<16x384xf32> -> vector<16x384xf32>
    %77 = vector.extract_strided_slice %75 {offsets = [0, 0], sizes = [16, 128], strides = [1, 1]} : vector<16x384xf32> to vector<16x128xf32>
    %78 = vector.extract_strided_slice %76 {offsets = [0, 0], sizes = [16, 128], strides = [1, 1]} : vector<16x384xf32> to vector<16x128xf32>
    %79 = arith.addf %77, %78 : vector<16x128xf32>
    %80 = arith.negf %79 : vector<16x128xf32>
    %81 = math.exp %80 : vector<16x128xf32>
    %cst_26 = arith.constant 1.000000e+00 : f32
    %82 = vector.broadcast %cst_26 : f32 to vector<16x128xf32>
    %83 = arith.addf %82, %81 : vector<16x128xf32>
    %84 = arith.divf %82, %83 : vector<16x128xf32>
    %85 = vector.extract_strided_slice %75 {offsets = [0, 128], sizes = [16, 128], strides = [1, 1]} : vector<16x384xf32> to vector<16x128xf32>
    %86 = vector.extract_strided_slice %76 {offsets = [0, 128], sizes = [16, 128], strides = [1, 1]} : vector<16x384xf32> to vector<16x128xf32>
    %87 = arith.addf %85, %86 : vector<16x128xf32>
    %88 = arith.negf %87 : vector<16x128xf32>
    %89 = math.exp %88 : vector<16x128xf32>
    %cst_27 = arith.constant 1.000000e+00 : f32
    %90 = vector.broadcast %cst_27 : f32 to vector<16x128xf32>
    %91 = arith.addf %90, %89 : vector<16x128xf32>
    %92 = arith.divf %90, %91 : vector<16x128xf32>
    %93 = vector.extract_strided_slice %75 {offsets = [0, 256], sizes = [16, 128], strides = [1, 1]} : vector<16x384xf32> to vector<16x128xf32>
    %94 = vector.extract_strided_slice %76 {offsets = [0, 256], sizes = [16, 128], strides = [1, 1]} : vector<16x384xf32> to vector<16x128xf32>
    %95 = arith.mulf %84, %94 : vector<16x128xf32>
    %96 = arith.addf %93, %95 : vector<16x128xf32>
    %97 = math.tanh %96 : vector<16x128xf32>
    %98 = arith.subf %39, %97 : vector<16x128xf32>
    %99 = arith.mulf %92, %98 : vector<16x128xf32>
    %100 = arith.addf %97, %99 : vector<16x128xf32>
    %101 = tpu.concatenate %100, %63 in 1 : vector<16x128xf32>, vector<16x128xf32> -> vector<16x256xf32>
    %c0_28 = arith.constant 0 : index
    %c0_29 = arith.constant 0 : index
    %c0_30 = arith.constant 0 : index
    %102 = vector.load %arg5[%c0_28, %c0_29, %c0_30] : memref<1x256x512xf32, #tpu.memory_space<vmem>>, vector<1x256x512xf32>
    %103 = vector.shape_cast %102 : vector<1x256x512xf32> to vector<256x512xf32>
    %cst_31 = arith.constant dense<0.000000e+00> : vector<16x512xf32>
    %104 = tpu.matmul %101, %103, %cst_31 {dimension_numbers = #tpu.dot_dimension_numbers<[1], [0], [0], [1], [0, 0, 1, 1], [], []>} : vector<16x256xf32>, vector<256x512xf32>, vector<16x512xf32> -> vector<16x512xf32>
    %105 = vector.extract_strided_slice %104 {offsets = [0, 0], sizes = [16, 128], strides = [1, 1]} : vector<16x512xf32> to vector<16x128xf32>
    %106 = arith.negf %105 : vector<16x128xf32>
    %107 = math.exp %106 : vector<16x128xf32>
    %cst_32 = arith.constant 1.000000e+00 : f32
    %108 = vector.broadcast %cst_32 : f32 to vector<16x128xf32>
    %109 = arith.addf %108, %107 : vector<16x128xf32>
    %110 = arith.divf %108, %109 : vector<16x128xf32>
    %111 = vector.extract_strided_slice %104 {offsets = [0, 128], sizes = [16, 128], strides = [1, 1]} : vector<16x512xf32> to vector<16x128xf32>
    %112 = arith.negf %111 : vector<16x128xf32>
    %113 = math.exp %112 : vector<16x128xf32>
    %cst_33 = arith.constant 1.000000e+00 : f32
    %114 = vector.broadcast %cst_33 : f32 to vector<16x128xf32>
    %115 = arith.addf %114, %113 : vector<16x128xf32>
    %116 = arith.divf %114, %115 : vector<16x128xf32>
    %117 = vector.extract_strided_slice %104 {offsets = [0, 256], sizes = [16, 128], strides = [1, 1]} : vector<16x512xf32> to vector<16x128xf32>
    %118 = vector.extract_strided_slice %104 {offsets = [0, 384], sizes = [16, 128], strides = [1, 1]} : vector<16x512xf32> to vector<16x128xf32>
    %119 = arith.mulf %110, %118 : vector<16x128xf32>
    %120 = arith.addf %117, %119 : vector<16x128xf32>
    %121 = math.tanh %120 : vector<16x128xf32>
    %122 = arith.subf %63, %121 : vector<16x128xf32>
    %123 = arith.mulf %116, %122 : vector<16x128xf32>
    %124 = arith.addf %121, %123 : vector<16x128xf32>
    %c1_i32_34 = arith.constant 1 : i32
    %125 = vector.broadcast %c1_i32_34 : i32 to vector<16x1xi32>
    %126 = arith.subi %4, %125 : vector<16x1xi32>
    %127 = arith.addi %5, %c1_i32_22 : i32
    %128 = vector.broadcast %127 : i32 to vector<16x1xi32>
    %129 = arith.cmpi eq, %126, %128 : vector<16x1xi32>
    %130 = vector.shape_cast %129 : vector<16x1xi1> to vector<16x1xi1>
    %131 = vector.broadcast %130 : vector<16x1xi1> to vector<16x128xi1>
    %132 = arith.select %131, %124, %71 : vector<16x128xi1>, vector<16x128xf32>
    %c2_i32 = arith.constant 2 : i32
    %133 = arith.index_cast %c2_i32 : i32 to index
    %c0_35 = arith.constant 0 : index
    %c0_36 = arith.constant 0 : index
    %134 = vector.load %arg2[%133, %c0_35, %c0_36] : memref<8x16x384xbf16, #tpu.memory_space<vmem>>, vector<1x16x384xbf16>
    %135 = vector.shape_cast %134 : vector<1x16x384xbf16> to vector<16x384xbf16>
    %136 = arith.extf %135 : vector<16x384xbf16> to vector<16x384xf32>
    %cst_37 = arith.constant dense<0.000000e+00> : vector<16x384xf32>
    %137 = tpu.matmul %100, %3, %cst_37 {dimension_numbers = #tpu.dot_dimension_numbers<[1], [0], [0], [1], [0, 0, 1, 1], [], []>} : vector<16x128xf32>, vector<128x384xf32>, vector<16x384xf32> -> vector<16x384xf32>
    %138 = vector.extract_strided_slice %136 {offsets = [0, 0], sizes = [16, 128], strides = [1, 1]} : vector<16x384xf32> to vector<16x128xf32>
    %139 = vector.extract_strided_slice %137 {offsets = [0, 0], sizes = [16, 128], strides = [1, 1]} : vector<16x384xf32> to vector<16x128xf32>
    %140 = arith.addf %138, %139 : vector<16x128xf32>
    %141 = arith.negf %140 : vector<16x128xf32>
    %142 = math.exp %141 : vector<16x128xf32>
    %cst_38 = arith.constant 1.000000e+00 : f32
    %143 = vector.broadcast %cst_38 : f32 to vector<16x128xf32>
    %144 = arith.addf %143, %142 : vector<16x128xf32>
    %145 = arith.divf %143, %144 : vector<16x128xf32>
    %146 = vector.extract_strided_slice %136 {offsets = [0, 128], sizes = [16, 128], strides = [1, 1]} : vector<16x384xf32> to vector<16x128xf32>
    %147 = vector.extract_strided_slice %137 {offsets = [0, 128], sizes = [16, 128], strides = [1, 1]} : vector<16x384xf32> to vector<16x128xf32>
    %148 = arith.addf %146, %147 : vector<16x128xf32>
    %149 = arith.negf %148 : vector<16x128xf32>
    %150 = math.exp %149 : vector<16x128xf32>
    %cst_39 = arith.constant 1.000000e+00 : f32
    %151 = vector.broadcast %cst_39 : f32 to vector<16x128xf32>
    %152 = arith.addf %151, %150 : vector<16x128xf32>
    %153 = arith.divf %151, %152 : vector<16x128xf32>
    %154 = vector.extract_strided_slice %136 {offsets = [0, 256], sizes = [16, 128], strides = [1, 1]} : vector<16x384xf32> to vector<16x128xf32>
    %155 = vector.extract_strided_slice %137 {offsets = [0, 256], sizes = [16, 128], strides = [1, 1]} : vector<16x384xf32> to vector<16x128xf32>
    %156 = arith.mulf %145, %155 : vector<16x128xf32>
    %157 = arith.addf %154, %156 : vector<16x128xf32>
    %158 = math.tanh %157 : vector<16x128xf32>
    %159 = arith.subf %100, %158 : vector<16x128xf32>
    %160 = arith.mulf %153, %159 : vector<16x128xf32>
    %161 = arith.addf %158, %160 : vector<16x128xf32>
    %162 = tpu.concatenate %161, %124 in 1 : vector<16x128xf32>, vector<16x128xf32> -> vector<16x256xf32>
    %c0_40 = arith.constant 0 : index
    %c0_41 = arith.constant 0 : index
    %c0_42 = arith.constant 0 : index
    %163 = vector.load %arg5[%c0_40, %c0_41, %c0_42] : memref<1x256x512xf32, #tpu.memory_space<vmem>>, vector<1x256x512xf32>
    %164 = vector.shape_cast %163 : vector<1x256x512xf32> to vector<256x512xf32>
    %cst_43 = arith.constant dense<0.000000e+00> : vector<16x512xf32>
    %165 = tpu.matmul %162, %164, %cst_43 {dimension_numbers = #tpu.dot_dimension_numbers<[1], [0], [0], [1], [0, 0, 1, 1], [], []>} : vector<16x256xf32>, vector<256x512xf32>, vector<16x512xf32> -> vector<16x512xf32>
    %166 = vector.extract_strided_slice %165 {offsets = [0, 0], sizes = [16, 128], strides = [1, 1]} : vector<16x512xf32> to vector<16x128xf32>
    %167 = arith.negf %166 : vector<16x128xf32>
    %168 = math.exp %167 : vector<16x128xf32>
    %cst_44 = arith.constant 1.000000e+00 : f32
    %169 = vector.broadcast %cst_44 : f32 to vector<16x128xf32>
    %170 = arith.addf %169, %168 : vector<16x128xf32>
    %171 = arith.divf %169, %170 : vector<16x128xf32>
    %172 = vector.extract_strided_slice %165 {offsets = [0, 128], sizes = [16, 128], strides = [1, 1]} : vector<16x512xf32> to vector<16x128xf32>
    %173 = arith.negf %172 : vector<16x128xf32>
    %174 = math.exp %173 : vector<16x128xf32>
    %cst_45 = arith.constant 1.000000e+00 : f32
    %175 = vector.broadcast %cst_45 : f32 to vector<16x128xf32>
    %176 = arith.addf %175, %174 : vector<16x128xf32>
    %177 = arith.divf %175, %176 : vector<16x128xf32>
    %178 = vector.extract_strided_slice %165 {offsets = [0, 256], sizes = [16, 128], strides = [1, 1]} : vector<16x512xf32> to vector<16x128xf32>
    %179 = vector.extract_strided_slice %165 {offsets = [0, 384], sizes = [16, 128], strides = [1, 1]} : vector<16x512xf32> to vector<16x128xf32>
    %180 = arith.mulf %171, %179 : vector<16x128xf32>
    %181 = arith.addf %178, %180 : vector<16x128xf32>
    %182 = math.tanh %181 : vector<16x128xf32>
    %183 = arith.subf %124, %182 : vector<16x128xf32>
    %184 = arith.mulf %177, %183 : vector<16x128xf32>
    %185 = arith.addf %182, %184 : vector<16x128xf32>
    %c1_i32_46 = arith.constant 1 : i32
    %186 = vector.broadcast %c1_i32_46 : i32 to vector<16x1xi32>
    %187 = arith.subi %4, %186 : vector<16x1xi32>
    %188 = arith.addi %5, %c2_i32 : i32
    %189 = vector.broadcast %188 : i32 to vector<16x1xi32>
    %190 = arith.cmpi eq, %187, %189 : vector<16x1xi32>
    %191 = vector.shape_cast %190 : vector<16x1xi1> to vector<16x1xi1>
    %192 = vector.broadcast %191 : vector<16x1xi1> to vector<16x128xi1>
    %193 = arith.select %192, %185, %132 : vector<16x128xi1>, vector<16x128xf32>
    %c3_i32 = arith.constant 3 : i32
    %194 = arith.index_cast %c3_i32 : i32 to index
    %c0_47 = arith.constant 0 : index
    %c0_48 = arith.constant 0 : index
    %195 = vector.load %arg2[%194, %c0_47, %c0_48] : memref<8x16x384xbf16, #tpu.memory_space<vmem>>, vector<1x16x384xbf16>
    %196 = vector.shape_cast %195 : vector<1x16x384xbf16> to vector<16x384xbf16>
    %197 = arith.extf %196 : vector<16x384xbf16> to vector<16x384xf32>
    %cst_49 = arith.constant dense<0.000000e+00> : vector<16x384xf32>
    %198 = tpu.matmul %161, %3, %cst_49 {dimension_numbers = #tpu.dot_dimension_numbers<[1], [0], [0], [1], [0, 0, 1, 1], [], []>} : vector<16x128xf32>, vector<128x384xf32>, vector<16x384xf32> -> vector<16x384xf32>
    %199 = vector.extract_strided_slice %197 {offsets = [0, 0], sizes = [16, 128], strides = [1, 1]} : vector<16x384xf32> to vector<16x128xf32>
    %200 = vector.extract_strided_slice %198 {offsets = [0, 0], sizes = [16, 128], strides = [1, 1]} : vector<16x384xf32> to vector<16x128xf32>
    %201 = arith.addf %199, %200 : vector<16x128xf32>
    %202 = arith.negf %201 : vector<16x128xf32>
    %203 = math.exp %202 : vector<16x128xf32>
    %cst_50 = arith.constant 1.000000e+00 : f32
    %204 = vector.broadcast %cst_50 : f32 to vector<16x128xf32>
    %205 = arith.addf %204, %203 : vector<16x128xf32>
    %206 = arith.divf %204, %205 : vector<16x128xf32>
    %207 = vector.extract_strided_slice %197 {offsets = [0, 128], sizes = [16, 128], strides = [1, 1]} : vector<16x384xf32> to vector<16x128xf32>
    %208 = vector.extract_strided_slice %198 {offsets = [0, 128], sizes = [16, 128], strides = [1, 1]} : vector<16x384xf32> to vector<16x128xf32>
    %209 = arith.addf %207, %208 : vector<16x128xf32>
    %210 = arith.negf %209 : vector<16x128xf32>
    %211 = math.exp %210 : vector<16x128xf32>
    %cst_51 = arith.constant 1.000000e+00 : f32
    %212 = vector.broadcast %cst_51 : f32 to vector<16x128xf32>
    %213 = arith.addf %212, %211 : vector<16x128xf32>
    %214 = arith.divf %212, %213 : vector<16x128xf32>
    %215 = vector.extract_strided_slice %197 {offsets = [0, 256], sizes = [16, 128], strides = [1, 1]} : vector<16x384xf32> to vector<16x128xf32>
    %216 = vector.extract_strided_slice %198 {offsets = [0, 256], sizes = [16, 128], strides = [1, 1]} : vector<16x384xf32> to vector<16x128xf32>
    %217 = arith.mulf %206, %216 : vector<16x128xf32>
    %218 = arith.addf %215, %217 : vector<16x128xf32>
    %219 = math.tanh %218 : vector<16x128xf32>
    %220 = arith.subf %161, %219 : vector<16x128xf32>
    %221 = arith.mulf %214, %220 : vector<16x128xf32>
    %222 = arith.addf %219, %221 : vector<16x128xf32>
    %223 = tpu.concatenate %222, %185 in 1 : vector<16x128xf32>, vector<16x128xf32> -> vector<16x256xf32>
    %c0_52 = arith.constant 0 : index
    %c0_53 = arith.constant 0 : index
    %c0_54 = arith.constant 0 : index
    %224 = vector.load %arg5[%c0_52, %c0_53, %c0_54] : memref<1x256x512xf32, #tpu.memory_space<vmem>>, vector<1x256x512xf32>
    %225 = vector.shape_cast %224 : vector<1x256x512xf32> to vector<256x512xf32>
    %cst_55 = arith.constant dense<0.000000e+00> : vector<16x512xf32>
    %226 = tpu.matmul %223, %225, %cst_55 {dimension_numbers = #tpu.dot_dimension_numbers<[1], [0], [0], [1], [0, 0, 1, 1], [], []>} : vector<16x256xf32>, vector<256x512xf32>, vector<16x512xf32> -> vector<16x512xf32>
    %227 = vector.extract_strided_slice %226 {offsets = [0, 0], sizes = [16, 128], strides = [1, 1]} : vector<16x512xf32> to vector<16x128xf32>
    %228 = arith.negf %227 : vector<16x128xf32>
    %229 = math.exp %228 : vector<16x128xf32>
    %cst_56 = arith.constant 1.000000e+00 : f32
    %230 = vector.broadcast %cst_56 : f32 to vector<16x128xf32>
    %231 = arith.addf %230, %229 : vector<16x128xf32>
    %232 = arith.divf %230, %231 : vector<16x128xf32>
    %233 = vector.extract_strided_slice %226 {offsets = [0, 128], sizes = [16, 128], strides = [1, 1]} : vector<16x512xf32> to vector<16x128xf32>
    %234 = arith.negf %233 : vector<16x128xf32>
    %235 = math.exp %234 : vector<16x128xf32>
    %cst_57 = arith.constant 1.000000e+00 : f32
    %236 = vector.broadcast %cst_57 : f32 to vector<16x128xf32>
    %237 = arith.addf %236, %235 : vector<16x128xf32>
    %238 = arith.divf %236, %237 : vector<16x128xf32>
    %239 = vector.extract_strided_slice %226 {offsets = [0, 256], sizes = [16, 128], strides = [1, 1]} : vector<16x512xf32> to vector<16x128xf32>
    %240 = vector.extract_strided_slice %226 {offsets = [0, 384], sizes = [16, 128], strides = [1, 1]} : vector<16x512xf32> to vector<16x128xf32>
    %241 = arith.mulf %232, %240 : vector<16x128xf32>
    %242 = arith.addf %239, %241 : vector<16x128xf32>
    %243 = math.tanh %242 : vector<16x128xf32>
    %244 = arith.subf %185, %243 : vector<16x128xf32>
    %245 = arith.mulf %238, %244 : vector<16x128xf32>
    %246 = arith.addf %243, %245 : vector<16x128xf32>
    %c1_i32_58 = arith.constant 1 : i32
    %247 = vector.broadcast %c1_i32_58 : i32 to vector<16x1xi32>
    %248 = arith.subi %4, %247 : vector<16x1xi32>
    %249 = arith.addi %5, %c3_i32 : i32
    %250 = vector.broadcast %249 : i32 to vector<16x1xi32>
    %251 = arith.cmpi eq, %248, %250 : vector<16x1xi32>
    %252 = vector.shape_cast %251 : vector<16x1xi1> to vector<16x1xi1>
    %253 = vector.broadcast %252 : vector<16x1xi1> to vector<16x128xi1>
    %254 = arith.select %253, %246, %193 : vector<16x128xi1>, vector<16x128xf32>
    %c4_i32 = arith.constant 4 : i32
    %255 = arith.index_cast %c4_i32 : i32 to index
    %c0_59 = arith.constant 0 : index
    %c0_60 = arith.constant 0 : index
    %256 = vector.load %arg2[%255, %c0_59, %c0_60] : memref<8x16x384xbf16, #tpu.memory_space<vmem>>, vector<1x16x384xbf16>
    %257 = vector.shape_cast %256 : vector<1x16x384xbf16> to vector<16x384xbf16>
    %258 = arith.extf %257 : vector<16x384xbf16> to vector<16x384xf32>
    %cst_61 = arith.constant dense<0.000000e+00> : vector<16x384xf32>
    %259 = tpu.matmul %222, %3, %cst_61 {dimension_numbers = #tpu.dot_dimension_numbers<[1], [0], [0], [1], [0, 0, 1, 1], [], []>} : vector<16x128xf32>, vector<128x384xf32>, vector<16x384xf32> -> vector<16x384xf32>
    %260 = vector.extract_strided_slice %258 {offsets = [0, 0], sizes = [16, 128], strides = [1, 1]} : vector<16x384xf32> to vector<16x128xf32>
    %261 = vector.extract_strided_slice %259 {offsets = [0, 0], sizes = [16, 128], strides = [1, 1]} : vector<16x384xf32> to vector<16x128xf32>
    %262 = arith.addf %260, %261 : vector<16x128xf32>
    %263 = arith.negf %262 : vector<16x128xf32>
    %264 = math.exp %263 : vector<16x128xf32>
    %cst_62 = arith.constant 1.000000e+00 : f32
    %265 = vector.broadcast %cst_62 : f32 to vector<16x128xf32>
    %266 = arith.addf %265, %264 : vector<16x128xf32>
    %267 = arith.divf %265, %266 : vector<16x128xf32>
    %268 = vector.extract_strided_slice %258 {offsets = [0, 128], sizes = [16, 128], strides = [1, 1]} : vector<16x384xf32> to vector<16x128xf32>
    %269 = vector.extract_strided_slice %259 {offsets = [0, 128], sizes = [16, 128], strides = [1, 1]} : vector<16x384xf32> to vector<16x128xf32>
    %270 = arith.addf %268, %269 : vector<16x128xf32>
    %271 = arith.negf %270 : vector<16x128xf32>
    %272 = math.exp %271 : vector<16x128xf32>
    %cst_63 = arith.constant 1.000000e+00 : f32
    %273 = vector.broadcast %cst_63 : f32 to vector<16x128xf32>
    %274 = arith.addf %273, %272 : vector<16x128xf32>
    %275 = arith.divf %273, %274 : vector<16x128xf32>
    %276 = vector.extract_strided_slice %258 {offsets = [0, 256], sizes = [16, 128], strides = [1, 1]} : vector<16x384xf32> to vector<16x128xf32>
    %277 = vector.extract_strided_slice %259 {offsets = [0, 256], sizes = [16, 128], strides = [1, 1]} : vector<16x384xf32> to vector<16x128xf32>
    %278 = arith.mulf %267, %277 : vector<16x128xf32>
    %279 = arith.addf %276, %278 : vector<16x128xf32>
    %280 = math.tanh %279 : vector<16x128xf32>
    %281 = arith.subf %222, %280 : vector<16x128xf32>
    %282 = arith.mulf %275, %281 : vector<16x128xf32>
    %283 = arith.addf %280, %282 : vector<16x128xf32>
    %284 = tpu.concatenate %283, %246 in 1 : vector<16x128xf32>, vector<16x128xf32> -> vector<16x256xf32>
    %c0_64 = arith.constant 0 : index
    %c0_65 = arith.constant 0 : index
    %c0_66 = arith.constant 0 : index
    %285 = vector.load %arg5[%c0_64, %c0_65, %c0_66] : memref<1x256x512xf32, #tpu.memory_space<vmem>>, vector<1x256x512xf32>
    %286 = vector.shape_cast %285 : vector<1x256x512xf32> to vector<256x512xf32>
    %cst_67 = arith.constant dense<0.000000e+00> : vector<16x512xf32>
    %287 = tpu.matmul %284, %286, %cst_67 {dimension_numbers = #tpu.dot_dimension_numbers<[1], [0], [0], [1], [0, 0, 1, 1], [], []>} : vector<16x256xf32>, vector<256x512xf32>, vector<16x512xf32> -> vector<16x512xf32>
    %288 = vector.extract_strided_slice %287 {offsets = [0, 0], sizes = [16, 128], strides = [1, 1]} : vector<16x512xf32> to vector<16x128xf32>
    %289 = arith.negf %288 : vector<16x128xf32>
    %290 = math.exp %289 : vector<16x128xf32>
    %cst_68 = arith.constant 1.000000e+00 : f32
    %291 = vector.broadcast %cst_68 : f32 to vector<16x128xf32>
    %292 = arith.addf %291, %290 : vector<16x128xf32>
    %293 = arith.divf %291, %292 : vector<16x128xf32>
    %294 = vector.extract_strided_slice %287 {offsets = [0, 128], sizes = [16, 128], strides = [1, 1]} : vector<16x512xf32> to vector<16x128xf32>
    %295 = arith.negf %294 : vector<16x128xf32>
    %296 = math.exp %295 : vector<16x128xf32>
    %cst_69 = arith.constant 1.000000e+00 : f32
    %297 = vector.broadcast %cst_69 : f32 to vector<16x128xf32>
    %298 = arith.addf %297, %296 : vector<16x128xf32>
    %299 = arith.divf %297, %298 : vector<16x128xf32>
    %300 = vector.extract_strided_slice %287 {offsets = [0, 256], sizes = [16, 128], strides = [1, 1]} : vector<16x512xf32> to vector<16x128xf32>
    %301 = vector.extract_strided_slice %287 {offsets = [0, 384], sizes = [16, 128], strides = [1, 1]} : vector<16x512xf32> to vector<16x128xf32>
    %302 = arith.mulf %293, %301 : vector<16x128xf32>
    %303 = arith.addf %300, %302 : vector<16x128xf32>
    %304 = math.tanh %303 : vector<16x128xf32>
    %305 = arith.subf %246, %304 : vector<16x128xf32>
    %306 = arith.mulf %299, %305 : vector<16x128xf32>
    %307 = arith.addf %304, %306 : vector<16x128xf32>
    %c1_i32_70 = arith.constant 1 : i32
    %308 = vector.broadcast %c1_i32_70 : i32 to vector<16x1xi32>
    %309 = arith.subi %4, %308 : vector<16x1xi32>
    %310 = arith.addi %5, %c4_i32 : i32
    %311 = vector.broadcast %310 : i32 to vector<16x1xi32>
    %312 = arith.cmpi eq, %309, %311 : vector<16x1xi32>
    %313 = vector.shape_cast %312 : vector<16x1xi1> to vector<16x1xi1>
    %314 = vector.broadcast %313 : vector<16x1xi1> to vector<16x128xi1>
    %315 = arith.select %314, %307, %254 : vector<16x128xi1>, vector<16x128xf32>
    %c5_i32 = arith.constant 5 : i32
    %316 = arith.index_cast %c5_i32 : i32 to index
    %c0_71 = arith.constant 0 : index
    %c0_72 = arith.constant 0 : index
    %317 = vector.load %arg2[%316, %c0_71, %c0_72] : memref<8x16x384xbf16, #tpu.memory_space<vmem>>, vector<1x16x384xbf16>
    %318 = vector.shape_cast %317 : vector<1x16x384xbf16> to vector<16x384xbf16>
    %319 = arith.extf %318 : vector<16x384xbf16> to vector<16x384xf32>
    %cst_73 = arith.constant dense<0.000000e+00> : vector<16x384xf32>
    %320 = tpu.matmul %283, %3, %cst_73 {dimension_numbers = #tpu.dot_dimension_numbers<[1], [0], [0], [1], [0, 0, 1, 1], [], []>} : vector<16x128xf32>, vector<128x384xf32>, vector<16x384xf32> -> vector<16x384xf32>
    %321 = vector.extract_strided_slice %319 {offsets = [0, 0], sizes = [16, 128], strides = [1, 1]} : vector<16x384xf32> to vector<16x128xf32>
    %322 = vector.extract_strided_slice %320 {offsets = [0, 0], sizes = [16, 128], strides = [1, 1]} : vector<16x384xf32> to vector<16x128xf32>
    %323 = arith.addf %321, %322 : vector<16x128xf32>
    %324 = arith.negf %323 : vector<16x128xf32>
    %325 = math.exp %324 : vector<16x128xf32>
    %cst_74 = arith.constant 1.000000e+00 : f32
    %326 = vector.broadcast %cst_74 : f32 to vector<16x128xf32>
    %327 = arith.addf %326, %325 : vector<16x128xf32>
    %328 = arith.divf %326, %327 : vector<16x128xf32>
    %329 = vector.extract_strided_slice %319 {offsets = [0, 128], sizes = [16, 128], strides = [1, 1]} : vector<16x384xf32> to vector<16x128xf32>
    %330 = vector.extract_strided_slice %320 {offsets = [0, 128], sizes = [16, 128], strides = [1, 1]} : vector<16x384xf32> to vector<16x128xf32>
    %331 = arith.addf %329, %330 : vector<16x128xf32>
    %332 = arith.negf %331 : vector<16x128xf32>
    %333 = math.exp %332 : vector<16x128xf32>
    %cst_75 = arith.constant 1.000000e+00 : f32
    %334 = vector.broadcast %cst_75 : f32 to vector<16x128xf32>
    %335 = arith.addf %334, %333 : vector<16x128xf32>
    %336 = arith.divf %334, %335 : vector<16x128xf32>
    %337 = vector.extract_strided_slice %319 {offsets = [0, 256], sizes = [16, 128], strides = [1, 1]} : vector<16x384xf32> to vector<16x128xf32>
    %338 = vector.extract_strided_slice %320 {offsets = [0, 256], sizes = [16, 128], strides = [1, 1]} : vector<16x384xf32> to vector<16x128xf32>
    %339 = arith.mulf %328, %338 : vector<16x128xf32>
    %340 = arith.addf %337, %339 : vector<16x128xf32>
    %341 = math.tanh %340 : vector<16x128xf32>
    %342 = arith.subf %283, %341 : vector<16x128xf32>
    %343 = arith.mulf %336, %342 : vector<16x128xf32>
    %344 = arith.addf %341, %343 : vector<16x128xf32>
    %345 = tpu.concatenate %344, %307 in 1 : vector<16x128xf32>, vector<16x128xf32> -> vector<16x256xf32>
    %c0_76 = arith.constant 0 : index
    %c0_77 = arith.constant 0 : index
    %c0_78 = arith.constant 0 : index
    %346 = vector.load %arg5[%c0_76, %c0_77, %c0_78] : memref<1x256x512xf32, #tpu.memory_space<vmem>>, vector<1x256x512xf32>
    %347 = vector.shape_cast %346 : vector<1x256x512xf32> to vector<256x512xf32>
    %cst_79 = arith.constant dense<0.000000e+00> : vector<16x512xf32>
    %348 = tpu.matmul %345, %347, %cst_79 {dimension_numbers = #tpu.dot_dimension_numbers<[1], [0], [0], [1], [0, 0, 1, 1], [], []>} : vector<16x256xf32>, vector<256x512xf32>, vector<16x512xf32> -> vector<16x512xf32>
    %349 = vector.extract_strided_slice %348 {offsets = [0, 0], sizes = [16, 128], strides = [1, 1]} : vector<16x512xf32> to vector<16x128xf32>
    %350 = arith.negf %349 : vector<16x128xf32>
    %351 = math.exp %350 : vector<16x128xf32>
    %cst_80 = arith.constant 1.000000e+00 : f32
    %352 = vector.broadcast %cst_80 : f32 to vector<16x128xf32>
    %353 = arith.addf %352, %351 : vector<16x128xf32>
    %354 = arith.divf %352, %353 : vector<16x128xf32>
    %355 = vector.extract_strided_slice %348 {offsets = [0, 128], sizes = [16, 128], strides = [1, 1]} : vector<16x512xf32> to vector<16x128xf32>
    %356 = arith.negf %355 : vector<16x128xf32>
    %357 = math.exp %356 : vector<16x128xf32>
    %cst_81 = arith.constant 1.000000e+00 : f32
    %358 = vector.broadcast %cst_81 : f32 to vector<16x128xf32>
    %359 = arith.addf %358, %357 : vector<16x128xf32>
    %360 = arith.divf %358, %359 : vector<16x128xf32>
    %361 = vector.extract_strided_slice %348 {offsets = [0, 256], sizes = [16, 128], strides = [1, 1]} : vector<16x512xf32> to vector<16x128xf32>
    %362 = vector.extract_strided_slice %348 {offsets = [0, 384], sizes = [16, 128], strides = [1, 1]} : vector<16x512xf32> to vector<16x128xf32>
    %363 = arith.mulf %354, %362 : vector<16x128xf32>
    %364 = arith.addf %361, %363 : vector<16x128xf32>
    %365 = math.tanh %364 : vector<16x128xf32>
    %366 = arith.subf %307, %365 : vector<16x128xf32>
    %367 = arith.mulf %360, %366 : vector<16x128xf32>
    %368 = arith.addf %365, %367 : vector<16x128xf32>
    %c1_i32_82 = arith.constant 1 : i32
    %369 = vector.broadcast %c1_i32_82 : i32 to vector<16x1xi32>
    %370 = arith.subi %4, %369 : vector<16x1xi32>
    %371 = arith.addi %5, %c5_i32 : i32
    %372 = vector.broadcast %371 : i32 to vector<16x1xi32>
    %373 = arith.cmpi eq, %370, %372 : vector<16x1xi32>
    %374 = vector.shape_cast %373 : vector<16x1xi1> to vector<16x1xi1>
    %375 = vector.broadcast %374 : vector<16x1xi1> to vector<16x128xi1>
    %376 = arith.select %375, %368, %315 : vector<16x128xi1>, vector<16x128xf32>
    %c6_i32 = arith.constant 6 : i32
    %377 = arith.index_cast %c6_i32 : i32 to index
    %c0_83 = arith.constant 0 : index
    %c0_84 = arith.constant 0 : index
    %378 = vector.load %arg2[%377, %c0_83, %c0_84] : memref<8x16x384xbf16, #tpu.memory_space<vmem>>, vector<1x16x384xbf16>
    %379 = vector.shape_cast %378 : vector<1x16x384xbf16> to vector<16x384xbf16>
    %380 = arith.extf %379 : vector<16x384xbf16> to vector<16x384xf32>
    %cst_85 = arith.constant dense<0.000000e+00> : vector<16x384xf32>
    %381 = tpu.matmul %344, %3, %cst_85 {dimension_numbers = #tpu.dot_dimension_numbers<[1], [0], [0], [1], [0, 0, 1, 1], [], []>} : vector<16x128xf32>, vector<128x384xf32>, vector<16x384xf32> -> vector<16x384xf32>
    %382 = vector.extract_strided_slice %380 {offsets = [0, 0], sizes = [16, 128], strides = [1, 1]} : vector<16x384xf32> to vector<16x128xf32>
    %383 = vector.extract_strided_slice %381 {offsets = [0, 0], sizes = [16, 128], strides = [1, 1]} : vector<16x384xf32> to vector<16x128xf32>
    %384 = arith.addf %382, %383 : vector<16x128xf32>
    %385 = arith.negf %384 : vector<16x128xf32>
    %386 = math.exp %385 : vector<16x128xf32>
    %cst_86 = arith.constant 1.000000e+00 : f32
    %387 = vector.broadcast %cst_86 : f32 to vector<16x128xf32>
    %388 = arith.addf %387, %386 : vector<16x128xf32>
    %389 = arith.divf %387, %388 : vector<16x128xf32>
    %390 = vector.extract_strided_slice %380 {offsets = [0, 128], sizes = [16, 128], strides = [1, 1]} : vector<16x384xf32> to vector<16x128xf32>
    %391 = vector.extract_strided_slice %381 {offsets = [0, 128], sizes = [16, 128], strides = [1, 1]} : vector<16x384xf32> to vector<16x128xf32>
    %392 = arith.addf %390, %391 : vector<16x128xf32>
    %393 = arith.negf %392 : vector<16x128xf32>
    %394 = math.exp %393 : vector<16x128xf32>
    %cst_87 = arith.constant 1.000000e+00 : f32
    %395 = vector.broadcast %cst_87 : f32 to vector<16x128xf32>
    %396 = arith.addf %395, %394 : vector<16x128xf32>
    %397 = arith.divf %395, %396 : vector<16x128xf32>
    %398 = vector.extract_strided_slice %380 {offsets = [0, 256], sizes = [16, 128], strides = [1, 1]} : vector<16x384xf32> to vector<16x128xf32>
    %399 = vector.extract_strided_slice %381 {offsets = [0, 256], sizes = [16, 128], strides = [1, 1]} : vector<16x384xf32> to vector<16x128xf32>
    %400 = arith.mulf %389, %399 : vector<16x128xf32>
    %401 = arith.addf %398, %400 : vector<16x128xf32>
    %402 = math.tanh %401 : vector<16x128xf32>
    %403 = arith.subf %344, %402 : vector<16x128xf32>
    %404 = arith.mulf %397, %403 : vector<16x128xf32>
    %405 = arith.addf %402, %404 : vector<16x128xf32>
    %406 = tpu.concatenate %405, %368 in 1 : vector<16x128xf32>, vector<16x128xf32> -> vector<16x256xf32>
    %c0_88 = arith.constant 0 : index
    %c0_89 = arith.constant 0 : index
    %c0_90 = arith.constant 0 : index
    %407 = vector.load %arg5[%c0_88, %c0_89, %c0_90] : memref<1x256x512xf32, #tpu.memory_space<vmem>>, vector<1x256x512xf32>
    %408 = vector.shape_cast %407 : vector<1x256x512xf32> to vector<256x512xf32>
    %cst_91 = arith.constant dense<0.000000e+00> : vector<16x512xf32>
    %409 = tpu.matmul %406, %408, %cst_91 {dimension_numbers = #tpu.dot_dimension_numbers<[1], [0], [0], [1], [0, 0, 1, 1], [], []>} : vector<16x256xf32>, vector<256x512xf32>, vector<16x512xf32> -> vector<16x512xf32>
    %410 = vector.extract_strided_slice %409 {offsets = [0, 0], sizes = [16, 128], strides = [1, 1]} : vector<16x512xf32> to vector<16x128xf32>
    %411 = arith.negf %410 : vector<16x128xf32>
    %412 = math.exp %411 : vector<16x128xf32>
    %cst_92 = arith.constant 1.000000e+00 : f32
    %413 = vector.broadcast %cst_92 : f32 to vector<16x128xf32>
    %414 = arith.addf %413, %412 : vector<16x128xf32>
    %415 = arith.divf %413, %414 : vector<16x128xf32>
    %416 = vector.extract_strided_slice %409 {offsets = [0, 128], sizes = [16, 128], strides = [1, 1]} : vector<16x512xf32> to vector<16x128xf32>
    %417 = arith.negf %416 : vector<16x128xf32>
    %418 = math.exp %417 : vector<16x128xf32>
    %cst_93 = arith.constant 1.000000e+00 : f32
    %419 = vector.broadcast %cst_93 : f32 to vector<16x128xf32>
    %420 = arith.addf %419, %418 : vector<16x128xf32>
    %421 = arith.divf %419, %420 : vector<16x128xf32>
    %422 = vector.extract_strided_slice %409 {offsets = [0, 256], sizes = [16, 128], strides = [1, 1]} : vector<16x512xf32> to vector<16x128xf32>
    %423 = vector.extract_strided_slice %409 {offsets = [0, 384], sizes = [16, 128], strides = [1, 1]} : vector<16x512xf32> to vector<16x128xf32>
    %424 = arith.mulf %415, %423 : vector<16x128xf32>
    %425 = arith.addf %422, %424 : vector<16x128xf32>
    %426 = math.tanh %425 : vector<16x128xf32>
    %427 = arith.subf %368, %426 : vector<16x128xf32>
    %428 = arith.mulf %421, %427 : vector<16x128xf32>
    %429 = arith.addf %426, %428 : vector<16x128xf32>
    %c1_i32_94 = arith.constant 1 : i32
    %430 = vector.broadcast %c1_i32_94 : i32 to vector<16x1xi32>
    %431 = arith.subi %4, %430 : vector<16x1xi32>
    %432 = arith.addi %5, %c6_i32 : i32
    %433 = vector.broadcast %432 : i32 to vector<16x1xi32>
    %434 = arith.cmpi eq, %431, %433 : vector<16x1xi32>
    %435 = vector.shape_cast %434 : vector<16x1xi1> to vector<16x1xi1>
    %436 = vector.broadcast %435 : vector<16x1xi1> to vector<16x128xi1>
    %437 = arith.select %436, %429, %376 : vector<16x128xi1>, vector<16x128xf32>
    %c7_i32 = arith.constant 7 : i32
    %438 = arith.index_cast %c7_i32 : i32 to index
    %c0_95 = arith.constant 0 : index
    %c0_96 = arith.constant 0 : index
    %439 = vector.load %arg2[%438, %c0_95, %c0_96] : memref<8x16x384xbf16, #tpu.memory_space<vmem>>, vector<1x16x384xbf16>
    %440 = vector.shape_cast %439 : vector<1x16x384xbf16> to vector<16x384xbf16>
    %441 = arith.extf %440 : vector<16x384xbf16> to vector<16x384xf32>
    %cst_97 = arith.constant dense<0.000000e+00> : vector<16x384xf32>
    %442 = tpu.matmul %405, %3, %cst_97 {dimension_numbers = #tpu.dot_dimension_numbers<[1], [0], [0], [1], [0, 0, 1, 1], [], []>} : vector<16x128xf32>, vector<128x384xf32>, vector<16x384xf32> -> vector<16x384xf32>
    %443 = vector.extract_strided_slice %441 {offsets = [0, 0], sizes = [16, 128], strides = [1, 1]} : vector<16x384xf32> to vector<16x128xf32>
    %444 = vector.extract_strided_slice %442 {offsets = [0, 0], sizes = [16, 128], strides = [1, 1]} : vector<16x384xf32> to vector<16x128xf32>
    %445 = arith.addf %443, %444 : vector<16x128xf32>
    %446 = arith.negf %445 : vector<16x128xf32>
    %447 = math.exp %446 : vector<16x128xf32>
    %cst_98 = arith.constant 1.000000e+00 : f32
    %448 = vector.broadcast %cst_98 : f32 to vector<16x128xf32>
    %449 = arith.addf %448, %447 : vector<16x128xf32>
    %450 = arith.divf %448, %449 : vector<16x128xf32>
    %451 = vector.extract_strided_slice %441 {offsets = [0, 128], sizes = [16, 128], strides = [1, 1]} : vector<16x384xf32> to vector<16x128xf32>
    %452 = vector.extract_strided_slice %442 {offsets = [0, 128], sizes = [16, 128], strides = [1, 1]} : vector<16x384xf32> to vector<16x128xf32>
    %453 = arith.addf %451, %452 : vector<16x128xf32>
    %454 = arith.negf %453 : vector<16x128xf32>
    %455 = math.exp %454 : vector<16x128xf32>
    %cst_99 = arith.constant 1.000000e+00 : f32
    %456 = vector.broadcast %cst_99 : f32 to vector<16x128xf32>
    %457 = arith.addf %456, %455 : vector<16x128xf32>
    %458 = arith.divf %456, %457 : vector<16x128xf32>
    %459 = vector.extract_strided_slice %441 {offsets = [0, 256], sizes = [16, 128], strides = [1, 1]} : vector<16x384xf32> to vector<16x128xf32>
    %460 = vector.extract_strided_slice %442 {offsets = [0, 256], sizes = [16, 128], strides = [1, 1]} : vector<16x384xf32> to vector<16x128xf32>
    %461 = arith.mulf %450, %460 : vector<16x128xf32>
    %462 = arith.addf %459, %461 : vector<16x128xf32>
    %463 = math.tanh %462 : vector<16x128xf32>
    %464 = arith.subf %405, %463 : vector<16x128xf32>
    %465 = arith.mulf %458, %464 : vector<16x128xf32>
    %466 = arith.addf %463, %465 : vector<16x128xf32>
    %467 = tpu.concatenate %466, %429 in 1 : vector<16x128xf32>, vector<16x128xf32> -> vector<16x256xf32>
    %c0_100 = arith.constant 0 : index
    %c0_101 = arith.constant 0 : index
    %c0_102 = arith.constant 0 : index
    %468 = vector.load %arg5[%c0_100, %c0_101, %c0_102] : memref<1x256x512xf32, #tpu.memory_space<vmem>>, vector<1x256x512xf32>
    %469 = vector.shape_cast %468 : vector<1x256x512xf32> to vector<256x512xf32>
    %cst_103 = arith.constant dense<0.000000e+00> : vector<16x512xf32>
    %470 = tpu.matmul %467, %469, %cst_103 {dimension_numbers = #tpu.dot_dimension_numbers<[1], [0], [0], [1], [0, 0, 1, 1], [], []>} : vector<16x256xf32>, vector<256x512xf32>, vector<16x512xf32> -> vector<16x512xf32>
    %471 = vector.extract_strided_slice %470 {offsets = [0, 0], sizes = [16, 128], strides = [1, 1]} : vector<16x512xf32> to vector<16x128xf32>
    %472 = arith.negf %471 : vector<16x128xf32>
    %473 = math.exp %472 : vector<16x128xf32>
    %cst_104 = arith.constant 1.000000e+00 : f32
    %474 = vector.broadcast %cst_104 : f32 to vector<16x128xf32>
    %475 = arith.addf %474, %473 : vector<16x128xf32>
    %476 = arith.divf %474, %475 : vector<16x128xf32>
    %477 = vector.extract_strided_slice %470 {offsets = [0, 128], sizes = [16, 128], strides = [1, 1]} : vector<16x512xf32> to vector<16x128xf32>
    %478 = arith.negf %477 : vector<16x128xf32>
    %479 = math.exp %478 : vector<16x128xf32>
    %cst_105 = arith.constant 1.000000e+00 : f32
    %480 = vector.broadcast %cst_105 : f32 to vector<16x128xf32>
    %481 = arith.addf %480, %479 : vector<16x128xf32>
    %482 = arith.divf %480, %481 : vector<16x128xf32>
    %483 = vector.extract_strided_slice %470 {offsets = [0, 256], sizes = [16, 128], strides = [1, 1]} : vector<16x512xf32> to vector<16x128xf32>
    %484 = vector.extract_strided_slice %470 {offsets = [0, 384], sizes = [16, 128], strides = [1, 1]} : vector<16x512xf32> to vector<16x128xf32>
    %485 = arith.mulf %476, %484 : vector<16x128xf32>
    %486 = arith.addf %483, %485 : vector<16x128xf32>
    %487 = math.tanh %486 : vector<16x128xf32>
    %488 = arith.subf %429, %487 : vector<16x128xf32>
    %489 = arith.mulf %482, %488 : vector<16x128xf32>
    %490 = arith.addf %487, %489 : vector<16x128xf32>
    %c1_i32_106 = arith.constant 1 : i32
    %491 = vector.broadcast %c1_i32_106 : i32 to vector<16x1xi32>
    %492 = arith.subi %4, %491 : vector<16x1xi32>
    %493 = arith.addi %5, %c7_i32 : i32
    %494 = vector.broadcast %493 : i32 to vector<16x1xi32>
    %495 = arith.cmpi eq, %492, %494 : vector<16x1xi32>
    %496 = vector.shape_cast %495 : vector<16x1xi1> to vector<16x1xi1>
    %497 = vector.broadcast %496 : vector<16x1xi1> to vector<16x128xi1>
    %498 = arith.select %497, %490, %437 : vector<16x128xi1>, vector<16x128xf32>
    %c8_i32_107 = arith.constant 8 : i32
    %c0_108 = arith.constant 0 : index
    %c0_109 = arith.constant 0 : index
    %c0_110 = arith.constant 0 : index
    %499 = vector.load %arg10[%c0_108, %c0_109, %c0_110] : memref<2x16x128xf32, #tpu.memory_space<vmem>>, vector<1x16x128xf32>
    %500 = vector.shape_cast %499 : vector<1x16x128xf32> to vector<16x128xf32>
    %501 = vector.shape_cast %466 : vector<16x128xf32> to vector<1x16x128xf32>
    tpu.vector_store %arg10[%c0_108, %c0_109, %c0_110], %501 {strides = array<i32>} : memref<2x16x128xf32, #tpu.memory_space<vmem>>, vector<1x16x128xf32>,
    %c1_111 = arith.constant 1 : index
    %c0_112 = arith.constant 0 : index
    %c0_113 = arith.constant 0 : index
    %502 = vector.load %arg10[%c1_111, %c0_112, %c0_113] : memref<2x16x128xf32, #tpu.memory_space<vmem>>, vector<1x16x128xf32>
    %503 = vector.shape_cast %502 : vector<1x16x128xf32> to vector<16x128xf32>
    %504 = vector.shape_cast %490 : vector<16x128xf32> to vector<1x16x128xf32>
    tpu.vector_store %arg10[%c1_111, %c0_112, %c0_113], %504 {strides = array<i32>} : memref<2x16x128xf32, #tpu.memory_space<vmem>>, vector<1x16x128xf32>,
    %c0_114 = arith.constant 0 : index
    %c0_115 = arith.constant 0 : index
    %505 = vector.load %arg11[%c0_114, %c0_115] : memref<16x128xf32, #tpu.memory_space<vmem>>, vector<16x128xf32>
    tpu.vector_store %arg11[%c0_114, %c0_115], %498 {strides = array<i32>} : memref<16x128xf32, #tpu.memory_space<vmem>>, vector<16x128xf32>,
    %c0_i32_116 = arith.constant 0 : i32
    %506 = arith.cmpi eq, %arg1, %c0_i32_116 : i32
    %507 = arith.extui %506 : i1 to i32
    %c0_i32_117 = arith.constant 0 : i32
    %508 = arith.cmpi ne, %507, %c0_i32_117 : i32
    scf.if %508 {
      %509 = tpu.iota {dimensions = array<i32: 1>} : vector<1x128xi32>
      %c64_i32 = arith.constant 64 : i32
      %510 = vector.broadcast %c64_i32 : i32 to vector<1x128xi32>
      %511 = arith.cmpi slt, %509, %510 : vector<1x128xi32>
      %512 = arith.extui %511 : vector<1x128xi1> to vector<1x128xi32>
      %513 = arith.sitofp %512 : vector<1x128xi32> to vector<1x128xf32>
      %cst_118 = arith.constant dense<0.000000e+00> : vector<16xf32>
      %514 = vector.multi_reduction <add>, %498, %cst_118 [1] : vector<16x128xf32> to vector<16xf32>
      %515 = vector.shape_cast %514 : vector<16xf32> to vector<16x1xf32>
      %cst_119 = arith.constant 1.562500e-02 : f32
      %516 = vector.broadcast %cst_119 : f32 to vector<16x1xf32>
      %517 = arith.mulf %515, %516 : vector<16x1xf32>
      %518 = vector.broadcast %517 : vector<16x1xf32> to vector<16x128xf32>
      %519 = arith.subf %498, %518 : vector<16x128xf32>
      %520 = vector.broadcast %513 : vector<1x128xf32> to vector<16x128xf32>
      %521 = arith.mulf %519, %520 : vector<16x128xf32>
      %522 = arith.mulf %521, %521 : vector<16x128xf32>
      %cst_120 = arith.constant dense<0.000000e+00> : vector<16xf32>
      %523 = vector.multi_reduction <add>, %522, %cst_120 [1] : vector<16x128xf32> to vector<16xf32>
      %524 = vector.shape_cast %523 : vector<16xf32> to vector<16x1xf32>
      %cst_121 = arith.constant 1.562500e-02 : f32
      %525 = vector.broadcast %cst_121 : f32 to vector<16x1xf32>
      %526 = arith.mulf %524, %525 : vector<16x1xf32>
      %cst_122 = arith.constant 9.99999974E-6 : f32
      %527 = vector.broadcast %cst_122 : f32 to vector<16x1xf32>
      %528 = arith.addf %526, %527 : vector<16x1xf32>
      %529 = math.rsqrt %528 : vector<16x1xf32>
      %530 = vector.broadcast %529 : vector<16x1xf32> to vector<16x128xf32>
      %531 = arith.mulf %521, %530 : vector<16x128xf32>
      %c0_123 = arith.constant 0 : index
      %c0_124 = arith.constant 0 : index
      %532 = vector.load %arg6[%c0_123, %c0_124] : memref<1x128xf32, #tpu.memory_space<vmem>>, vector<1x128xf32>
      %533 = vector.broadcast %532 : vector<1x128xf32> to vector<16x128xf32>
      %534 = arith.mulf %531, %533 : vector<16x128xf32>
      %c0_125 = arith.constant 0 : index
      %c0_126 = arith.constant 0 : index
      %535 = vector.load %arg7[%c0_125, %c0_126] : memref<1x128xf32, #tpu.memory_space<vmem>>, vector<1x128xf32>
      %536 = vector.broadcast %535 : vector<1x128xf32> to vector<16x128xf32>
      %537 = arith.addf %534, %536 : vector<16x128xf32>
      %c0_127 = arith.constant 0 : index
      %c0_128 = arith.constant 0 : index
      %538 = vector.load %arg9[%c0_127, %c0_128] : memref<16x128xf32, #tpu.memory_space<vmem>>, vector<16x128xf32>
      tpu.vector_store %arg9[%c0_127, %c0_128], %537 {strides = array<i32>} : memref<16x128xf32, #tpu.memory_space<vmem>>, vector<16x128xf32>,
    } else {
    }
    return
  }
  func.func @transform_0(%arg0: i32, %arg1: i32) -> (i32, i32, i32) {
    %c0_i32 = arith.constant 0 : i32
    %c0_i32_0 = arith.constant 0 : i32
    return %arg1, %arg0, %c0_i32 : i32, i32, i32
  }
  func.func @transform_1(%arg0: i32, %arg1: i32) -> (i32, i32, i32) {
    %c0_i32 = arith.constant 0 : i32
    %c0_i32_0 = arith.constant 0 : i32
    %c0_i32_1 = arith.constant 0 : i32
    %c0_i32_2 = arith.constant 0 : i32
    return %c0_i32, %c0_i32_0, %c0_i32_1 : i32, i32, i32
  }
  func.func @transform_2(%arg0: i32, %arg1: i32) -> (i32, i32) {
    %c0_i32 = arith.constant 0 : i32
    %c0_i32_0 = arith.constant 0 : i32
    %c0_i32_1 = arith.constant 0 : i32
    return %c0_i32, %c0_i32_0 : i32, i32
  }
  func.func @transform_3(%arg0: i32, %arg1: i32) -> (i32, i32, i32) {
    %c0_i32 = arith.constant 0 : i32
    %c0_i32_0 = arith.constant 0 : i32
    %c0_i32_1 = arith.constant 0 : i32
    %c0_i32_2 = arith.constant 0 : i32
    return %c0_i32, %c0_i32_0, %c0_i32_1 : i32, i32, i32
  }
  func.func @transform_4(%arg0: i32, %arg1: i32) -> (i32, i32) {
    %c0_i32 = arith.constant 0 : i32
    %c0_i32_0 = arith.constant 0 : i32
    %c0_i32_1 = arith.constant 0 : i32
    return %c0_i32, %c0_i32_0 : i32, i32
  }
  func.func @transform_5(%arg0: i32, %arg1: i32) -> (i32, i32) {
    %c0_i32 = arith.constant 0 : i32
    %c0_i32_0 = arith.constant 0 : i32
    %c0_i32_1 = arith.constant 0 : i32
    return %c0_i32, %c0_i32_0 : i32, i32
  }
  func.func @transform_6(%arg0: i32, %arg1: i32) -> (i32, i32) {
    %c0_i32 = arith.constant 0 : i32
    %c0_i32_0 = arith.constant 0 : i32
    return %arg0, %c0_i32 : i32, i32
  }
  func.func @transform_7(%arg0: i32, %arg1: i32) -> (i32, i32) {
    %c0_i32 = arith.constant 0 : i32
    %c0_i32_0 = arith.constant 0 : i32
    return %arg0, %c0_i32 : i32, i32
  }
}

</mosaic_0001>

<llo_original>
// kernel: tpu_custom_call.1
$region0: #{tpu_custom_call.1}
  #allocation0 [shape = 'u32[]', space=smem, size = 0x4, offset = 0x4, fixed_abs, tag = 'smem constant byte address 0x4 - core index']
  #allocation1 [shape = 'u32[72,128]{1,0:T(1,128)}', space=vmem, size = 0x9000, scoped, tag = 'internal scratch']
  #allocation2 [shape = 'f32[2,16,128]{2,1,0:T(8,128)}', space=vmem, size = 0x4000, scoped, tag = 'scratch operand']
  #allocation3 [shape = 'f32[16,128]{1,0:T(8,128)}', space=vmem, size = 0x2000, scoped, tag = 'scratch operand']
  %s0 = inlined_call_operand.hbm [shape: bf16[8,16,384], index: 0, kind: input, shape index: {}]
  %s1 = inlined_call_operand.vmem [shape: f32[2,1,128], index: 1, kind: input, shape index: {}]
  %s2 = inlined_call_operand.hbm [shape: f32[128,384], index: 2, kind: input, shape index: {}]
  %s3 = inlined_call_operand.hbm [shape: f32[1,256,512], index: 3, kind: input, shape index: {}]
  %s4 = inlined_call_operand.vmem [shape: f32[1,128], index: 4, kind: input, shape index: {}]
  %s5 = inlined_call_operand.vmem [shape: f32[1,128], index: 5, kind: input, shape index: {}]
  %s6 = inlined_call_operand.vmem [shape: s32[16,1], index: 6, kind: input, shape index: {}]
  %s7 = inlined_call_operand.hbm [shape: f32[16,128], index: 7, kind: output, shape index: {}]
  %s8 = sld [smem:[#allocation0]]
  $region58: #{tpu_custom_call.1} parent=0
    _
  %s10 = ssub.s32 1, %s8
  %s11 = scalar_select 0, %s10, %s8
  $region1: #{tpu_custom_call.1} parent=0
    #allocation4 [shape = 'u8[98304]{0}', space=vmem, size = 0x18000, scoped, tag = 'input window, operand 0, single buffered']
    #allocation5 [shape = 's32[1]{0}', space=sflag, size = 0x4, scoped, tag = 'scoped memory for tpu_custom_call.1']
    #allocation6 [shape = 's32[1]{0}', space=sflag, size = 0x4, scoped, tag = 'scoped memory for tpu_custom_call.1']
    #allocation7 [shape = 'u8[196608]{0}', space=vmem, size = 0x30000, scoped, tag = 'input window, operand 2, single buffered']
    #allocation8 [shape = 's32[1]{0}', space=sflag, size = 0x4, scoped, tag = 'scoped memory for tpu_custom_call.1']
    #allocation9 [shape = 'u8[524288]{0}', space=vmem, size = 0x80000, scoped, tag = 'input window, operand 3, single buffered']
    #allocation10 [shape = 'u8[8192]{0}', space=vmem, size = 0x2000, scoped, tag = 'output window, operand 0, single buffered']
    %12 = vsyncpa [#allocation5], 0
    %13 = vsyncpa [#allocation8], 0
    %14 = vsyncpa [#allocation6], 0
    // Predicated region
    $region2: #{tpu_custom_call.1} parent=1 // pred_check
      _
    $region3: #{tpu_custom_call.1} parent=1 // pred_check_branch
      %16 = sbr.rel (0) target = $region5
    $region4: #{tpu_custom_call.1} parent=1 // pred_region
      %18 = vsyncadd [#allocation5], 0
      %s19 = sshll.u32 %s0, 4
      %s20 = int_to_ptr.hbm [resolvable:$true] %s19
      %s21 = sshll.u32 [#allocation4], 4
      %s22 = int_to_ptr.vmem [resolvable:$true] %s21
      %27 = dma.hbm_to_vmem [thread:$0]  %s20, 3072, %s22, [#allocation5], 192, 192, 12
    $region5: #{tpu_custom_call.1} parent=1 // pred_fallthru
      _
    // Predicated region
    $region6: #{tpu_custom_call.1} parent=1 // pred_check
      _
    $region7: #{tpu_custom_call.1} parent=1 // pred_check_branch
      %29 = sbr.rel (0) target = $region9
    $region8: #{tpu_custom_call.1} parent=1 // pred_region
      _
    $region9: #{tpu_custom_call.1} parent=1 // pred_fallthru
      _
    // Predicated region
    $region10: #{tpu_custom_call.1} parent=1 // pred_check
      _
    $region11: #{tpu_custom_call.1} parent=1 // pred_check_branch
      %31 = sbr.rel (0) target = $region13
    $region12: #{tpu_custom_call.1} parent=1 // pred_region
      %33 = vsyncadd [#allocation8], 0
      %s34 = sshll.u32 %s2, 4
      %s35 = int_to_ptr.hbm [resolvable:$true] %s34
      %s36 = sshll.u32 [#allocation7], 4
      %s37 = int_to_ptr.vmem [resolvable:$true] %s36
      %42 = dma.hbm_to_vmem [thread:$0]  %s35, 6144, %s37, [#allocation8], 384, 384, 24
    $region13: #{tpu_custom_call.1} parent=1 // pred_fallthru
      _
    // Predicated region
    $region14: #{tpu_custom_call.1} parent=1 // pred_check
      _
    $region15: #{tpu_custom_call.1} parent=1 // pred_check_branch
      %44 = sbr.rel (0) target = $region17
    $region16: #{tpu_custom_call.1} parent=1 // pred_region
      %46 = vsyncadd [#allocation8], 0
      %s47 = sshll.u32 %s3, 4
      %s48 = int_to_ptr.hbm [resolvable:$true] %s47
      %s49 = sshll.u32 [#allocation9], 4
      %s50 = int_to_ptr.vmem [resolvable:$true] %s49
      %55 = dma.hbm_to_vmem [thread:$0]  %s48, 16384, %s50, [#allocation8], 512, 512, 32
    $region17: #{tpu_custom_call.1} parent=1 // pred_fallthru
      _
    // Predicated region
    $region18: #{tpu_custom_call.1} parent=1 // pred_check
      _
    $region19: #{tpu_custom_call.1} parent=1 // pred_check_branch
      %57 = sbr.rel (0) target = $region21
    $region20: #{tpu_custom_call.1} parent=1 // pred_region
      _
    $region21: #{tpu_custom_call.1} parent=1 // pred_fallthru
      _
    // Predicated region
    $region22: #{tpu_custom_call.1} parent=1 // pred_check
      _
    $region23: #{tpu_custom_call.1} parent=1 // pred_check_branch
      %59 = sbr.rel (0) target = $region25
    $region24: #{tpu_custom_call.1} parent=1 // pred_region
      _
    $region25: #{tpu_custom_call.1} parent=1 // pred_fallthru
      _
    // Predicated region
    $region26: #{tpu_custom_call.1} parent=1 // pred_check
      _
    $region27: #{tpu_custom_call.1} parent=1 // pred_check_branch
      %61 = sbr.rel (0) target = $region29
    $region28: #{tpu_custom_call.1} parent=1 // pred_region
      _
    $region29: #{tpu_custom_call.1} parent=1 // pred_fallthru
      _
    // Predicated region
    $region30: #{tpu_custom_call.1} parent=1 // pred_check
      _
    $region31: #{tpu_custom_call.1} parent=1 // pred_check_branch
      %63 = sbr.rel (0) target = $region33
    $region32: #{tpu_custom_call.1} parent=1 // pred_region
      %65 = dma.done [#allocation5], 3072
    $region33: #{tpu_custom_call.1} parent=1 // pred_fallthru
      _
    // Predicated region
    $region34: #{tpu_custom_call.1} parent=1 // pred_check
      _
    $region35: #{tpu_custom_call.1} parent=1 // pred_check_branch
      %67 = sbr.rel (0) target = $region37
    $region36: #{tpu_custom_call.1} parent=1 // pred_region
      %69 = dma.done [#allocation8], 6144
    $region37: #{tpu_custom_call.1} parent=1 // pred_fallthru
      _
    // Predicated region
    $region38: #{tpu_custom_call.1} parent=1 // pred_check
      _
    $region39: #{tpu_custom_call.1} parent=1 // pred_check_branch
      %71 = sbr.rel (0) target = $region41
    $region40: #{tpu_custom_call.1} parent=1 // pred_region
      %73 = dma.done [#allocation8], 16384
    $region41: #{tpu_custom_call.1} parent=1 // pred_fallthru
      _
    %p74 = scmp.eq.s32.totalorder 0, 0
    // Predicated region
    $region42: #{tpu_custom_call.1} parent=1 // pred_check
      %p75 = pneg %p74
    $region43: #{tpu_custom_call.1} parent=1 // pred_check_branch
      %77 = sbr.rel (%p75) target = $region45
    $region44: #{tpu_custom_call.1} parent=1 // pred_region
      %v78 = vld [vmem:[%s1] sm:$0x1]
      %v80 = vperm.slane %v78, 0
      %82 = vst [vmem:[#allocation2] sm:$0xff] %v80
      %83 = vst [vmem:[#allocation2 + $0x8] sm:$0xff] %v80
      %s84 = scalar_lea.vmem %s1, 1
      %v85 = vld [vmem:[%s84] sm:$0x1]
      %v87 = vperm.slane %v85, 0
      %s89 = scalar_lea.vmem [#allocation2], 16
      %90 = vst [vmem:[%s89] sm:$0xff] %v87
      %91 = vst [vmem:[%s89 + $0x8] sm:$0xff] %v87
      %92 = vst [vmem:[#allocation3] sm:$0xff] 0.0
      %93 = vst [vmem:[#allocation3 + $0x8] sm:$0xff] 0.0
    $region45: #{tpu_custom_call.1} parent=1 // pred_fallthru
      _
    %v94 = vld [vmem:[#allocation7] sm:$0xff]
    %v95 = vld [vmem:[#allocation7 + $0x8] sm:$0xff]
    %v96 = vld [vmem:[#allocation7 + $0x10] sm:$0xff]
    %v97 = vld [vmem:[#allocation7 + $0x18] sm:$0xff]
    %v98 = vld [vmem:[#allocation7 + $0x20] sm:$0xff]
    %v99 = vld [vmem:[#allocation7 + $0x28] sm:$0xff]
    %v100 = vld [vmem:[#allocation7 + $0x30] sm:$0xff]
    %v101 = vld [vmem:[#allocation7 + $0x38] sm:$0xff]
    %v102 = vld [vmem:[#allocation7 + $0x40] sm:$0xff]
    %v103 = vld [vmem:[#allocation7 + $0x48] sm:$0xff]
    %v104 = vld [vmem:[#allocation7 + $0x50] sm:$0xff]
    %v105 = vld [vmem:[#allocation7 + $0x58] sm:$0xff]
    %v106 = vld [vmem:[#allocation7 + $0x60] sm:$0xff]
    %v107 = vld [vmem:[#allocation7 + $0x68] sm:$0xff]
    %v108 = vld [vmem:[#allocation7 + $0x70] sm:$0xff]
    %v109 = vld [vmem:[#allocation7 + $0x78] sm:$0xff]
    %v110 = vld [vmem:[#allocation7 + $0x80] sm:$0xff]
    %v111 = vld [vmem:[#allocation7 + $0x88] sm:$0xff]
    %v112 = vld [vmem:[#allocation7 + $0x90] sm:$0xff]
    %v113 = vld [vmem:[#allocation7 + $0x98] sm:$0xff]
    %v114 = vld [vmem:[#allocation7 + $0xa0] sm:$0xff]
    %v115 = vld [vmem:[#allocation7 + $0xa8] sm:$0xff]
    %v116 = vld [vmem:[#allocation7 + $0xb0] sm:$0xff]
    %v117 = vld [vmem:[#allocation7 + $0xb8] sm:$0xff]
    %v118 = vld [vmem:[#allocation7 + $0xc0] sm:$0xff]
    %v119 = vld [vmem:[#allocation7 + $0xc8] sm:$0xff]
    %v120 = vld [vmem:[#allocation7 + $0xd0] sm:$0xff]
    %v121 = vld [vmem:[#allocation7 + $0xd8] sm:$0xff]
    %v122 = vld [vmem:[#allocation7 + $0xe0] sm:$0xff]
    %v123 = vld [vmem:[#allocation7 + $0xe8] sm:$0xff]
    %v124 = vld [vmem:[#allocation7 + $0xf0] sm:$0xff]
    %v125 = vld [vmem:[#allocation7 + $0xf8] sm:$0xff]
    %v126 = vld [vmem:[#allocation7 + $0x100] sm:$0xff]
    %v127 = vld [vmem:[#allocation7 + $0x108] sm:$0xff]
    %v128 = vld [vmem:[#allocation7 + $0x110] sm:$0xff]
    %v129 = vld [vmem:[#allocation7 + $0x118] sm:$0xff]
    %v130 = vld [vmem:[#allocation7 + $0x120] sm:$0xff]
    %v131 = vld [vmem:[#allocation7 + $0x128] sm:$0xff]
    %v132 = vld [vmem:[#allocation7 + $0x130] sm:$0xff]
    %v133 = vld [vmem:[#allocation7 + $0x138] sm:$0xff]
    %v134 = vld [vmem:[#allocation7 + $0x140] sm:$0xff]
    %v135 = vld [vmem:[#allocation7 + $0x148] sm:$0xff]
    %v136 = vld [vmem:[#allocation7 + $0x150] sm:$0xff]
    %v137 = vld [vmem:[#allocation7 + $0x158] sm:$0xff]
    %v138 = vld [vmem:[#allocation7 + $0x160] sm:$0xff]
    %v139 = vld [vmem:[#allocation7 + $0x168] sm:$0xff]
    %v140 = vld [vmem:[#allocation7 + $0x170] sm:$0xff]
    %v141 = vld [vmem:[#allocation7 + $0x178] sm:$0xff]
    %v142 = vld [vmem:[%s6] sm:$0xff]
    %v143 = vld [vmem:[%s6 + $0x8] sm:$0xff]
    %s144 = smul.u32 0, 8
    %v145 = vld [vmem:[#allocation2] sm:$0xff]
    %v146 = vld [vmem:[#allocation2 + $0x8] sm:$0xff]
    %s147 = scalar_lea.vmem [#allocation2], 16
    %v148 = vld [vmem:[%s147] sm:$0xff]
    %v149 = vld [vmem:[%s147 + $0x8] sm:$0xff]
    %v150 = vld [vmem:[#allocation3] sm:$0xff]
    %v151 = vld [vmem:[#allocation3 + $0x8] sm:$0xff]
    %v152 = vld [vmem:[#allocation4] sm:$0xff]
    %v153 = vld [vmem:[#allocation4 + $0x8] sm:$0xf]
    %v154 = vld [vmem:[#allocation4 + $0xc] sm:$0xff]
    %v155 = vld [vmem:[#allocation4 + $0x14] sm:$0xf]
    %v156 = vunpack.c.l.bf16 %v152
    %v157 = vunpack.c.h.bf16 %v152
    %v158 = vunpack.c.l.bf16 %v153
    %v159 = vunpack.c.l.bf16 %v154
    %v160 = vunpack.c.h.bf16 %v154
    %v161 = vunpack.c.l.bf16 %v155
    %162 = vmatpush.msra.mxu0 %v139
    %163 = vmatpush.msra.mxu0 %v136
    %164 = vmatpush.msra.mxu0 %v133
    %165 = vmatpush.msra.mxu0 %v130
    %166 = vmatpush.msra.mxu0 %v127
    %167 = vmatpush.msra.mxu0 %v124
    %168 = vmatpush.msra.mxu0 %v121
    %169 = vmatpush.msra.mxu0 %v118
    %170 = vmatpush.msra.mxu0 %v115
    %171 = vmatpush.msra.mxu0 %v112
    %172 = vmatpush.msra.mxu0 %v109
    %173 = vmatpush.msra.mxu0 %v106
    %174 = vmatpush.msra.mxu0 %v103
    %175 = vmatpush.msra.mxu0 %v100
    %176 = vmatpush.msra.mxu0 %v97
    %177 = vmatpush.msra.mxu0 %v94
    %178 = vmatmul.f32.gmra.mxu0 %v145
    %v179 = vpop.f32.mrf.mxu0
    %v180 = vadd.f32 0.0, %v179
    %181 = vmatmul.f32.gmra.mxu0 %v146
    %v182 = vpop.f32.mrf.mxu0
    %v183 = vadd.f32 0.0, %v182
    %184 = vdwg.mxu0
    %185 = vmatpush.msra.mxu0 %v140
    %186 = vmatpush.msra.mxu0 %v137
    %187 = vmatpush.msra.mxu0 %v134
    %188 = vmatpush.msra.mxu0 %v131
    %189 = vmatpush.msra.mxu0 %v128
    %190 = vmatpush.msra.mxu0 %v125
    %191 = vmatpush.msra.mxu0 %v122
    %192 = vmatpush.msra.mxu0 %v119
    %193 = vmatpush.msra.mxu0 %v116
    %194 = vmatpush.msra.mxu0 %v113
    %195 = vmatpush.msra.mxu0 %v110
    %196 = vmatpush.msra.mxu0 %v107
    %197 = vmatpush.msra.mxu0 %v104
    %198 = vmatpush.msra.mxu0 %v101
    %199 = vmatpush.msra.mxu0 %v98
    %200 = vmatpush.msra.mxu0 %v95
    %201 = vmatmul.f32.gmra.mxu0 %v145
    %v202 = vpop.f32.mrf.mxu0
    %v203 = vadd.f32 0.0, %v202
    %204 = vmatmul.f32.gmra.mxu0 %v146
    %v205 = vpop.f32.mrf.mxu0
    %v206 = vadd.f32 0.0, %v205
    %207 = vdwg.mxu0
    %208 = vmatpush.msra.mxu0 %v141
    %209 = vmatpush.msra.mxu0 %v138
    %210 = vmatpush.msra.mxu0 %v135
    %211 = vmatpush.msra.mxu0 %v132
    %212 = vmatpush.msra.mxu0 %v129
    %213 = vmatpush.msra.mxu0 %v126
    %214 = vmatpush.msra.mxu0 %v123
    %215 = vmatpush.msra.mxu0 %v120
    %216 = vmatpush.msra.mxu0 %v117
    %217 = vmatpush.msra.mxu0 %v114
    %218 = vmatpush.msra.mxu0 %v111
    %219 = vmatpush.msra.mxu0 %v108
    %220 = vmatpush.msra.mxu0 %v105
    %221 = vmatpush.msra.mxu0 %v102
    %222 = vmatpush.msra.mxu0 %v99
    %223 = vmatpush.msra.mxu0 %v96
    %224 = vmatmul.f32.gmra.mxu0 %v145
    %v225 = vpop.f32.mrf.mxu0
    %v226 = vadd.f32 0.0, %v225
    %227 = vmatmul.f32.gmra.mxu0 %v146
    %v228 = vpop.f32.mrf.mxu0
    %v229 = vadd.f32 0.0, %v228
    %230 = vdwg.mxu0
    %v231 = vadd.f32 %v156, %v180
    %v232 = vadd.f32 %v159, %v183
    %v233 = vxor.u32 %v231, 2147483648
    %v234 = vxor.u32 %v232, 2147483648
    %v235 = vmul.f32 %v233, 1.442695
    %v236 = vpow.pop %v235
    %v237 = vmul.f32 %v234, 1.442695
    %v238 = vpow.pop %v237
    %v239 = vadd.f32 %v236, 1.0
    %v240 = vadd.f32 %v238, 1.0
    %v241 = vrcp.pop %v239
    %v242 = vmul.f32 %v239, %v241
    %v243 = vsub.f32 1.0, %v242
    %v244 = vmul.f32 %v241, %v243
    %v245 = vadd.f32 %v241, %v244
    %vm246 = vweird.f32 %v239
    %vm247 = vweird.f32 %v241
    %vm248 = vmor %vm246, %vm247
    %v249 = vsel %vm248, %v241, %v245
    %v250 = vand.u32 2147483647, %v239
    %vm251 = vcmp.eq.f32.partialorder %v250, 8.507059e+37
    %v252 = vand.u32 %v239, 2147483648
    %v253 = vor.u32 1.1754944e-38, %v252
    %v254 = vsel %vm251, %v253, %v249
    %v255 = vmul.f32 1.0, %v254
    %v256 = vrcp.pop %v240
    %v257 = vmul.f32 %v240, %v256
    %v258 = vsub.f32 1.0, %v257
    %v259 = vmul.f32 %v256, %v258
    %v260 = vadd.f32 %v256, %v259
    %vm261 = vweird.f32 %v240
    %vm262 = vweird.f32 %v256
    %vm263 = vmor %vm261, %vm262
    %v264 = vsel %vm263, %v256, %v260
    %v265 = vand.u32 2147483647, %v240
    %vm266 = vcmp.eq.f32.partialorder %v265, 8.507059e+37
    %v267 = vand.u32 %v240, 2147483648
    %v268 = vor.u32 1.1754944e-38, %v267
    %v269 = vsel %vm266, %v268, %v264
    %v270 = vmul.f32 1.0, %v269
    %v271 = vadd.f32 %v157, %v203
    %v272 = vadd.f32 %v160, %v206
    %v273 = vxor.u32 %v271, 2147483648
    %v274 = vxor.u32 %v272, 2147483648
    %v275 = vmul.f32 %v273, 1.442695
    %v276 = vpow.pop %v275
    %v277 = vmul.f32 %v274, 1.442695
    %v278 = vpow.pop %v277
    %v279 = vadd.f32 %v276, 1.0
    %v280 = vadd.f32 %v278, 1.0
    %v281 = vrcp.pop %v279
    %v282 = vmul.f32 %v279, %v281
    %v283 = vsub.f32 1.0, %v282
    %v284 = vmul.f32 %v281, %v283
    %v285 = vadd.f32 %v281, %v284
    %vm286 = vweird.f32 %v279
    %vm287 = vweird.f32 %v281
    %vm288 = vmor %vm286, %vm287
    %v289 = vsel %vm288, %v281, %v285
    %v290 = vand.u32 2147483647, %v279
    %vm291 = vcmp.eq.f32.partialorder %v290, 8.507059e+37
    %v292 = vand.u32 %v279, 2147483648
    %v293 = vor.u32 1.1754944e-38, %v292
    %v294 = vsel %vm291, %v293, %v289
    %v295 = vmul.f32 1.0, %v294
    %v296 = vrcp.pop %v280
    %v297 = vmul.f32 %v280, %v296
    %v298 = vsub.f32 1.0, %v297
    %v299 = vmul.f32 %v296, %v298
    %v300 = vadd.f32 %v296, %v299
    %vm301 = vweird.f32 %v280
    %vm302 = vweird.f32 %v296
    %vm303 = vmor %vm301, %vm302
    %v304 = vsel %vm303, %v296, %v300
    %v305 = vand.u32 2147483647, %v280
    %vm306 = vcmp.eq.f32.partialorder %v305, 8.507059e+37
    %v307 = vand.u32 %v280, 2147483648
    %v308 = vor.u32 1.1754944e-38, %v307
    %v309 = vsel %vm306, %v308, %v304
    %v310 = vmul.f32 1.0, %v309
    %v311 = vmul.f32 %v255, %v226
    %v312 = vmul.f32 %v270, %v229
    %v313 = vadd.f32 %v158, %v311
    %v314 = vadd.f32 %v161, %v312
    %v315 = vtanh.pop %v313
    %v316 = vtanh.pop %v314
    %v317 = vsub.f32 %v145, %v315
    %v318 = vsub.f32 %v146, %v316
    %v319 = vmul.f32 %v295, %v317
    %v320 = vmul.f32 %v310, %v318
    %v321 = vadd.f32 %v315, %v319
    %v322 = vadd.f32 %v316, %v320
    %v323 = vld [vmem:[#allocation9] sm:$0xff]
    %v324 = vld [vmem:[#allocation9 + $0x8] sm:$0xff]
    %v325 = vld [vmem:[#allocation9 + $0x10] sm:$0xff]
    %v326 = vld [vmem:[#allocation9 + $0x18] sm:$0xff]
    %v327 = vld [vmem:[#allocation9 + $0x20] sm:$0xff]
    %v328 = vld [vmem:[#allocation9 + $0x28] sm:$0xff]
    %v329 = vld [vmem:[#allocation9 + $0x30] sm:$0xff]
    %v330 = vld [vmem:[#allocation9 + $0x38] sm:$0xff]
    %v331 = vld [vmem:[#allocation9 + $0x40] sm:$0xff]
    %v332 = vld [vmem:[#allocation9 + $0x48] sm:$0xff]
    %v333 = vld [vmem:[#allocation9 + $0x50] sm:$0xff]
    %v334 = vld [vmem:[#allocation9 + $0x58] sm:$0xff]
    %v335 = vld [vmem:[#allocation9 + $0x60] sm:$0xff]
    %v336 = vld [vmem:[#allocation9 + $0x68] sm:$0xff]
    %v337 = vld [vmem:[#allocation9 + $0x70] sm:$0xff]
    %v338 = vld [vmem:[#allocation9 + $0x78] sm:$0xff]
    %v339 = vld [vmem:[#allocation9 + $0x80] sm:$0xff]
    %v340 = vld [vmem:[#allocation9 + $0x88] sm:$0xff]
    %v341 = vld [vmem:[#allocation9 + $0x90] sm:$0xff]
    %v342 = vld [vmem:[#allocation9 + $0x98] sm:$0xff]
    %v343 = vld [vmem:[#allocation9 + $0xa0] sm:$0xff]
    %v344 = vld [vmem:[#allocation9 + $0xa8] sm:$0xff]
    %v345 = vld [vmem:[#allocation9 + $0xb0] sm:$0xff]
    %v346 = vld [vmem:[#allocation9 + $0xb8] sm:$0xff]
    %v347 = vld [vmem:[#allocation9 + $0xc0] sm:$0xff]
    %v348 = vld [vmem:[#allocation9 + $0xc8] sm:$0xff]
    %v349 = vld [vmem:[#allocation9 + $0xd0] sm:$0xff]
    %v350 = vld [vmem:[#allocation9 + $0xd8] sm:$0xff]
    %v351 = vld [vmem:[#allocation9 + $0xe0] sm:$0xff]
    %v352 = vld [vmem:[#allocation9 + $0xe8] sm:$0xff]
    %v353 = vld [vmem:[#allocation9 + $0xf0] sm:$0xff]
    %v354 = vld [vmem:[#allocation9 + $0xf8] sm:$0xff]
    %v355 = vld [vmem:[#allocation9 + $0x100] sm:$0xff]
    %v356 = vld [vmem:[#allocation9 + $0x108] sm:$0xff]
    %v357 = vld [vmem:[#allocation9 + $0x110] sm:$0xff]
    %v358 = vld [vmem:[#allocation9 + $0x118] sm:$0xff]
    %v359 = vld [vmem:[#allocation9 + $0x120] sm:$0xff]
    %v360 = vld [vmem:[#allocation9 + $0x128] sm:$0xff]
    %v361 = vld [vmem:[#allocation9 + $0x130] sm:$0xff]
    %v362 = vld [vmem:[#allocation9 + $0x138] sm:$0xff]
    %v363 = vld [vmem:[#allocation9 + $0x140] sm:$0xff]
    %v364 = vld [vmem:[#allocation9 + $0x148] sm:$0xff]
    %v365 = vld [vmem:[#allocation9 + $0x150] sm:$0xff]
    %v366 = vld [vmem:[#allocation9 + $0x158] sm:$0xff]
    %v367 = vld [vmem:[#allocation9 + $0x160] sm:$0xff]
    %v368 = vld [vmem:[#allocation9 + $0x168] sm:$0xff]
    %v369 = vld [vmem:[#allocation9 + $0x170] sm:$0xff]
    %v370 = vld [vmem:[#allocation9 + $0x178] sm:$0xff]
    %v371 = vld [vmem:[#allocation9 + $0x180] sm:$0xff]
    %v372 = vld [vmem:[#allocation9 + $0x188] sm:$0xff]
    %v373 = vld [vmem:[#allocation9 + $0x190] sm:$0xff]
    %v374 = vld [vmem:[#allocation9 + $0x198] sm:$0xff]
    %v375 = vld [vmem:[#allocation9 + $0x1a0] sm:$0xff]
    %v376 = vld [vmem:[#allocation9 + $0x1a8] sm:$0xff]
    %v377 = vld [vmem:[#allocation9 + $0x1b0] sm:$0xff]
    %v378 = vld [vmem:[#allocation9 + $0x1b8] sm:$0xff]
    %v379 = vld [vmem:[#allocation9 + $0x1c0] sm:$0xff]
    %v380 = vld [vmem:[#allocation9 + $0x1c8] sm:$0xff]
    %v381 = vld [vmem:[#allocation9 + $0x1d0] sm:$0xff]
    %v382 = vld [vmem:[#allocation9 + $0x1d8] sm:$0xff]
    %v383 = vld [vmem:[#allocation9 + $0x1e0] sm:$0xff]
    %v384 = vld [vmem:[#allocation9 + $0x1e8] sm:$0xff]
    %v385 = vld [vmem:[#allocation9 + $0x1f0] sm:$0xff]
    %v386 = vld [vmem:[#allocation9 + $0x1f8] sm:$0xff]
    %v387 = vld [vmem:[#allocation9 + $0x200] sm:$0xff]
    %v388 = vld [vmem:[#allocation9 + $0x208] sm:$0xff]
    %v389 = vld [vmem:[#allocation9 + $0x210] sm:$0xff]
    %v390 = vld [vmem:[#allocation9 + $0x218] sm:$0xff]
    %v391 = vld [vmem:[#allocation9 + $0x220] sm:$0xff]
    %v392 = vld [vmem:[#allocation9 + $0x228] sm:$0xff]
    %v393 = vld [vmem:[#allocation9 + $0x230] sm:$0xff]
    %v394 = vld [vmem:[#allocation9 + $0x238] sm:$0xff]
    %v395 = vld [vmem:[#allocation9 + $0x240] sm:$0xff]
    %v396 = vld [vmem:[#allocation9 + $0x248] sm:$0xff]
    %v397 = vld [vmem:[#allocation9 + $0x250] sm:$0xff]
    %v398 = vld [vmem:[#allocation9 + $0x258] sm:$0xff]
    %v399 = vld [vmem:[#allocation9 + $0x260] sm:$0xff]
    %v400 = vld [vmem:[#allocation9 + $0x268] sm:$0xff]
    %v401 = vld [vmem:[#allocation9 + $0x270] sm:$0xff]
    %v402 = vld [vmem:[#allocation9 + $0x278] sm:$0xff]
    %v403 = vld [vmem:[#allocation9 + $0x280] sm:$0xff]
    %v404 = vld [vmem:[#allocation9 + $0x288] sm:$0xff]
    %v405 = vld [vmem:[#allocation9 + $0x290] sm:$0xff]
    %v406 = vld [vmem:[#allocation9 + $0x298] sm:$0xff]
    %v407 = vld [vmem:[#allocation9 + $0x2a0] sm:$0xff]
    %v408 = vld [vmem:[#allocation9 + $0x2a8] sm:$0xff]
    %v409 = vld [vmem:[#allocation9 + $0x2b0] sm:$0xff]
    %v410 = vld [vmem:[#allocation9 + $0x2b8] sm:$0xff]
    %v411 = vld [vmem:[#allocation9 + $0x2c0] sm:$0xff]
    %v412 = vld [vmem:[#allocation9 + $0x2c8] sm:$0xff]
    %v413 = vld [vmem:[#allocation9 + $0x2d0] sm:$0xff]
    %v414 = vld [vmem:[#allocation9 + $0x2d8] sm:$0xff]
    %v415 = vld [vmem:[#allocation9 + $0x2e0] sm:$0xff]
    %v416 = vld [vmem:[#allocation9 + $0x2e8] sm:$0xff]
    %v417 = vld [vmem:[#allocation9 + $0x2f0] sm:$0xff]
    %v418 = vld [vmem:[#allocation9 + $0x2f8] sm:$0xff]
    %v419 = vld [vmem:[#allocation9 + $0x300] sm:$0xff]
    %v420 = vld [vmem:[#allocation9 + $0x308] sm:$0xff]
    %v421 = vld [vmem:[#allocation9 + $0x310] sm:$0xff]
    %v422 = vld [vmem:[#allocation9 + $0x318] sm:$0xff]
    %v423 = vld [vmem:[#allocation9 + $0x320] sm:$0xff]
    %v424 = vld [vmem:[#allocation9 + $0x328] sm:$0xff]
    %v425 = vld [vmem:[#allocation9 + $0x330] sm:$0xff]
    %v426 = vld [vmem:[#allocation9 + $0x338] sm:$0xff]
    %v427 = vld [vmem:[#allocation9 + $0x340] sm:$0xff]
    %v428 = vld [vmem:[#allocation9 + $0x348] sm:$0xff]
    %v429 = vld [vmem:[#allocation9 + $0x350] sm:$0xff]
    %v430 = vld [vmem:[#allocation9 + $0x358] sm:$0xff]
    %v431 = vld [vmem:[#allocation9 + $0x360] sm:$0xff]
    %v432 = vld [vmem:[#allocation9 + $0x368] sm:$0xff]
    %v433 = vld [vmem:[#allocation9 + $0x370] sm:$0xff]
    %v434 = vld [vmem:[#allocation9 + $0x378] sm:$0xff]
    %v435 = vld [vmem:[#allocation9 + $0x380] sm:$0xff]
    %v436 = vld [vmem:[#allocation9 + $0x388] sm:$0xff]
    %v437 = vld [vmem:[#allocation9 + $0x390] sm:$0xff]
    %v438 = vld [vmem:[#allocation9 + $0x398] sm:$0xff]
    %v439 = vld [vmem:[#allocation9 + $0x3a0] sm:$0xff]
    %v440 = vld [vmem:[#allocation9 + $0x3a8] sm:$0xff]
    %v441 = vld [vmem:[#allocation9 + $0x3b0] sm:$0xff]
    %v442 = vld [vmem:[#allocation9 + $0x3b8] sm:$0xff]
    %v443 = vld [vmem:[#allocation9 + $0x3c0] sm:$0xff]
    %v444 = vld [vmem:[#allocation9 + $0x3c8] sm:$0xff]
    %v445 = vld [vmem:[#allocation9 + $0x3d0] sm:$0xff]
    %v446 = vld [vmem:[#allocation9 + $0x3d8] sm:$0xff]
    %v447 = vld [vmem:[#allocation9 + $0x3e0] sm:$0xff]
    %v448 = vld [vmem:[#allocation9 + $0x3e8] sm:$0xff]
    %v449 = vld [vmem:[#allocation9 + $0x3f0] sm:$0xff]
    %v450 = vld [vmem:[#allocation9 + $0x3f8] sm:$0xff]
    %451 = vmatpush.msra.mxu0 %v383
    %452 = vmatpush.msra.mxu0 %v379
    %453 = vmatpush.msra.mxu0 %v375
    %454 = vmatpush.msra.mxu0 %v371
    %455 = vmatpush.msra.mxu0 %v367
    %456 = vmatpush.msra.mxu0 %v363
    %457 = vmatpush.msra.mxu0 %v359
    %458 = vmatpush.msra.mxu0 %v355
    %459 = vmatpush.msra.mxu0 %v351
    %460 = vmatpush.msra.mxu0 %v347
    %461 = vmatpush.msra.mxu0 %v343
    %462 = vmatpush.msra.mxu0 %v339
    %463 = vmatpush.msra.mxu0 %v335
    %464 = vmatpush.msra.mxu0 %v331
    %465 = vmatpush.msra.mxu0 %v327
    %466 = vmatpush.msra.mxu0 %v323
    %467 = vmatmul.f32.gmra.mxu0 %v321
    %v468 = vpop.f32.mrf.mxu0
    %v469 = vadd.f32 0.0, %v468
    %470 = vmatmul.f32.gmra.mxu0 %v322
    %v471 = vpop.f32.mrf.mxu0
    %v472 = vadd.f32 0.0, %v471
    %473 = vdwg.mxu0
    %474 = vmatpush.msra.mxu0 %v447
    %475 = vmatpush.msra.mxu0 %v443
    %476 = vmatpush.msra.mxu0 %v439
    %477 = vmatpush.msra.mxu0 %v435
    %478 = vmatpush.msra.mxu0 %v431
    %479 = vmatpush.msra.mxu0 %v427
    %480 = vmatpush.msra.mxu0 %v423
    %481 = vmatpush.msra.mxu0 %v419
    %482 = vmatpush.msra.mxu0 %v415
    %483 = vmatpush.msra.mxu0 %v411
    %484 = vmatpush.msra.mxu0 %v407
    %485 = vmatpush.msra.mxu0 %v403
    %486 = vmatpush.msra.mxu0 %v399
    %487 = vmatpush.msra.mxu0 %v395
    %488 = vmatpush.msra.mxu0 %v391
    %489 = vmatpush.msra.mxu0 %v387
    %490 = vmatmul.f32.gmra.mxu0 %v148
    %v491 = vpop.f32.mrf.mxu0
    %v492 = vadd.f32 %v469, %v491
    %493 = vmatmul.f32.gmra.mxu0 %v149
    %v494 = vpop.f32.mrf.mxu0
    %v495 = vadd.f32 %v472, %v494
    %496 = vdwg.mxu0
    %497 = vmatpush.msra.mxu0 %v384
    %498 = vmatpush.msra.mxu0 %v380
    %499 = vmatpush.msra.mxu0 %v376
    %500 = vmatpush.msra.mxu0 %v372
    %501 = vmatpush.msra.mxu0 %v368
    %502 = vmatpush.msra.mxu0 %v364
    %503 = vmatpush.msra.mxu0 %v360
    %504 = vmatpush.msra.mxu0 %v356
    %505 = vmatpush.msra.mxu0 %v352
    %506 = vmatpush.msra.mxu0 %v348
    %507 = vmatpush.msra.mxu0 %v344
    %508 = vmatpush.msra.mxu0 %v340
    %509 = vmatpush.msra.mxu0 %v336
    %510 = vmatpush.msra.mxu0 %v332
    %511 = vmatpush.msra.mxu0 %v328
    %512 = vmatpush.msra.mxu0 %v324
    %513 = vmatmul.f32.gmra.mxu0 %v321
    %v514 = vpop.f32.mrf.mxu0
    %v515 = vadd.f32 0.0, %v514
    %516 = vmatmul.f32.gmra.mxu0 %v322
    %v517 = vpop.f32.mrf.mxu0
    %v518 = vadd.f32 0.0, %v517
    %519 = vdwg.mxu0
    %520 = vmatpush.msra.mxu0 %v448
    %521 = vmatpush.msra.mxu0 %v444
    %522 = vmatpush.msra.mxu0 %v440
    %523 = vmatpush.msra.mxu0 %v436
    %524 = vmatpush.msra.mxu0 %v432
    %525 = vmatpush.msra.mxu0 %v428
    %526 = vmatpush.msra.mxu0 %v424
    %527 = vmatpush.msra.mxu0 %v420
    %528 = vmatpush.msra.mxu0 %v416
    %529 = vmatpush.msra.mxu0 %v412
    %530 = vmatpush.msra.mxu0 %v408
    %531 = vmatpush.msra.mxu0 %v404
    %532 = vmatpush.msra.mxu0 %v400
    %533 = vmatpush.msra.mxu0 %v396
    %534 = vmatpush.msra.mxu0 %v392
    %535 = vmatpush.msra.mxu0 %v388
    %536 = vmatmul.f32.gmra.mxu0 %v148
    %v537 = vpop.f32.mrf.mxu0
    %v538 = vadd.f32 %v515, %v537
    %539 = vmatmul.f32.gmra.mxu0 %v149
    %v540 = vpop.f32.mrf.mxu0
    %v541 = vadd.f32 %v518, %v540
    %542 = vdwg.mxu0
    %543 = vmatpush.msra.mxu0 %v385
    %544 = vmatpush.msra.mxu0 %v381
    %545 = vmatpush.msra.mxu0 %v377
    %546 = vmatpush.msra.mxu0 %v373
    %547 = vmatpush.msra.mxu0 %v369
    %548 = vmatpush.msra.mxu0 %v365
    %549 = vmatpush.msra.mxu0 %v361
    %550 = vmatpush.msra.mxu0 %v357
    %551 = vmatpush.msra.mxu0 %v353
    %552 = vmatpush.msra.mxu0 %v349
    %553 = vmatpush.msra.mxu0 %v345
    %554 = vmatpush.msra.mxu0 %v341
    %555 = vmatpush.msra.mxu0 %v337
    %556 = vmatpush.msra.mxu0 %v333
    %557 = vmatpush.msra.mxu0 %v329
    %558 = vmatpush.msra.mxu0 %v325
    %559 = vmatmul.f32.gmra.mxu0 %v321
    %v560 = vpop.f32.mrf.mxu0
    %v561 = vadd.f32 0.0, %v560
    %562 = vmatmul.f32.gmra.mxu0 %v322
    %v563 = vpop.f32.mrf.mxu0
    %v564 = vadd.f32 0.0, %v563
    %565 = vdwg.mxu0
    %566 = vmatpush.msra.mxu0 %v449
    %567 = vmatpush.msra.mxu0 %v445
    %568 = vmatpush.msra.mxu0 %v441
    %569 = vmatpush.msra.mxu0 %v437
    %570 = vmatpush.msra.mxu0 %v433
    %571 = vmatpush.msra.mxu0 %v429
    %572 = vmatpush.msra.mxu0 %v425
    %573 = vmatpush.msra.mxu0 %v421
    %574 = vmatpush.msra.mxu0 %v417
    %575 = vmatpush.msra.mxu0 %v413
    %576 = vmatpush.msra.mxu0 %v409
    %577 = vmatpush.msra.mxu0 %v405
    %578 = vmatpush.msra.mxu0 %v401
    %579 = vmatpush.msra.mxu0 %v397
    %580 = vmatpush.msra.mxu0 %v393
    %581 = vmatpush.msra.mxu0 %v389
    %582 = vmatmul.f32.gmra.mxu0 %v148
    %v583 = vpop.f32.mrf.mxu0
    %v584 = vadd.f32 %v561, %v583
    %585 = vmatmul.f32.gmra.mxu0 %v149
    %v586 = vpop.f32.mrf.mxu0
    %v587 = vadd.f32 %v564, %v586
    %588 = vdwg.mxu0
    %589 = vmatpush.msra.mxu0 %v386
    %590 = vmatpush.msra.mxu0 %v382
    %591 = vmatpush.msra.mxu0 %v378
    %592 = vmatpush.msra.mxu0 %v374
    %593 = vmatpush.msra.mxu0 %v370
    %594 = vmatpush.msra.mxu0 %v366
    %595 = vmatpush.msra.mxu0 %v362
    %596 = vmatpush.msra.mxu0 %v358
    %597 = vmatpush.msra.mxu0 %v354
    %598 = vmatpush.msra.mxu0 %v350
    %599 = vmatpush.msra.mxu0 %v346
    %600 = vmatpush.msra.mxu0 %v342
    %601 = vmatpush.msra.mxu0 %v338
    %602 = vmatpush.msra.mxu0 %v334
    %603 = vmatpush.msra.mxu0 %v330
    %604 = vmatpush.msra.mxu0 %v326
    %605 = vmatmul.f32.gmra.mxu0 %v321
    %v606 = vpop.f32.mrf.mxu0
    %v607 = vadd.f32 0.0, %v606
    %608 = vmatmul.f32.gmra.mxu0 %v322
    %v609 = vpop.f32.mrf.mxu0
    %v610 = vadd.f32 0.0, %v609
    %611 = vdwg.mxu0
    %612 = vmatpush.msra.mxu0 %v450
    %613 = vmatpush.msra.mxu0 %v446
    %614 = vmatpush.msra.mxu0 %v442
    %615 = vmatpush.msra.mxu0 %v438
    %616 = vmatpush.msra.mxu0 %v434
    %617 = vmatpush.msra.mxu0 %v430
    %618 = vmatpush.msra.mxu0 %v426
    %619 = vmatpush.msra.mxu0 %v422
    %620 = vmatpush.msra.mxu0 %v418
    %621 = vmatpush.msra.mxu0 %v414
    %622 = vmatpush.msra.mxu0 %v410
    %623 = vmatpush.msra.mxu0 %v406
    %624 = vmatpush.msra.mxu0 %v402
    %625 = vmatpush.msra.mxu0 %v398
    %626 = vmatpush.msra.mxu0 %v394
    %627 = vmatpush.msra.mxu0 %v390
    %628 = vmatmul.f32.gmra.mxu0 %v148
    %v629 = vpop.f32.mrf.mxu0
    %v630 = vadd.f32 %v607, %v629
    %631 = vmatmul.f32.gmra.mxu0 %v149
    %v632 = vpop.f32.mrf.mxu0
    %v633 = vadd.f32 %v610, %v632
    %634 = vdwg.mxu0
    %v635 = vxor.u32 %v492, 2147483648
    %v636 = vxor.u32 %v495, 2147483648
    %v637 = vmul.f32 %v635, 1.442695
    %v638 = vpow.pop %v637
    %v639 = vmul.f32 %v636, 1.442695
    %v640 = vpow.pop %v639
    %v641 = vadd.f32 %v638, 1.0
    %v642 = vadd.f32 %v640, 1.0
    %v643 = vrcp.pop %v641
    %v644 = vmul.f32 %v641, %v643
    %v645 = vsub.f32 1.0, %v644
    %v646 = vmul.f32 %v643, %v645
    %v647 = vadd.f32 %v643, %v646
    %vm648 = vweird.f32 %v641
    %vm649 = vweird.f32 %v643
    %vm650 = vmor %vm648, %vm649
    %v651 = vsel %vm650, %v643, %v647
    %v652 = vand.u32 2147483647, %v641
    %vm653 = vcmp.eq.f32.partialorder %v652, 8.507059e+37
    %v654 = vand.u32 %v641, 2147483648
    %v655 = vor.u32 1.1754944e-38, %v654
    %v656 = vsel %vm653, %v655, %v651
    %v657 = vmul.f32 1.0, %v656
    %v658 = vrcp.pop %v642
    %v659 = vmul.f32 %v642, %v658
    %v660 = vsub.f32 1.0, %v659
    %v661 = vmul.f32 %v658, %v660
    %v662 = vadd.f32 %v658, %v661
    %vm663 = vweird.f32 %v642
    %vm664 = vweird.f32 %v658
    %vm665 = vmor %vm663, %vm664
    %v666 = vsel %vm665, %v658, %v662
    %v667 = vand.u32 2147483647, %v642
    %vm668 = vcmp.eq.f32.partialorder %v667, 8.507059e+37
    %v669 = vand.u32 %v642, 2147483648
    %v670 = vor.u32 1.1754944e-38, %v669
    %v671 = vsel %vm668, %v670, %v666
    %v672 = vmul.f32 1.0, %v671
    %v673 = vxor.u32 %v538, 2147483648
    %v674 = vxor.u32 %v541, 2147483648
    %v675 = vmul.f32 %v673, 1.442695
    %v676 = vpow.pop %v675
    %v677 = vmul.f32 %v674, 1.442695
    %v678 = vpow.pop %v677
    %v679 = vadd.f32 %v676, 1.0
    %v680 = vadd.f32 %v678, 1.0
    %v681 = vrcp.pop %v679
    %v682 = vmul.f32 %v679, %v681
    %v683 = vsub.f32 1.0, %v682
    %v684 = vmul.f32 %v681, %v683
    %v685 = vadd.f32 %v681, %v684
    %vm686 = vweird.f32 %v679
    %vm687 = vweird.f32 %v681
    %vm688 = vmor %vm686, %vm687
    %v689 = vsel %vm688, %v681, %v685
    %v690 = vand.u32 2147483647, %v679
    %vm691 = vcmp.eq.f32.partialorder %v690, 8.507059e+37
    %v692 = vand.u32 %v679, 2147483648
    %v693 = vor.u32 1.1754944e-38, %v692
    %v694 = vsel %vm691, %v693, %v689
    %v695 = vmul.f32 1.0, %v694
    %v696 = vrcp.pop %v680
    %v697 = vmul.f32 %v680, %v696
    %v698 = vsub.f32 1.0, %v697
    %v699 = vmul.f32 %v696, %v698
    %v700 = vadd.f32 %v696, %v699
    %vm701 = vweird.f32 %v680
    %vm702 = vweird.f32 %v696
    %vm703 = vmor %vm701, %vm702
    %v704 = vsel %vm703, %v696, %v700
    %v705 = vand.u32 2147483647, %v680
    %vm706 = vcmp.eq.f32.partialorder %v705, 8.507059e+37
    %v707 = vand.u32 %v680, 2147483648
    %v708 = vor.u32 1.1754944e-38, %v707
    %v709 = vsel %vm706, %v708, %v704
    %v710 = vmul.f32 1.0, %v709
    %v711 = vmul.f32 %v657, %v630
    %v712 = vmul.f32 %v672, %v633
    %v713 = vadd.f32 %v584, %v711
    %v714 = vadd.f32 %v587, %v712
    %v715 = vtanh.pop %v713
    %v716 = vtanh.pop %v714
    %v717 = vsub.f32 %v148, %v715
    %v718 = vsub.f32 %v149, %v716
    %v719 = vmul.f32 %v695, %v717
    %v720 = vmul.f32 %v710, %v718
    %v721 = vadd.f32 %v715, %v719
    %v722 = vadd.f32 %v716, %v720
    %v723 = vsub.s32 %v142, 1
    %v724 = vsub.s32 %v143, 1
    %v725 = vstv %s144
    %vm726 = vcmp.eq.s32.totalorder %v723, %v725
    %vm727 = vcmp.eq.s32.totalorder %v724, %v725
    %v728 = vsel %vm726, 1, 0
    %v729 = vsel %vm727, 1, 0
    %730 = vset.pattern.permute.xlu0 0
    %731 = vperm.xlu0 %730, %v728
    %v732 = vpop.permute.xlu0 %731
    %733 = vset.pattern.permute.xlu0 0
    %734 = vperm.xlu0 %733, %v729
    %v735 = vpop.permute.xlu0 %734
    %vm736 = vcmp.eq.s32.totalorder %v732, 1
    %vm737 = vcmp.eq.s32.totalorder %v735, 1
    %v738 = vsel %vm736, %v721, %v150
    %v739 = vsel %vm737, %v722, %v151
    %s740 = scalar_lea.vmem [#allocation4], 24
    %v741 = vld [vmem:[%s740] sm:$0xff]
    %v742 = vld [vmem:[%s740 + $0x8] sm:$0xf]
    %v743 = vld [vmem:[%s740 + $0xc] sm:$0xff]
    %v744 = vld [vmem:[%s740 + $0x14] sm:$0xf]
    %v745 = vunpack.c.l.bf16 %v741
    %v746 = vunpack.c.h.bf16 %v741
    %v747 = vunpack.c.l.bf16 %v742
    %v748 = vunpack.c.l.bf16 %v743
    %v749 = vunpack.c.h.bf16 %v743
    %v750 = vunpack.c.l.bf16 %v744
    %751 = vmatpush.msra.mxu0 %v139
    %752 = vmatpush.msra.mxu0 %v136
    %753 = vmatpush.msra.mxu0 %v133
    %754 = vmatpush.msra.mxu0 %v130
    %755 = vmatpush.msra.mxu0 %v127
    %756 = vmatpush.msra.mxu0 %v124
    %757 = vmatpush.msra.mxu0 %v121
    %758 = vmatpush.msra.mxu0 %v118
    %759 = vmatpush.msra.mxu0 %v115
    %760 = vmatpush.msra.mxu0 %v112
    %761 = vmatpush.msra.mxu0 %v109
    %762 = vmatpush.msra.mxu0 %v106
    %763 = vmatpush.msra.mxu0 %v103
    %764 = vmatpush.msra.mxu0 %v100
    %765 = vmatpush.msra.mxu0 %v97
    %766 = vmatpush.msra.mxu0 %v94
    %767 = vmatmul.f32.gmra.mxu0 %v321
    %v768 = vpop.f32.mrf.mxu0
    %v769 = vadd.f32 0.0, %v768
    %770 = vmatmul.f32.gmra.mxu0 %v322
    %v771 = vpop.f32.mrf.mxu0
    %v772 = vadd.f32 0.0, %v771
    %773 = vdwg.mxu0
    %774 = vmatpush.msra.mxu0 %v140
    %775 = vmatpush.msra.mxu0 %v137
    %776 = vmatpush.msra.mxu0 %v134
    %777 = vmatpush.msra.mxu0 %v131
    %778 = vmatpush.msra.mxu0 %v128
    %779 = vmatpush.msra.mxu0 %v125
    %780 = vmatpush.msra.mxu0 %v122
    %781 = vmatpush.msra.mxu0 %v119
    %782 = vmatpush.msra.mxu0 %v116
    %783 = vmatpush.msra.mxu0 %v113
    %784 = vmatpush.msra.mxu0 %v110
    %785 = vmatpush.msra.mxu0 %v107
    %786 = vmatpush.msra.mxu0 %v104
    %787 = vmatpush.msra.mxu0 %v101
    %788 = vmatpush.msra.mxu0 %v98
    %789 = vmatpush.msra.mxu0 %v95
    %790 = vmatmul.f32.gmra.mxu0 %v321
    %v791 = vpop.f32.mrf.mxu0
    %v792 = vadd.f32 0.0, %v791
    %793 = vmatmul.f32.gmra.mxu0 %v322
    %v794 = vpop.f32.mrf.mxu0
    %v795 = vadd.f32 0.0, %v794
    %796 = vdwg.mxu0
    %797 = vmatpush.msra.mxu0 %v141
    %798 = vmatpush.msra.mxu0 %v138
    %799 = vmatpush.msra.mxu0 %v135
    %800 = vmatpush.msra.mxu0 %v132
    %801 = vmatpush.msra.mxu0 %v129
    %802 = vmatpush.msra.mxu0 %v126
    %803 = vmatpush.msra.mxu0 %v123
    %804 = vmatpush.msra.mxu0 %v120
    %805 = vmatpush.msra.mxu0 %v117
    %806 = vmatpush.msra.mxu0 %v114
    %807 = vmatpush.msra.mxu0 %v111
    %808 = vmatpush.msra.mxu0 %v108
    %809 = vmatpush.msra.mxu0 %v105
    %810 = vmatpush.msra.mxu0 %v102
    %811 = vmatpush.msra.mxu0 %v99
    %812 = vmatpush.msra.mxu0 %v96
    %813 = vmatmul.f32.gmra.mxu0 %v321
    %v814 = vpop.f32.mrf.mxu0
    %v815 = vadd.f32 0.0, %v814
    %816 = vmatmul.f32.gmra.mxu0 %v322
    %v817 = vpop.f32.mrf.mxu0
    %v818 = vadd.f32 0.0, %v817
    %819 = vdwg.mxu0
    %v820 = vadd.f32 %v745, %v769
    %v821 = vadd.f32 %v748, %v772
    %v822 = vxor.u32 %v820, 2147483648
    %v823 = vxor.u32 %v821, 2147483648
    %v824 = vmul.f32 %v822, 1.442695
    %v825 = vpow.pop %v824
    %v826 = vmul.f32 %v823, 1.442695
    %v827 = vpow.pop %v826
    %v828 = vadd.f32 %v825, 1.0
    %v829 = vadd.f32 %v827, 1.0
    %v830 = vrcp.pop %v828
    %v831 = vmul.f32 %v828, %v830
    %v832 = vsub.f32 1.0, %v831
    %v833 = vmul.f32 %v830, %v832
    %v834 = vadd.f32 %v830, %v833
    %vm835 = vweird.f32 %v828
    %vm836 = vweird.f32 %v830
    %vm837 = vmor %vm835, %vm836
    %v838 = vsel %vm837, %v830, %v834
    %v839 = vand.u32 2147483647, %v828
    %vm840 = vcmp.eq.f32.partialorder %v839, 8.507059e+37
    %v841 = vand.u32 %v828, 2147483648
    %v842 = vor.u32 1.1754944e-38, %v841
    %v843 = vsel %vm840, %v842, %v838
    %v844 = vmul.f32 1.0, %v843
    %v845 = vrcp.pop %v829
    %v846 = vmul.f32 %v829, %v845
    %v847 = vsub.f32 1.0, %v846
    %v848 = vmul.f32 %v845, %v847
    %v849 = vadd.f32 %v845, %v848
    %vm850 = vweird.f32 %v829
    %vm851 = vweird.f32 %v845
    %vm852 = vmor %vm850, %vm851
    %v853 = vsel %vm852, %v845, %v849
    %v854 = vand.u32 2147483647, %v829
    %vm855 = vcmp.eq.f32.partialorder %v854, 8.507059e+37
    %v856 = vand.u32 %v829, 2147483648
    %v857 = vor.u32 1.1754944e-38, %v856
    %v858 = vsel %vm855, %v857, %v853
    %v859 = vmul.f32 1.0, %v858
    %v860 = vadd.f32 %v746, %v792
    %v861 = vadd.f32 %v749, %v795
    %v862 = vxor.u32 %v860, 2147483648
    %v863 = vxor.u32 %v861, 2147483648
    %v864 = vmul.f32 %v862, 1.442695
    %v865 = vpow.pop %v864
    %v866 = vmul.f32 %v863, 1.442695
    %v867 = vpow.pop %v866
    %v868 = vadd.f32 %v865, 1.0
    %v869 = vadd.f32 %v867, 1.0
    %v870 = vrcp.pop %v868
    %v871 = vmul.f32 %v868, %v870
    %v872 = vsub.f32 1.0, %v871
    %v873 = vmul.f32 %v870, %v872
    %v874 = vadd.f32 %v870, %v873
    %vm875 = vweird.f32 %v868
    %vm876 = vweird.f32 %v870
    %vm877 = vmor %vm875, %vm876
    %v878 = vsel %vm877, %v870, %v874
    %v879 = vand.u32 2147483647, %v868
    %vm880 = vcmp.eq.f32.partialorder %v879, 8.507059e+37
    %v881 = vand.u32 %v868, 2147483648
    %v882 = vor.u32 1.1754944e-38, %v881
    %v883 = vsel %vm880, %v882, %v878
    %v884 = vmul.f32 1.0, %v883
    %v885 = vrcp.pop %v869
    %v886 = vmul.f32 %v869, %v885
    %v887 = vsub.f32 1.0, %v886
    %v888 = vmul.f32 %v885, %v887
    %v889 = vadd.f32 %v885, %v888
    %vm890 = vweird.f32 %v869
    %vm891 = vweird.f32 %v885
    %vm892 = vmor %vm890, %vm891
    %v893 = vsel %vm892, %v885, %v889
    %v894 = vand.u32 2147483647, %v869
    %vm895 = vcmp.eq.f32.partialorder %v894, 8.507059e+37
    %v896 = vand.u32 %v869, 2147483648
    %v897 = vor.u32 1.1754944e-38, %v896
    %v898 = vsel %vm895, %v897, %v893
    %v899 = vmul.f32 1.0, %v898
    %v900 = vmul.f32 %v844, %v815
    %v901 = vmul.f32 %v859, %v818
    %v902 = vadd.f32 %v747, %v900
    %v903 = vadd.f32 %v750, %v901
    %v904 = vtanh.pop %v902
    %v905 = vtanh.pop %v903
    %v906 = vsub.f32 %v321, %v904
    %v907 = vsub.f32 %v322, %v905
    %v908 = vmul.f32 %v884, %v906
    %v909 = vmul.f32 %v899, %v907
    %v910 = vadd.f32 %v904, %v908
    %v911 = vadd.f32 %v905, %v909
    %912 = vmatpush.msra.mxu0 %v383
    %913 = vmatpush.msra.mxu0 %v379
    %914 = vmatpush.msra.mxu0 %v375
    %915 = vmatpush.msra.mxu0 %v371
    %916 = vmatpush.msra.mxu0 %v367
    %917 = vmatpush.msra.mxu0 %v363
    %918 = vmatpush.msra.mxu0 %v359
    %919 = vmatpush.msra.mxu0 %v355
    %920 = vmatpush.msra.mxu0 %v351
    %921 = vmatpush.msra.mxu0 %v347
    %922 = vmatpush.msra.mxu0 %v343
    %923 = vmatpush.msra.mxu0 %v339
    %924 = vmatpush.msra.mxu0 %v335
    %925 = vmatpush.msra.mxu0 %v331
    %926 = vmatpush.msra.mxu0 %v327
    %927 = vmatpush.msra.mxu0 %v323
    %928 = vmatmul.f32.gmra.mxu0 %v910
    %v929 = vpop.f32.mrf.mxu0
    %v930 = vadd.f32 0.0, %v929
    %931 = vmatmul.f32.gmra.mxu0 %v911
    %v932 = vpop.f32.mrf.mxu0
    %v933 = vadd.f32 0.0, %v932
    %934 = vdwg.mxu0
    %935 = vmatpush.msra.mxu0 %v447
    %936 = vmatpush.msra.mxu0 %v443
    %937 = vmatpush.msra.mxu0 %v439
    %938 = vmatpush.msra.mxu0 %v435
    %939 = vmatpush.msra.mxu0 %v431
    %940 = vmatpush.msra.mxu0 %v427
    %941 = vmatpush.msra.mxu0 %v423
    %942 = vmatpush.msra.mxu0 %v419
    %943 = vmatpush.msra.mxu0 %v415
    %944 = vmatpush.msra.mxu0 %v411
    %945 = vmatpush.msra.mxu0 %v407
    %946 = vmatpush.msra.mxu0 %v403
    %947 = vmatpush.msra.mxu0 %v399
    %948 = vmatpush.msra.mxu0 %v395
    %949 = vmatpush.msra.mxu0 %v391
    %950 = vmatpush.msra.mxu0 %v387
    %951 = vmatmul.f32.gmra.mxu0 %v721
    %v952 = vpop.f32.mrf.mxu0
    %v953 = vadd.f32 %v930, %v952
    %954 = vmatmul.f32.gmra.mxu0 %v722
    %v955 = vpop.f32.mrf.mxu0
    %v956 = vadd.f32 %v933, %v955
    %957 = vdwg.mxu0
    %958 = vmatpush.msra.mxu0 %v384
    %959 = vmatpush.msra.mxu0 %v380
    %960 = vmatpush.msra.mxu0 %v376
    %961 = vmatpush.msra.mxu0 %v372
    %962 = vmatpush.msra.mxu0 %v368
    %963 = vmatpush.msra.mxu0 %v364
    %964 = vmatpush.msra.mxu0 %v360
    %965 = vmatpush.msra.mxu0 %v356
    %966 = vmatpush.msra.mxu0 %v352
    %967 = vmatpush.msra.mxu0 %v348
    %968 = vmatpush.msra.mxu0 %v344
    %969 = vmatpush.msra.mxu0 %v340
    %970 = vmatpush.msra.mxu0 %v336
    %971 = vmatpush.msra.mxu0 %v332
    %972 = vmatpush.msra.mxu0 %v328
    %973 = vmatpush.msra.mxu0 %v324
    %974 = vmatmul.f32.gmra.mxu0 %v910
    %v975 = vpop.f32.mrf.mxu0
    %v976 = vadd.f32 0.0, %v975
    %977 = vmatmul.f32.gmra.mxu0 %v911
    %v978 = vpop.f32.mrf.mxu0
    %v979 = vadd.f32 0.0, %v978
    %980 = vdwg.mxu0
    %981 = vmatpush.msra.mxu0 %v448
    %982 = vmatpush.msra.mxu0 %v444
    %983 = vmatpush.msra.mxu0 %v440
    %984 = vmatpush.msra.mxu0 %v436
    %985 = vmatpush.msra.mxu0 %v432
    %986 = vmatpush.msra.mxu0 %v428
    %987 = vmatpush.msra.mxu0 %v424
    %988 = vmatpush.msra.mxu0 %v420
    %989 = vmatpush.msra.mxu0 %v416
    %990 = vmatpush.msra.mxu0 %v412
    %991 = vmatpush.msra.mxu0 %v408
    %992 = vmatpush.msra.mxu0 %v404
    %993 = vmatpush.msra.mxu0 %v400
    %994 = vmatpush.msra.mxu0 %v396
    %995 = vmatpush.msra.mxu0 %v392
    %996 = vmatpush.msra.mxu0 %v388
    %997 = vmatmul.f32.gmra.mxu0 %v721
    %v998 = vpop.f32.mrf.mxu0
    %v999 = vadd.f32 %v976, %v998
    %1000 = vmatmul.f32.gmra.mxu0 %v722
    %v1001 = vpop.f32.mrf.mxu0
    %v1002 = vadd.f32 %v979, %v1001
    %1003 = vdwg.mxu0
    %1004 = vmatpush.msra.mxu0 %v385
    %1005 = vmatpush.msra.mxu0 %v381
    %1006 = vmatpush.msra.mxu0 %v377
    %1007 = vmatpush.msra.mxu0 %v373
    %1008 = vmatpush.msra.mxu0 %v369
    %1009 = vmatpush.msra.mxu0 %v365
    %1010 = vmatpush.msra.mxu0 %v361
    %1011 = vmatpush.msra.mxu0 %v357
    %1012 = vmatpush.msra.mxu0 %v353
    %1013 = vmatpush.msra.mxu0 %v349
    %1014 = vmatpush.msra.mxu0 %v345
    %1015 = vmatpush.msra.mxu0 %v341
    %1016 = vmatpush.msra.mxu0 %v337
    %1017 = vmatpush.msra.mxu0 %v333
    %1018 = vmatpush.msra.mxu0 %v329
    %1019 = vmatpush.msra.mxu0 %v325
    %1020 = vmatmul.f32.gmra.mxu0 %v910
    %v1021 = vpop.f32.mrf.mxu0
    %v1022 = vadd.f32 0.0, %v1021
    %1023 = vmatmul.f32.gmra.mxu0 %v911
    %v1024 = vpop.f32.mrf.mxu0
    %v1025 = vadd.f32 0.0, %v1024
    %1026 = vdwg.mxu0
    %1027 = vmatpush.msra.mxu0 %v449
    %1028 = vmatpush.msra.mxu0 %v445
    %1029 = vmatpush.msra.mxu0 %v441
    %1030 = vmatpush.msra.mxu0 %v437
    %1031 = vmatpush.msra.mxu0 %v433
    %1032 = vmatpush.msra.mxu0 %v429
    %1033 = vmatpush.msra.mxu0 %v425
    %1034 = vmatpush.msra.mxu0 %v421
    %1035 = vmatpush.msra.mxu0 %v417
    %1036 = vmatpush.msra.mxu0 %v413
    %1037 = vmatpush.msra.mxu0 %v409
    %1038 = vmatpush.msra.mxu0 %v405
    %1039 = vmatpush.msra.mxu0 %v401
    %1040 = vmatpush.msra.mxu0 %v397
    %1041 = vmatpush.msra.mxu0 %v393
    %1042 = vmatpush.msra.mxu0 %v389
    %1043 = vmatmul.f32.gmra.mxu0 %v721
    %v1044 = vpop.f32.mrf.mxu0
    %v1045 = vadd.f32 %v1022, %v1044
    %1046 = vmatmul.f32.gmra.mxu0 %v722
    %v1047 = vpop.f32.mrf.mxu0
    %v1048 = vadd.f32 %v1025, %v1047
    %1049 = vdwg.mxu0
    %1050 = vmatpush.msra.mxu0 %v386
    %1051 = vmatpush.msra.mxu0 %v382
    %1052 = vmatpush.msra.mxu0 %v378
    %1053 = vmatpush.msra.mxu0 %v374
    %1054 = vmatpush.msra.mxu0 %v370
    %1055 = vmatpush.msra.mxu0 %v366
    %1056 = vmatpush.msra.mxu0 %v362
    %1057 = vmatpush.msra.mxu0 %v358
    %1058 = vmatpush.msra.mxu0 %v354
    %1059 = vmatpush.msra.mxu0 %v350
    %1060 = vmatpush.msra.mxu0 %v346
    %1061 = vmatpush.msra.mxu0 %v342
    %1062 = vmatpush.msra.mxu0 %v338
    %1063 = vmatpush.msra.mxu0 %v334
    %1064 = vmatpush.msra.mxu0 %v330
    %1065 = vmatpush.msra.mxu0 %v326
    %1066 = vmatmul.f32.gmra.mxu0 %v910
    %v1067 = vpop.f32.mrf.mxu0
    %v1068 = vadd.f32 0.0, %v1067
    %1069 = vmatmul.f32.gmra.mxu0 %v911
    %v1070 = vpop.f32.mrf.mxu0
    %v1071 = vadd.f32 0.0, %v1070
    %1072 = vdwg.mxu0
    %1073 = vmatpush.msra.mxu0 %v450
    %1074 = vmatpush.msra.mxu0 %v446
    %1075 = vmatpush.msra.mxu0 %v442
    %1076 = vmatpush.msra.mxu0 %v438
    %1077 = vmatpush.msra.mxu0 %v434
    %1078 = vmatpush.msra.mxu0 %v430
    %1079 = vmatpush.msra.mxu0 %v426
    %1080 = vmatpush.msra.mxu0 %v422
    %1081 = vmatpush.msra.mxu0 %v418
    %1082 = vmatpush.msra.mxu0 %v414
    %1083 = vmatpush.msra.mxu0 %v410
    %1084 = vmatpush.msra.mxu0 %v406
    %1085 = vmatpush.msra.mxu0 %v402
    %1086 = vmatpush.msra.mxu0 %v398
    %1087 = vmatpush.msra.mxu0 %v394
    %1088 = vmatpush.msra.mxu0 %v390
    %1089 = vmatmul.f32.gmra.mxu0 %v721
    %v1090 = vpop.f32.mrf.mxu0
    %v1091 = vadd.f32 %v1068, %v1090
    %1092 = vmatmul.f32.gmra.mxu0 %v722
    %v1093 = vpop.f32.mrf.mxu0
    %v1094 = vadd.f32 %v1071, %v1093
    %1095 = vdwg.mxu0
    %v1096 = vxor.u32 %v953, 2147483648
    %v1097 = vxor.u32 %v956, 2147483648
    %v1098 = vmul.f32 %v1096, 1.442695
    %v1099 = vpow.pop %v1098
    %v1100 = vmul.f32 %v1097, 1.442695
    %v1101 = vpow.pop %v1100
    %v1102 = vadd.f32 %v1099, 1.0
    %v1103 = vadd.f32 %v1101, 1.0
    %v1104 = vrcp.pop %v1102
    %v1105 = vmul.f32 %v1102, %v1104
    %v1106 = vsub.f32 1.0, %v1105
    %v1107 = vmul.f32 %v1104, %v1106
    %v1108 = vadd.f32 %v1104, %v1107
    %vm1109 = vweird.f32 %v1102
    %vm1110 = vweird.f32 %v1104
    %vm1111 = vmor %vm1109, %vm1110
    %v1112 = vsel %vm1111, %v1104, %v1108
    %v1113 = vand.u32 2147483647, %v1102
    %vm1114 = vcmp.eq.f32.partialorder %v1113, 8.507059e+37
    %v1115 = vand.u32 %v1102, 2147483648
    %v1116 = vor.u32 1.1754944e-38, %v1115
    %v1117 = vsel %vm1114, %v1116, %v1112
    %v1118 = vmul.f32 1.0, %v1117
    %v1119 = vrcp.pop %v1103
    %v1120 = vmul.f32 %v1103, %v1119
    %v1121 = vsub.f32 1.0, %v1120
    %v1122 = vmul.f32 %v1119, %v1121
    %v1123 = vadd.f32 %v1119, %v1122
    %vm1124 = vweird.f32 %v1103
    %vm1125 = vweird.f32 %v1119
    %vm1126 = vmor %vm1124, %vm1125
    %v1127 = vsel %vm1126, %v1119, %v1123
    %v1128 = vand.u32 2147483647, %v1103
    %vm1129 = vcmp.eq.f32.partialorder %v1128, 8.507059e+37
    %v1130 = vand.u32 %v1103, 2147483648
    %v1131 = vor.u32 1.1754944e-38, %v1130
    %v1132 = vsel %vm1129, %v1131, %v1127
    %v1133 = vmul.f32 1.0, %v1132
    %v1134 = vxor.u32 %v999, 2147483648
    %v1135 = vxor.u32 %v1002, 2147483648
    %v1136 = vmul.f32 %v1134, 1.442695
    %v1137 = vpow.pop %v1136
    %v1138 = vmul.f32 %v1135, 1.442695
    %v1139 = vpow.pop %v1138
    %v1140 = vadd.f32 %v1137, 1.0
    %v1141 = vadd.f32 %v1139, 1.0
    %v1142 = vrcp.pop %v1140
    %v1143 = vmul.f32 %v1140, %v1142
    %v1144 = vsub.f32 1.0, %v1143
    %v1145 = vmul.f32 %v1142, %v1144
    %v1146 = vadd.f32 %v1142, %v1145
    %vm1147 = vweird.f32 %v1140
    %vm1148 = vweird.f32 %v1142
    %vm1149 = vmor %vm1147, %vm1148
    %v1150 = vsel %vm1149, %v1142, %v1146
    %v1151 = vand.u32 2147483647, %v1140
    %vm1152 = vcmp.eq.f32.partialorder %v1151, 8.507059e+37
    %v1153 = vand.u32 %v1140, 2147483648
    %v1154 = vor.u32 1.1754944e-38, %v1153
    %v1155 = vsel %vm1152, %v1154, %v1150
    %v1156 = vmul.f32 1.0, %v1155
    %v1157 = vrcp.pop %v1141
    %v1158 = vmul.f32 %v1141, %v1157
    %v1159 = vsub.f32 1.0, %v1158
    %v1160 = vmul.f32 %v1157, %v1159
    %v1161 = vadd.f32 %v1157, %v1160
    %vm1162 = vweird.f32 %v1141
    %vm1163 = vweird.f32 %v1157
    %vm1164 = vmor %vm1162, %vm1163
    %v1165 = vsel %vm1164, %v1157, %v1161
    %v1166 = vand.u32 2147483647, %v1141
    %vm1167 = vcmp.eq.f32.partialorder %v1166, 8.507059e+37
    %v1168 = vand.u32 %v1141, 2147483648
    %v1169 = vor.u32 1.1754944e-38, %v1168
    %v1170 = vsel %vm1167, %v1169, %v1165
    %v1171 = vmul.f32 1.0, %v1170
    %v1172 = vmul.f32 %v1118, %v1091
    %v1173 = vmul.f32 %v1133, %v1094
    %v1174 = vadd.f32 %v1045, %v1172
    %v1175 = vadd.f32 %v1048, %v1173
    %v1176 = vtanh.pop %v1174
    %v1177 = vtanh.pop %v1175
    %v1178 = vsub.f32 %v721, %v1176
    %v1179 = vsub.f32 %v722, %v1177
    %v1180 = vmul.f32 %v1156, %v1178
    %v1181 = vmul.f32 %v1171, %v1179
    %v1182 = vadd.f32 %v1176, %v1180
    %v1183 = vadd.f32 %v1177, %v1181
    %s1184 = sadd.s32 %s144, 1
    %v1185 = vstv %s1184
    %vm1186 = vcmp.eq.s32.totalorder %v723, %v1185
    %vm1187 = vcmp.eq.s32.totalorder %v724, %v1185
    %v1188 = vsel %vm1186, 1, 0
    %v1189 = vsel %vm1187, 1, 0
    %1190 = vset.pattern.permute.xlu0 0
    %1191 = vperm.xlu0 %1190, %v1188
    %v1192 = vpop.permute.xlu0 %1191
    %1193 = vset.pattern.permute.xlu0 0
    %1194 = vperm.xlu0 %1193, %v1189
    %v1195 = vpop.permute.xlu0 %1194
    %vm1196 = vcmp.eq.s32.totalorder %v1192, 1
    %vm1197 = vcmp.eq.s32.totalorder %v1195, 1
    %v1198 = vsel %vm1196, %v1182, %v738
    %v1199 = vsel %vm1197, %v1183, %v739
    %s1200 = scalar_lea.vmem [#allocation4], 48
    %v1201 = vld [vmem:[%s1200] sm:$0xff]
    %v1202 = vld [vmem:[%s1200 + $0x8] sm:$0xf]
    %v1203 = vld [vmem:[%s1200 + $0xc] sm:$0xff]
    %v1204 = vld [vmem:[%s1200 + $0x14] sm:$0xf]
    %v1205 = vunpack.c.l.bf16 %v1201
    %v1206 = vunpack.c.h.bf16 %v1201
    %v1207 = vunpack.c.l.bf16 %v1202
    %v1208 = vunpack.c.l.bf16 %v1203
    %v1209 = vunpack.c.h.bf16 %v1203
    %v1210 = vunpack.c.l.bf16 %v1204
    %1211 = vmatpush.msra.mxu0 %v139
    %1212 = vmatpush.msra.mxu0 %v136
    %1213 = vmatpush.msra.mxu0 %v133
    %1214 = vmatpush.msra.mxu0 %v130
    %1215 = vmatpush.msra.mxu0 %v127
    %1216 = vmatpush.msra.mxu0 %v124
    %1217 = vmatpush.msra.mxu0 %v121
    %1218 = vmatpush.msra.mxu0 %v118
    %1219 = vmatpush.msra.mxu0 %v115
    %1220 = vmatpush.msra.mxu0 %v112
    %1221 = vmatpush.msra.mxu0 %v109
    %1222 = vmatpush.msra.mxu0 %v106
    %1223 = vmatpush.msra.mxu0 %v103
    %1224 = vmatpush.msra.mxu0 %v100
    %1225 = vmatpush.msra.mxu0 %v97
    %1226 = vmatpush.msra.mxu0 %v94
    %1227 = vmatmul.f32.gmra.mxu0 %v910
    %v1228 = vpop.f32.mrf.mxu0
    %v1229 = vadd.f32 0.0, %v1228
    %1230 = vmatmul.f32.gmra.mxu0 %v911
    %v1231 = vpop.f32.mrf.mxu0
    %v1232 = vadd.f32 0.0, %v1231
    %1233 = vdwg.mxu0
    %1234 = vmatpush.msra.mxu0 %v140
    %1235 = vmatpush.msra.mxu0 %v137
    %1236 = vmatpush.msra.mxu0 %v134
    %1237 = vmatpush.msra.mxu0 %v131
    %1238 = vmatpush.msra.mxu0 %v128
    %1239 = vmatpush.msra.mxu0 %v125
    %1240 = vmatpush.msra.mxu0 %v122
    %1241 = vmatpush.msra.mxu0 %v119
    %1242 = vmatpush.msra.mxu0 %v116
    %1243 = vmatpush.msra.mxu0 %v113
    %1244 = vmatpush.msra.mxu0 %v110
    %1245 = vmatpush.msra.mxu0 %v107
    %1246 = vmatpush.msra.mxu0 %v104
    %1247 = vmatpush.msra.mxu0 %v101
    %1248 = vmatpush.msra.mxu0 %v98
    %1249 = vmatpush.msra.mxu0 %v95
    %1250 = vmatmul.f32.gmra.mxu0 %v910
    %v1251 = vpop.f32.mrf.mxu0
    %v1252 = vadd.f32 0.0, %v1251
    %1253 = vmatmul.f32.gmra.mxu0 %v911
    %v1254 = vpop.f32.mrf.mxu0
    %v1255 = vadd.f32 0.0, %v1254
    %1256 = vdwg.mxu0
    %1257 = vmatpush.msra.mxu0 %v141
    %1258 = vmatpush.msra.mxu0 %v138
    %1259 = vmatpush.msra.mxu0 %v135
    %1260 = vmatpush.msra.mxu0 %v132
    %1261 = vmatpush.msra.mxu0 %v129
    %1262 = vmatpush.msra.mxu0 %v126
    %1263 = vmatpush.msra.mxu0 %v123
    %1264 = vmatpush.msra.mxu0 %v120
    %1265 = vmatpush.msra.mxu0 %v117
    %1266 = vmatpush.msra.mxu0 %v114
    %1267 = vmatpush.msra.mxu0 %v111
    %1268 = vmatpush.msra.mxu0 %v108
    %1269 = vmatpush.msra.mxu0 %v105
    %1270 = vmatpush.msra.mxu0 %v102
    %1271 = vmatpush.msra.mxu0 %v99
    %1272 = vmatpush.msra.mxu0 %v96
    %1273 = vmatmul.f32.gmra.mxu0 %v910
    %v1274 = vpop.f32.mrf.mxu0
    %v1275 = vadd.f32 0.0, %v1274
    %1276 = vmatmul.f32.gmra.mxu0 %v911
    %v1277 = vpop.f32.mrf.mxu0
    %v1278 = vadd.f32 0.0, %v1277
    %1279 = vdwg.mxu0
    %v1280 = vadd.f32 %v1205, %v1229
    %v1281 = vadd.f32 %v1208, %v1232
    %v1282 = vxor.u32 %v1280, 2147483648
    %v1283 = vxor.u32 %v1281, 2147483648
    %v1284 = vmul.f32 %v1282, 1.442695
    %v1285 = vpow.pop %v1284
    %v1286 = vmul.f32 %v1283, 1.442695
    %v1287 = vpow.pop %v1286
    %v1288 = vadd.f32 %v1285, 1.0
    %v1289 = vadd.f32 %v1287, 1.0
    %v1290 = vrcp.pop %v1288
    %v1291 = vmul.f32 %v1288, %v1290
    %v1292 = vsub.f32 1.0, %v1291
    %v1293 = vmul.f32 %v1290, %v1292
    %v1294 = vadd.f32 %v1290, %v1293
    %vm1295 = vweird.f32 %v1288
    %vm1296 = vweird.f32 %v1290
    %vm1297 = vmor %vm1295, %vm1296
    %v1298 = vsel %vm1297, %v1290, %v1294
    %v1299 = vand.u32 2147483647, %v1288
    %vm1300 = vcmp.eq.f32.partialorder %v1299, 8.507059e+37
    %v1301 = vand.u32 %v1288, 2147483648
    %v1302 = vor.u32 1.1754944e-38, %v1301
    %v1303 = vsel %vm1300, %v1302, %v1298
    %v1304 = vmul.f32 1.0, %v1303
    %v1305 = vrcp.pop %v1289
    %v1306 = vmul.f32 %v1289, %v1305
    %v1307 = vsub.f32 1.0, %v1306
    %v1308 = vmul.f32 %v1305, %v1307
    %v1309 = vadd.f32 %v1305, %v1308
    %vm1310 = vweird.f32 %v1289
    %vm1311 = vweird.f32 %v1305
    %vm1312 = vmor %vm1310, %vm1311
    %v1313 = vsel %vm1312, %v1305, %v1309
    %v1314 = vand.u32 2147483647, %v1289
    %vm1315 = vcmp.eq.f32.partialorder %v1314, 8.507059e+37
    %v1316 = vand.u32 %v1289, 2147483648
    %v1317 = vor.u32 1.1754944e-38, %v1316
    %v1318 = vsel %vm1315, %v1317, %v1313
    %v1319 = vmul.f32 1.0, %v1318
    %v1320 = vadd.f32 %v1206, %v1252
    %v1321 = vadd.f32 %v1209, %v1255
    %v1322 = vxor.u32 %v1320, 2147483648
    %v1323 = vxor.u32 %v1321, 2147483648
    %v1324 = vmul.f32 %v1322, 1.442695
    %v1325 = vpow.pop %v1324
    %v1326 = vmul.f32 %v1323, 1.442695
    %v1327 = vpow.pop %v1326
    %v1328 = vadd.f32 %v1325, 1.0
    %v1329 = vadd.f32 %v1327, 1.0
    %v1330 = vrcp.pop %v1328
    %v1331 = vmul.f32 %v1328, %v1330
    %v1332 = vsub.f32 1.0, %v1331
    %v1333 = vmul.f32 %v1330, %v1332
    %v1334 = vadd.f32 %v1330, %v1333
    %vm1335 = vweird.f32 %v1328
    %vm1336 = vweird.f32 %v1330
    %vm1337 = vmor %vm1335, %vm1336
    %v1338 = vsel %vm1337, %v1330, %v1334
    %v1339 = vand.u32 2147483647, %v1328
    %vm1340 = vcmp.eq.f32.partialorder %v1339, 8.507059e+37
    %v1341 = vand.u32 %v1328, 2147483648
    %v1342 = vor.u32 1.1754944e-38, %v1341
    %v1343 = vsel %vm1340, %v1342, %v1338
    %v1344 = vmul.f32 1.0, %v1343
    %v1345 = vrcp.pop %v1329
    %v1346 = vmul.f32 %v1329, %v1345
    %v1347 = vsub.f32 1.0, %v1346
    %v1348 = vmul.f32 %v1345, %v1347
    %v1349 = vadd.f32 %v1345, %v1348
    %vm1350 = vweird.f32 %v1329
    %vm1351 = vweird.f32 %v1345
    %vm1352 = vmor %vm1350, %vm1351
    %v1353 = vsel %vm1352, %v1345, %v1349
    %v1354 = vand.u32 2147483647, %v1329
    %vm1355 = vcmp.eq.f32.partialorder %v1354, 8.507059e+37
    %v1356 = vand.u32 %v1329, 2147483648
    %v1357 = vor.u32 1.1754944e-38, %v1356
    %v1358 = vsel %vm1355, %v1357, %v1353
    %v1359 = vmul.f32 1.0, %v1358
    %v1360 = vmul.f32 %v1304, %v1275
    %v1361 = vmul.f32 %v1319, %v1278
    %v1362 = vadd.f32 %v1207, %v1360
    %v1363 = vadd.f32 %v1210, %v1361
    %v1364 = vtanh.pop %v1362
    %v1365 = vtanh.pop %v1363
    %v1366 = vsub.f32 %v910, %v1364
    %v1367 = vsub.f32 %v911, %v1365
    %v1368 = vmul.f32 %v1344, %v1366
    %v1369 = vmul.f32 %v1359, %v1367
    %v1370 = vadd.f32 %v1364, %v1368
    %v1371 = vadd.f32 %v1365, %v1369
    %1372 = vmatpush.msra.mxu0 %v383
    %1373 = vmatpush.msra.mxu0 %v379
    %1374 = vmatpush.msra.mxu0 %v375
    %1375 = vmatpush.msra.mxu0 %v371
    %1376 = vmatpush.msra.mxu0 %v367
    %1377 = vmatpush.msra.mxu0 %v363
    %1378 = vmatpush.msra.mxu0 %v359
    %1379 = vmatpush.msra.mxu0 %v355
    %1380 = vmatpush.msra.mxu0 %v351
    %1381 = vmatpush.msra.mxu0 %v347
    %1382 = vmatpush.msra.mxu0 %v343
    %1383 = vmatpush.msra.mxu0 %v339
    %1384 = vmatpush.msra.mxu0 %v335
    %1385 = vmatpush.msra.mxu0 %v331
    %1386 = vmatpush.msra.mxu0 %v327
    %1387 = vmatpush.msra.mxu0 %v323
    %1388 = vmatmul.f32.gmra.mxu0 %v1370
    %v1389 = vpop.f32.mrf.mxu0
    %v1390 = vadd.f32 0.0, %v1389
    %1391 = vmatmul.f32.gmra.mxu0 %v1371
    %v1392 = vpop.f32.mrf.mxu0
    %v1393 = vadd.f32 0.0, %v1392
    %1394 = vdwg.mxu0
    %1395 = vmatpush.msra.mxu0 %v447
    %1396 = vmatpush.msra.mxu0 %v443
    %1397 = vmatpush.msra.mxu0 %v439
    %1398 = vmatpush.msra.mxu0 %v435
    %1399 = vmatpush.msra.mxu0 %v431
    %1400 = vmatpush.msra.mxu0 %v427
    %1401 = vmatpush.msra.mxu0 %v423
    %1402 = vmatpush.msra.mxu0 %v419
    %1403 = vmatpush.msra.mxu0 %v415
    %1404 = vmatpush.msra.mxu0 %v411
    %1405 = vmatpush.msra.mxu0 %v407
    %1406 = vmatpush.msra.mxu0 %v403
    %1407 = vmatpush.msra.mxu0 %v399
    %1408 = vmatpush.msra.mxu0 %v395
    %1409 = vmatpush.msra.mxu0 %v391
    %1410 = vmatpush.msra.mxu0 %v387
    %1411 = vmatmul.f32.gmra.mxu0 %v1182
    %v1412 = vpop.f32.mrf.mxu0
    %v1413 = vadd.f32 %v1390, %v1412
    %1414 = vmatmul.f32.gmra.mxu0 %v1183
    %v1415 = vpop.f32.mrf.mxu0
    %v1416 = vadd.f32 %v1393, %v1415
    %1417 = vdwg.mxu0
    %1418 = vmatpush.msra.mxu0 %v384
    %1419 = vmatpush.msra.mxu0 %v380
    %1420 = vmatpush.msra.mxu0 %v376
    %1421 = vmatpush.msra.mxu0 %v372
    %1422 = vmatpush.msra.mxu0 %v368
    %1423 = vmatpush.msra.mxu0 %v364
    %1424 = vmatpush.msra.mxu0 %v360
    %1425 = vmatpush.msra.mxu0 %v356
    %1426 = vmatpush.msra.mxu0 %v352
    %1427 = vmatpush.msra.mxu0 %v348
    %1428 = vmatpush.msra.mxu0 %v344
    %1429 = vmatpush.msra.mxu0 %v340
    %1430 = vmatpush.msra.mxu0 %v336
    %1431 = vmatpush.msra.mxu0 %v332
    %1432 = vmatpush.msra.mxu0 %v328
    %1433 = vmatpush.msra.mxu0 %v324
    %1434 = vmatmul.f32.gmra.mxu0 %v1370
    %v1435 = vpop.f32.mrf.mxu0
    %v1436 = vadd.f32 0.0, %v1435
    %1437 = vmatmul.f32.gmra.mxu0 %v1371
    %v1438 = vpop.f32.mrf.mxu0
    %v1439 = vadd.f32 0.0, %v1438
    %1440 = vdwg.mxu0
    %1441 = vmatpush.msra.mxu0 %v448
    %1442 = vmatpush.msra.mxu0 %v444
    %1443 = vmatpush.msra.mxu0 %v440
    %1444 = vmatpush.msra.mxu0 %v436
    %1445 = vmatpush.msra.mxu0 %v432
    %1446 = vmatpush.msra.mxu0 %v428
    %1447 = vmatpush.msra.mxu0 %v424
    %1448 = vmatpush.msra.mxu0 %v420
    %1449 = vmatpush.msra.mxu0 %v416
    %1450 = vmatpush.msra.mxu0 %v412
    %1451 = vmatpush.msra.mxu0 %v408
    %1452 = vmatpush.msra.mxu0 %v404
    %1453 = vmatpush.msra.mxu0 %v400
    %1454 = vmatpush.msra.mxu0 %v396
    %1455 = vmatpush.msra.mxu0 %v392
    %1456 = vmatpush.msra.mxu0 %v388
    %1457 = vmatmul.f32.gmra.mxu0 %v1182
    %v1458 = vpop.f32.mrf.mxu0
    %v1459 = vadd.f32 %v1436, %v1458
    %1460 = vmatmul.f32.gmra.mxu0 %v1183
    %v1461 = vpop.f32.mrf.mxu0
    %v1462 = vadd.f32 %v1439, %v1461
    %1463 = vdwg.mxu0
    %1464 = vmatpush.msra.mxu0 %v385
    %1465 = vmatpush.msra.mxu0 %v381
    %1466 = vmatpush.msra.mxu0 %v377
    %1467 = vmatpush.msra.mxu0 %v373
    %1468 = vmatpush.msra.mxu0 %v369
    %1469 = vmatpush.msra.mxu0 %v365
    %1470 = vmatpush.msra.mxu0 %v361
    %1471 = vmatpush.msra.mxu0 %v357
    %1472 = vmatpush.msra.mxu0 %v353
    %1473 = vmatpush.msra.mxu0 %v349
    %1474 = vmatpush.msra.mxu0 %v345
    %1475 = vmatpush.msra.mxu0 %v341
    %1476 = vmatpush.msra.mxu0 %v337
    %1477 = vmatpush.msra.mxu0 %v333
    %1478 = vmatpush.msra.mxu0 %v329
    %1479 = vmatpush.msra.mxu0 %v325
    %1480 = vmatmul.f32.gmra.mxu0 %v1370
    %v1481 = vpop.f32.mrf.mxu0
    %v1482 = vadd.f32 0.0, %v1481
    %1483 = vmatmul.f32.gmra.mxu0 %v1371
    %v1484 = vpop.f32.mrf.mxu0
    %v1485 = vadd.f32 0.0, %v1484
    %1486 = vdwg.mxu0
    %1487 = vmatpush.msra.mxu0 %v449
    %1488 = vmatpush.msra.mxu0 %v445
    %1489 = vmatpush.msra.mxu0 %v441
    %1490 = vmatpush.msra.mxu0 %v437
    %1491 = vmatpush.msra.mxu0 %v433
    %1492 = vmatpush.msra.mxu0 %v429
    %1493 = vmatpush.msra.mxu0 %v425
    %1494 = vmatpush.msra.mxu0 %v421
    %1495 = vmatpush.msra.mxu0 %v417
    %1496 = vmatpush.msra.mxu0 %v413
    %1497 = vmatpush.msra.mxu0 %v409
    %1498 = vmatpush.msra.mxu0 %v405
    %1499 = vmatpush.msra.mxu0 %v401
    %1500 = vmatpush.msra.mxu0 %v397
    %1501 = vmatpush.msra.mxu0 %v393
    %1502 = vmatpush.msra.mxu0 %v389
    %1503 = vmatmul.f32.gmra.mxu0 %v1182
    %v1504 = vpop.f32.mrf.mxu0
    %v1505 = vadd.f32 %v1482, %v1504
    %1506 = vmatmul.f32.gmra.mxu0 %v1183
    %v1507 = vpop.f32.mrf.mxu0
    %v1508 = vadd.f32 %v1485, %v1507
    %1509 = vdwg.mxu0
    %1510 = vmatpush.msra.mxu0 %v386
    %1511 = vmatpush.msra.mxu0 %v382
    %1512 = vmatpush.msra.mxu0 %v378
    %1513 = vmatpush.msra.mxu0 %v374
    %1514 = vmatpush.msra.mxu0 %v370
    %1515 = vmatpush.msra.mxu0 %v366
    %1516 = vmatpush.msra.mxu0 %v362
    %1517 = vmatpush.msra.mxu0 %v358
    %1518 = vmatpush.msra.mxu0 %v354
    %1519 = vmatpush.msra.mxu0 %v350
    %1520 = vmatpush.msra.mxu0 %v346
    %1521 = vmatpush.msra.mxu0 %v342
    %1522 = vmatpush.msra.mxu0 %v338
    %1523 = vmatpush.msra.mxu0 %v334
    %1524 = vmatpush.msra.mxu0 %v330
    %1525 = vmatpush.msra.mxu0 %v326
    %1526 = vmatmul.f32.gmra.mxu0 %v1370
    %v1527 = vpop.f32.mrf.mxu0
    %v1528 = vadd.f32 0.0, %v1527
    %1529 = vmatmul.f32.gmra.mxu0 %v1371
    %v1530 = vpop.f32.mrf.mxu0
    %v1531 = vadd.f32 0.0, %v1530
    %1532 = vdwg.mxu0
    %1533 = vmatpush.msra.mxu0 %v450
    %1534 = vmatpush.msra.mxu0 %v446
    %1535 = vmatpush.msra.mxu0 %v442
    %1536 = vmatpush.msra.mxu0 %v438
    %1537 = vmatpush.msra.mxu0 %v434
    %1538 = vmatpush.msra.mxu0 %v430
    %1539 = vmatpush.msra.mxu0 %v426
    %1540 = vmatpush.msra.mxu0 %v422
    %1541 = vmatpush.msra.mxu0 %v418
    %1542 = vmatpush.msra.mxu0 %v414
    %1543 = vmatpush.msra.mxu0 %v410
    %1544 = vmatpush.msra.mxu0 %v406
    %1545 = vmatpush.msra.mxu0 %v402
    %1546 = vmatpush.msra.mxu0 %v398
    %1547 = vmatpush.msra.mxu0 %v394
    %1548 = vmatpush.msra.mxu0 %v390
    %1549 = vmatmul.f32.gmra.mxu0 %v1182
    %v1550 = vpop.f32.mrf.mxu0
    %v1551 = vadd.f32 %v1528, %v1550
    %1552 = vmatmul.f32.gmra.mxu0 %v1183
    %v1553 = vpop.f32.mrf.mxu0
    %v1554 = vadd.f32 %v1531, %v1553
    %1555 = vdwg.mxu0
    %v1556 = vxor.u32 %v1413, 2147483648
    %v1557 = vxor.u32 %v1416, 2147483648
    %v1558 = vmul.f32 %v1556, 1.442695
    %v1559 = vpow.pop %v1558
    %v1560 = vmul.f32 %v1557, 1.442695
    %v1561 = vpow.pop %v1560
    %v1562 = vadd.f32 %v1559, 1.0
    %v1563 = vadd.f32 %v1561, 1.0
    %v1564 = vrcp.pop %v1562
    %v1565 = vmul.f32 %v1562, %v1564
    %v1566 = vsub.f32 1.0, %v1565
    %v1567 = vmul.f32 %v1564, %v1566
    %v1568 = vadd.f32 %v1564, %v1567
    %vm1569 = vweird.f32 %v1562
    %vm1570 = vweird.f32 %v1564
    %vm1571 = vmor %vm1569, %vm1570
    %v1572 = vsel %vm1571, %v1564, %v1568
    %v1573 = vand.u32 2147483647, %v1562
    %vm1574 = vcmp.eq.f32.partialorder %v1573, 8.507059e+37
    %v1575 = vand.u32 %v1562, 2147483648
    %v1576 = vor.u32 1.1754944e-38, %v1575
    %v1577 = vsel %vm1574, %v1576, %v1572
    %v1578 = vmul.f32 1.0, %v1577
    %v1579 = vrcp.pop %v1563
    %v1580 = vmul.f32 %v1563, %v1579
    %v1581 = vsub.f32 1.0, %v1580
    %v1582 = vmul.f32 %v1579, %v1581
    %v1583 = vadd.f32 %v1579, %v1582
    %vm1584 = vweird.f32 %v1563
    %vm1585 = vweird.f32 %v1579
    %vm1586 = vmor %vm1584, %vm1585
    %v1587 = vsel %vm1586, %v1579, %v1583
    %v1588 = vand.u32 2147483647, %v1563
    %vm1589 = vcmp.eq.f32.partialorder %v1588, 8.507059e+37
    %v1590 = vand.u32 %v1563, 2147483648
    %v1591 = vor.u32 1.1754944e-38, %v1590
    %v1592 = vsel %vm1589, %v1591, %v1587
    %v1593 = vmul.f32 1.0, %v1592
    %v1594 = vxor.u32 %v1459, 2147483648
    %v1595 = vxor.u32 %v1462, 2147483648
    %v1596 = vmul.f32 %v1594, 1.442695
    %v1597 = vpow.pop %v1596
    %v1598 = vmul.f32 %v1595, 1.442695
    %v1599 = vpow.pop %v1598
    %v1600 = vadd.f32 %v1597, 1.0
    %v1601 = vadd.f32 %v1599, 1.0
    %v1602 = vrcp.pop %v1600
    %v1603 = vmul.f32 %v1600, %v1602
    %v1604 = vsub.f32 1.0, %v1603
    %v1605 = vmul.f32 %v1602, %v1604
    %v1606 = vadd.f32 %v1602, %v1605
    %vm1607 = vweird.f32 %v1600
    %vm1608 = vweird.f32 %v1602
    %vm1609 = vmor %vm1607, %vm1608
    %v1610 = vsel %vm1609, %v1602, %v1606
    %v1611 = vand.u32 2147483647, %v1600
    %vm1612 = vcmp.eq.f32.partialorder %v1611, 8.507059e+37
    %v1613 = vand.u32 %v1600, 2147483648
    %v1614 = vor.u32 1.1754944e-38, %v1613
    %v1615 = vsel %vm1612, %v1614, %v1610
    %v1616 = vmul.f32 1.0, %v1615
    %v1617 = vrcp.pop %v1601
    %v1618 = vmul.f32 %v1601, %v1617
    %v1619 = vsub.f32 1.0, %v1618
    %v1620 = vmul.f32 %v1617, %v1619
    %v1621 = vadd.f32 %v1617, %v1620
    %vm1622 = vweird.f32 %v1601
    %vm1623 = vweird.f32 %v1617
    %vm1624 = vmor %vm1622, %vm1623
    %v1625 = vsel %vm1624, %v1617, %v1621
    %v1626 = vand.u32 2147483647, %v1601
    %vm1627 = vcmp.eq.f32.partialorder %v1626, 8.507059e+37
    %v1628 = vand.u32 %v1601, 2147483648
    %v1629 = vor.u32 1.1754944e-38, %v1628
    %v1630 = vsel %vm1627, %v1629, %v1625
    %v1631 = vmul.f32 1.0, %v1630
    %v1632 = vmul.f32 %v1578, %v1551
    %v1633 = vmul.f32 %v1593, %v1554
    %v1634 = vadd.f32 %v1505, %v1632
    %v1635 = vadd.f32 %v1508, %v1633
    %v1636 = vtanh.pop %v1634
    %v1637 = vtanh.pop %v1635
    %v1638 = vsub.f32 %v1182, %v1636
    %v1639 = vsub.f32 %v1183, %v1637
    %v1640 = vmul.f32 %v1616, %v1638
    %v1641 = vmul.f32 %v1631, %v1639
    %v1642 = vadd.f32 %v1636, %v1640
    %v1643 = vadd.f32 %v1637, %v1641
    %s1644 = sadd.s32 %s144, 2
    %v1645 = vstv %s1644
    %vm1646 = vcmp.eq.s32.totalorder %v723, %v1645
    %vm1647 = vcmp.eq.s32.totalorder %v724, %v1645
    %v1648 = vsel %vm1646, 1, 0
    %v1649 = vsel %vm1647, 1, 0
    %1650 = vset.pattern.permute.xlu0 0
    %1651 = vperm.xlu0 %1650, %v1648
    %v1652 = vpop.permute.xlu0 %1651
    %1653 = vset.pattern.permute.xlu0 0
    %1654 = vperm.xlu0 %1653, %v1649
    %v1655 = vpop.permute.xlu0 %1654
    %vm1656 = vcmp.eq.s32.totalorder %v1652, 1
    %vm1657 = vcmp.eq.s32.totalorder %v1655, 1
    %v1658 = vsel %vm1656, %v1642, %v1198
    %v1659 = vsel %vm1657, %v1643, %v1199
    %s1660 = scalar_lea.vmem [#allocation4], 72
    %v1661 = vld [vmem:[%s1660] sm:$0xff]
    %v1662 = vld [vmem:[%s1660 + $0x8] sm:$0xf]
    %v1663 = vld [vmem:[%s1660 + $0xc] sm:$0xff]
    %v1664 = vld [vmem:[%s1660 + $0x14] sm:$0xf]
    %v1665 = vunpack.c.l.bf16 %v1661
    %v1666 = vunpack.c.h.bf16 %v1661
    %v1667 = vunpack.c.l.bf16 %v1662
    %v1668 = vunpack.c.l.bf16 %v1663
    %v1669 = vunpack.c.h.bf16 %v1663
    %v1670 = vunpack.c.l.bf16 %v1664
    %1671 = vmatpush.msra.mxu0 %v139
    %1672 = vmatpush.msra.mxu0 %v136
    %1673 = vmatpush.msra.mxu0 %v133
    %1674 = vmatpush.msra.mxu0 %v130
    %1675 = vmatpush.msra.mxu0 %v127
    %1676 = vmatpush.msra.mxu0 %v124
    %1677 = vmatpush.msra.mxu0 %v121
    %1678 = vmatpush.msra.mxu0 %v118
    %1679 = vmatpush.msra.mxu0 %v115
    %1680 = vmatpush.msra.mxu0 %v112
    %1681 = vmatpush.msra.mxu0 %v109
    %1682 = vmatpush.msra.mxu0 %v106
    %1683 = vmatpush.msra.mxu0 %v103
    %1684 = vmatpush.msra.mxu0 %v100
    %1685 = vmatpush.msra.mxu0 %v97
    %1686 = vmatpush.msra.mxu0 %v94
    %1687 = vmatmul.f32.gmra.mxu0 %v1370
    %v1688 = vpop.f32.mrf.mxu0
    %v1689 = vadd.f32 0.0, %v1688
    %1690 = vmatmul.f32.gmra.mxu0 %v1371
    %v1691 = vpop.f32.mrf.mxu0
    %v1692 = vadd.f32 0.0, %v1691
    %1693 = vdwg.mxu0
    %1694 = vmatpush.msra.mxu0 %v140
    %1695 = vmatpush.msra.mxu0 %v137
    %1696 = vmatpush.msra.mxu0 %v134
    %1697 = vmatpush.msra.mxu0 %v131
    %1698 = vmatpush.msra.mxu0 %v128
    %1699 = vmatpush.msra.mxu0 %v125
    %1700 = vmatpush.msra.mxu0 %v122
    %1701 = vmatpush.msra.mxu0 %v119
    %1702 = vmatpush.msra.mxu0 %v116
    %1703 = vmatpush.msra.mxu0 %v113
    %1704 = vmatpush.msra.mxu0 %v110
    %1705 = vmatpush.msra.mxu0 %v107
    %1706 = vmatpush.msra.mxu0 %v104
    %1707 = vmatpush.msra.mxu0 %v101
    %1708 = vmatpush.msra.mxu0 %v98
    %1709 = vmatpush.msra.mxu0 %v95
    %1710 = vmatmul.f32.gmra.mxu0 %v1370
    %v1711 = vpop.f32.mrf.mxu0
    %v1712 = vadd.f32 0.0, %v1711
    %1713 = vmatmul.f32.gmra.mxu0 %v1371
    %v1714 = vpop.f32.mrf.mxu0
    %v1715 = vadd.f32 0.0, %v1714
    %1716 = vdwg.mxu0
    %1717 = vmatpush.msra.mxu0 %v141
    %1718 = vmatpush.msra.mxu0 %v138
    %1719 = vmatpush.msra.mxu0 %v135
    %1720 = vmatpush.msra.mxu0 %v132
    %1721 = vmatpush.msra.mxu0 %v129
    %1722 = vmatpush.msra.mxu0 %v126
    %1723 = vmatpush.msra.mxu0 %v123
    %1724 = vmatpush.msra.mxu0 %v120
    %1725 = vmatpush.msra.mxu0 %v117
    %1726 = vmatpush.msra.mxu0 %v114
    %1727 = vmatpush.msra.mxu0 %v111
    %1728 = vmatpush.msra.mxu0 %v108
    %1729 = vmatpush.msra.mxu0 %v105
    %1730 = vmatpush.msra.mxu0 %v102
    %1731 = vmatpush.msra.mxu0 %v99
    %1732 = vmatpush.msra.mxu0 %v96
    %1733 = vmatmul.f32.gmra.mxu0 %v1370
    %v1734 = vpop.f32.mrf.mxu0
    %v1735 = vadd.f32 0.0, %v1734
    %1736 = vmatmul.f32.gmra.mxu0 %v1371
    %v1737 = vpop.f32.mrf.mxu0
    %v1738 = vadd.f32 0.0, %v1737
    %1739 = vdwg.mxu0
    %v1740 = vadd.f32 %v1665, %v1689
    %v1741 = vadd.f32 %v1668, %v1692
    %v1742 = vxor.u32 %v1740, 2147483648
    %v1743 = vxor.u32 %v1741, 2147483648
    %v1744 = vmul.f32 %v1742, 1.442695
    %v1745 = vpow.pop %v1744
    %v1746 = vmul.f32 %v1743, 1.442695
    %v1747 = vpow.pop %v1746
    %v1748 = vadd.f32 %v1745, 1.0
    %v1749 = vadd.f32 %v1747, 1.0
    %v1750 = vrcp.pop %v1748
    %v1751 = vmul.f32 %v1748, %v1750
    %v1752 = vsub.f32 1.0, %v1751
    %v1753 = vmul.f32 %v1750, %v1752
    %v1754 = vadd.f32 %v1750, %v1753
    %vm1755 = vweird.f32 %v1748
    %vm1756 = vweird.f32 %v1750
    %vm1757 = vmor %vm1755, %vm1756
    %v1758 = vsel %vm1757, %v1750, %v1754
    %v1759 = vand.u32 2147483647, %v1748
    %vm1760 = vcmp.eq.f32.partialorder %v1759, 8.507059e+37
    %v1761 = vand.u32 %v1748, 2147483648
    %v1762 = vor.u32 1.1754944e-38, %v1761
    %v1763 = vsel %vm1760, %v1762, %v1758
    %v1764 = vmul.f32 1.0, %v1763
    %v1765 = vrcp.pop %v1749
    %v1766 = vmul.f32 %v1749, %v1765
    %v1767 = vsub.f32 1.0, %v1766
    %v1768 = vmul.f32 %v1765, %v1767
    %v1769 = vadd.f32 %v1765, %v1768
    %vm1770 = vweird.f32 %v1749
    %vm1771 = vweird.f32 %v1765
    %vm1772 = vmor %vm1770, %vm1771
    %v1773 = vsel %vm1772, %v1765, %v1769
    %v1774 = vand.u32 2147483647, %v1749
    %vm1775 = vcmp.eq.f32.partialorder %v1774, 8.507059e+37
    %v1776 = vand.u32 %v1749, 2147483648
    %v1777 = vor.u32 1.1754944e-38, %v1776
    %v1778 = vsel %vm1775, %v1777, %v1773
    %v1779 = vmul.f32 1.0, %v1778
    %v1780 = vadd.f32 %v1666, %v1712
    %v1781 = vadd.f32 %v1669, %v1715
    %v1782 = vxor.u32 %v1780, 2147483648
    %v1783 = vxor.u32 %v1781, 2147483648
    %v1784 = vmul.f32 %v1782, 1.442695
    %v1785 = vpow.pop %v1784
    %v1786 = vmul.f32 %v1783, 1.442695
    %v1787 = vpow.pop %v1786
    %v1788 = vadd.f32 %v1785, 1.0
    %v1789 = vadd.f32 %v1787, 1.0
    %v1790 = vrcp.pop %v1788
    %v1791 = vmul.f32 %v1788, %v1790
    %v1792 = vsub.f32 1.0, %v1791
    %v1793 = vmul.f32 %v1790, %v1792
    %v1794 = vadd.f32 %v1790, %v1793
    %vm1795 = vweird.f32 %v1788
    %vm1796 = vweird.f32 %v1790
    %vm1797 = vmor %vm1795, %vm1796
    %v1798 = vsel %vm1797, %v1790, %v1794
    %v1799 = vand.u32 2147483647, %v1788
    %vm1800 = vcmp.eq.f32.partialorder %v1799, 8.507059e+37
    %v1801 = vand.u32 %v1788, 2147483648
    %v1802 = vor.u32 1.1754944e-38, %v1801
    %v1803 = vsel %vm1800, %v1802, %v1798
    %v1804 = vmul.f32 1.0, %v1803
    %v1805 = vrcp.pop %v1789
    %v1806 = vmul.f32 %v1789, %v1805
    %v1807 = vsub.f32 1.0, %v1806
    %v1808 = vmul.f32 %v1805, %v1807
    %v1809 = vadd.f32 %v1805, %v1808
    %vm1810 = vweird.f32 %v1789
    %vm1811 = vweird.f32 %v1805
    %vm1812 = vmor %vm1810, %vm1811
    %v1813 = vsel %vm1812, %v1805, %v1809
    %v1814 = vand.u32 2147483647, %v1789
    %vm1815 = vcmp.eq.f32.partialorder %v1814, 8.507059e+37
    %v1816 = vand.u32 %v1789, 2147483648
    %v1817 = vor.u32 1.1754944e-38, %v1816
    %v1818 = vsel %vm1815, %v1817, %v1813
    %v1819 = vmul.f32 1.0, %v1818
    %v1820 = vmul.f32 %v1764, %v1735
    %v1821 = vmul.f32 %v1779, %v1738
    %v1822 = vadd.f32 %v1667, %v1820
    %v1823 = vadd.f32 %v1670, %v1821
    %v1824 = vtanh.pop %v1822
    %v1825 = vtanh.pop %v1823
    %v1826 = vsub.f32 %v1370, %v1824
    %v1827 = vsub.f32 %v1371, %v1825
    %v1828 = vmul.f32 %v1804, %v1826
    %v1829 = vmul.f32 %v1819, %v1827
    %v1830 = vadd.f32 %v1824, %v1828
    %v1831 = vadd.f32 %v1825, %v1829
    %1832 = vmatpush.msra.mxu0 %v383
    %1833 = vmatpush.msra.mxu0 %v379
    %1834 = vmatpush.msra.mxu0 %v375
    %1835 = vmatpush.msra.mxu0 %v371
    %1836 = vmatpush.msra.mxu0 %v367
    %1837 = vmatpush.msra.mxu0 %v363
    %1838 = vmatpush.msra.mxu0 %v359
    %1839 = vmatpush.msra.mxu0 %v355
    %1840 = vmatpush.msra.mxu0 %v351
    %1841 = vmatpush.msra.mxu0 %v347
    %1842 = vmatpush.msra.mxu0 %v343
    %1843 = vmatpush.msra.mxu0 %v339
    %1844 = vmatpush.msra.mxu0 %v335
    %1845 = vmatpush.msra.mxu0 %v331
    %1846 = vmatpush.msra.mxu0 %v327
    %1847 = vmatpush.msra.mxu0 %v323
    %1848 = vmatmul.f32.gmra.mxu0 %v1830
    %v1849 = vpop.f32.mrf.mxu0
    %v1850 = vadd.f32 0.0, %v1849
    %1851 = vmatmul.f32.gmra.mxu0 %v1831
    %v1852 = vpop.f32.mrf.mxu0
    %v1853 = vadd.f32 0.0, %v1852
    %1854 = vdwg.mxu0
    %1855 = vmatpush.msra.mxu0 %v447
    %1856 = vmatpush.msra.mxu0 %v443
    %1857 = vmatpush.msra.mxu0 %v439
    %1858 = vmatpush.msra.mxu0 %v435
    %1859 = vmatpush.msra.mxu0 %v431
    %1860 = vmatpush.msra.mxu0 %v427
    %1861 = vmatpush.msra.mxu0 %v423
    %1862 = vmatpush.msra.mxu0 %v419
    %1863 = vmatpush.msra.mxu0 %v415
    %1864 = vmatpush.msra.mxu0 %v411
    %1865 = vmatpush.msra.mxu0 %v407
    %1866 = vmatpush.msra.mxu0 %v403
    %1867 = vmatpush.msra.mxu0 %v399
    %1868 = vmatpush.msra.mxu0 %v395
    %1869 = vmatpush.msra.mxu0 %v391
    %1870 = vmatpush.msra.mxu0 %v387
    %1871 = vmatmul.f32.gmra.mxu0 %v1642
    %v1872 = vpop.f32.mrf.mxu0
    %v1873 = vadd.f32 %v1850, %v1872
    %1874 = vmatmul.f32.gmra.mxu0 %v1643
    %v1875 = vpop.f32.mrf.mxu0
    %v1876 = vadd.f32 %v1853, %v1875
    %1877 = vdwg.mxu0
    %1878 = vmatpush.msra.mxu0 %v384
    %1879 = vmatpush.msra.mxu0 %v380
    %1880 = vmatpush.msra.mxu0 %v376
    %1881 = vmatpush.msra.mxu0 %v372
    %1882 = vmatpush.msra.mxu0 %v368
    %1883 = vmatpush.msra.mxu0 %v364
    %1884 = vmatpush.msra.mxu0 %v360
    %1885 = vmatpush.msra.mxu0 %v356
    %1886 = vmatpush.msra.mxu0 %v352
    %1887 = vmatpush.msra.mxu0 %v348
    %1888 = vmatpush.msra.mxu0 %v344
    %1889 = vmatpush.msra.mxu0 %v340
    %1890 = vmatpush.msra.mxu0 %v336
    %1891 = vmatpush.msra.mxu0 %v332
    %1892 = vmatpush.msra.mxu0 %v328
    %1893 = vmatpush.msra.mxu0 %v324
    %1894 = vmatmul.f32.gmra.mxu0 %v1830
    %v1895 = vpop.f32.mrf.mxu0
    %v1896 = vadd.f32 0.0, %v1895
    %1897 = vmatmul.f32.gmra.mxu0 %v1831
    %v1898 = vpop.f32.mrf.mxu0
    %v1899 = vadd.f32 0.0, %v1898
    %1900 = vdwg.mxu0
    %1901 = vmatpush.msra.mxu0 %v448
    %1902 = vmatpush.msra.mxu0 %v444
    %1903 = vmatpush.msra.mxu0 %v440
    %1904 = vmatpush.msra.mxu0 %v436
    %1905 = vmatpush.msra.mxu0 %v432
    %1906 = vmatpush.msra.mxu0 %v428
    %1907 = vmatpush.msra.mxu0 %v424
    %1908 = vmatpush.msra.mxu0 %v420
    %1909 = vmatpush.msra.mxu0 %v416
    %1910 = vmatpush.msra.mxu0 %v412
    %1911 = vmatpush.msra.mxu0 %v408
    %1912 = vmatpush.msra.mxu0 %v404
    %1913 = vmatpush.msra.mxu0 %v400
    %1914 = vmatpush.msra.mxu0 %v396
    %1915 = vmatpush.msra.mxu0 %v392
    %1916 = vmatpush.msra.mxu0 %v388
    %1917 = vmatmul.f32.gmra.mxu0 %v1642
    %v1918 = vpop.f32.mrf.mxu0
    %v1919 = vadd.f32 %v1896, %v1918
    %1920 = vmatmul.f32.gmra.mxu0 %v1643
    %v1921 = vpop.f32.mrf.mxu0
    %v1922 = vadd.f32 %v1899, %v1921
    %1923 = vdwg.mxu0
    %1924 = vmatpush.msra.mxu0 %v385
    %1925 = vmatpush.msra.mxu0 %v381
    %1926 = vmatpush.msra.mxu0 %v377
    %1927 = vmatpush.msra.mxu0 %v373
    %1928 = vmatpush.msra.mxu0 %v369
    %1929 = vmatpush.msra.mxu0 %v365
    %1930 = vmatpush.msra.mxu0 %v361
    %1931 = vmatpush.msra.mxu0 %v357
    %1932 = vmatpush.msra.mxu0 %v353
    %1933 = vmatpush.msra.mxu0 %v349
    %1934 = vmatpush.msra.mxu0 %v345
    %1935 = vmatpush.msra.mxu0 %v341
    %1936 = vmatpush.msra.mxu0 %v337
    %1937 = vmatpush.msra.mxu0 %v333
    %1938 = vmatpush.msra.mxu0 %v329
    %1939 = vmatpush.msra.mxu0 %v325
    %1940 = vmatmul.f32.gmra.mxu0 %v1830
    %v1941 = vpop.f32.mrf.mxu0
    %v1942 = vadd.f32 0.0, %v1941
    %1943 = vmatmul.f32.gmra.mxu0 %v1831
    %v1944 = vpop.f32.mrf.mxu0
    %v1945 = vadd.f32 0.0, %v1944
    %1946 = vdwg.mxu0
    %1947 = vmatpush.msra.mxu0 %v449
    %1948 = vmatpush.msra.mxu0 %v445
    %1949 = vmatpush.msra.mxu0 %v441
    %1950 = vmatpush.msra.mxu0 %v437
    %1951 = vmatpush.msra.mxu0 %v433
    %1952 = vmatpush.msra.mxu0 %v429
    %1953 = vmatpush.msra.mxu0 %v425
    %1954 = vmatpush.msra.mxu0 %v421
    %1955 = vmatpush.msra.mxu0 %v417
    %1956 = vmatpush.msra.mxu0 %v413
    %1957 = vmatpush.msra.mxu0 %v409
    %1958 = vmatpush.msra.mxu0 %v405
    %1959 = vmatpush.msra.mxu0 %v401
    %1960 = vmatpush.msra.mxu0 %v397
    %1961 = vmatpush.msra.mxu0 %v393
    %1962 = vmatpush.msra.mxu0 %v389
    %1963 = vmatmul.f32.gmra.mxu0 %v1642
    %v1964 = vpop.f32.mrf.mxu0
    %v1965 = vadd.f32 %v1942, %v1964
    %1966 = vmatmul.f32.gmra.mxu0 %v1643
    %v1967 = vpop.f32.mrf.mxu0
    %v1968 = vadd.f32 %v1945, %v1967
    %1969 = vdwg.mxu0
    %1970 = vmatpush.msra.mxu0 %v386
    %1971 = vmatpush.msra.mxu0 %v382
    %1972 = vmatpush.msra.mxu0 %v378
    %1973 = vmatpush.msra.mxu0 %v374
    %1974 = vmatpush.msra.mxu0 %v370
    %1975 = vmatpush.msra.mxu0 %v366
    %1976 = vmatpush.msra.mxu0 %v362
    %1977 = vmatpush.msra.mxu0 %v358
    %1978 = vmatpush.msra.mxu0 %v354
    %1979 = vmatpush.msra.mxu0 %v350
    %1980 = vmatpush.msra.mxu0 %v346
    %1981 = vmatpush.msra.mxu0 %v342
    %1982 = vmatpush.msra.mxu0 %v338
    %1983 = vmatpush.msra.mxu0 %v334
    %1984 = vmatpush.msra.mxu0 %v330
    %1985 = vmatpush.msra.mxu0 %v326
    %1986 = vmatmul.f32.gmra.mxu0 %v1830
    %v1987 = vpop.f32.mrf.mxu0
    %v1988 = vadd.f32 0.0, %v1987
    %1989 = vmatmul.f32.gmra.mxu0 %v1831
    %v1990 = vpop.f32.mrf.mxu0
    %v1991 = vadd.f32 0.0, %v1990
    %1992 = vdwg.mxu0
    %1993 = vmatpush.msra.mxu0 %v450
    %1994 = vmatpush.msra.mxu0 %v446
    %1995 = vmatpush.msra.mxu0 %v442
    %1996 = vmatpush.msra.mxu0 %v438
    %1997 = vmatpush.msra.mxu0 %v434
    %1998 = vmatpush.msra.mxu0 %v430
    %1999 = vmatpush.msra.mxu0 %v426
    %2000 = vmatpush.msra.mxu0 %v422
    %2001 = vmatpush.msra.mxu0 %v418
    %2002 = vmatpush.msra.mxu0 %v414
    %2003 = vmatpush.msra.mxu0 %v410
    %2004 = vmatpush.msra.mxu0 %v406
    %2005 = vmatpush.msra.mxu0 %v402
    %2006 = vmatpush.msra.mxu0 %v398
    %2007 = vmatpush.msra.mxu0 %v394
    %2008 = vmatpush.msra.mxu0 %v390
    %2009 = vmatmul.f32.gmra.mxu0 %v1642
    %v2010 = vpop.f32.mrf.mxu0
    %v2011 = vadd.f32 %v1988, %v2010
    %2012 = vmatmul.f32.gmra.mxu0 %v1643
    %v2013 = vpop.f32.mrf.mxu0
    %v2014 = vadd.f32 %v1991, %v2013
    %2015 = vdwg.mxu0
    %v2016 = vxor.u32 %v1873, 2147483648
    %v2017 = vxor.u32 %v1876, 2147483648
    %v2018 = vmul.f32 %v2016, 1.442695
    %v2019 = vpow.pop %v2018
    %v2020 = vmul.f32 %v2017, 1.442695
    %v2021 = vpow.pop %v2020
    %v2022 = vadd.f32 %v2019, 1.0
    %v2023 = vadd.f32 %v2021, 1.0
    %v2024 = vrcp.pop %v2022
    %v2025 = vmul.f32 %v2022, %v2024
    %v2026 = vsub.f32 1.0, %v2025
    %v2027 = vmul.f32 %v2024, %v2026
    %v2028 = vadd.f32 %v2024, %v2027
    %vm2029 = vweird.f32 %v2022
    %vm2030 = vweird.f32 %v2024
    %vm2031 = vmor %vm2029, %vm2030
    %v2032 = vsel %vm2031, %v2024, %v2028
    %v2033 = vand.u32 2147483647, %v2022
    %vm2034 = vcmp.eq.f32.partialorder %v2033, 8.507059e+37
    %v2035 = vand.u32 %v2022, 2147483648
    %v2036 = vor.u32 1.1754944e-38, %v2035
    %v2037 = vsel %vm2034, %v2036, %v2032
    %v2038 = vmul.f32 1.0, %v2037
    %v2039 = vrcp.pop %v2023
    %v2040 = vmul.f32 %v2023, %v2039
    %v2041 = vsub.f32 1.0, %v2040
    %v2042 = vmul.f32 %v2039, %v2041
    %v2043 = vadd.f32 %v2039, %v2042
    %vm2044 = vweird.f32 %v2023
    %vm2045 = vweird.f32 %v2039
    %vm2046 = vmor %vm2044, %vm2045
    %v2047 = vsel %vm2046, %v2039, %v2043
    %v2048 = vand.u32 2147483647, %v2023
    %vm2049 = vcmp.eq.f32.partialorder %v2048, 8.507059e+37
    %v2050 = vand.u32 %v2023, 2147483648
    %v2051 = vor.u32 1.1754944e-38, %v2050
    %v2052 = vsel %vm2049, %v2051, %v2047
    %v2053 = vmul.f32 1.0, %v2052
    %v2054 = vxor.u32 %v1919, 2147483648
    %v2055 = vxor.u32 %v1922, 2147483648
    %v2056 = vmul.f32 %v2054, 1.442695
    %v2057 = vpow.pop %v2056
    %v2058 = vmul.f32 %v2055, 1.442695
    %v2059 = vpow.pop %v2058
    %v2060 = vadd.f32 %v2057, 1.0
    %v2061 = vadd.f32 %v2059, 1.0
    %v2062 = vrcp.pop %v2060
    %v2063 = vmul.f32 %v2060, %v2062
    %v2064 = vsub.f32 1.0, %v2063
    %v2065 = vmul.f32 %v2062, %v2064
    %v2066 = vadd.f32 %v2062, %v2065
    %vm2067 = vweird.f32 %v2060
    %vm2068 = vweird.f32 %v2062
    %vm2069 = vmor %vm2067, %vm2068
    %v2070 = vsel %vm2069, %v2062, %v2066
    %v2071 = vand.u32 2147483647, %v2060
    %vm2072 = vcmp.eq.f32.partialorder %v2071, 8.507059e+37
    %v2073 = vand.u32 %v2060, 2147483648
    %v2074 = vor.u32 1.1754944e-38, %v2073
    %v2075 = vsel %vm2072, %v2074, %v2070
    %v2076 = vmul.f32 1.0, %v2075
    %v2077 = vrcp.pop %v2061
    %v2078 = vmul.f32 %v2061, %v2077
    %v2079 = vsub.f32 1.0, %v2078
    %v2080 = vmul.f32 %v2077, %v2079
    %v2081 = vadd.f32 %v2077, %v2080
    %vm2082 = vweird.f32 %v2061
    %vm2083 = vweird.f32 %v2077
    %vm2084 = vmor %vm2082, %vm2083
    %v2085 = vsel %vm2084, %v2077, %v2081
    %v2086 = vand.u32 2147483647, %v2061
    %vm2087 = vcmp.eq.f32.partialorder %v2086, 8.507059e+37
    %v2088 = vand.u32 %v2061, 2147483648
    %v2089 = vor.u32 1.1754944e-38, %v2088
    %v2090 = vsel %vm2087, %v2089, %v2085
    %v2091 = vmul.f32 1.0, %v2090
    %v2092 = vmul.f32 %v2038, %v2011
    %v2093 = vmul.f32 %v2053, %v2014
    %v2094 = vadd.f32 %v1965, %v2092
    %v2095 = vadd.f32 %v1968, %v2093
    %v2096 = vtanh.pop %v2094
    %v2097 = vtanh.pop %v2095
    %v2098 = vsub.f32 %v1642, %v2096
    %v2099 = vsub.f32 %v1643, %v2097
    %v2100 = vmul.f32 %v2076, %v2098
    %v2101 = vmul.f32 %v2091, %v2099
    %v2102 = vadd.f32 %v2096, %v2100
    %v2103 = vadd.f32 %v2097, %v2101
    %s2104 = sadd.s32 %s144, 3
    %v2105 = vstv %s2104
    %vm2106 = vcmp.eq.s32.totalorder %v723, %v2105
    %vm2107 = vcmp.eq.s32.totalorder %v724, %v2105
    %v2108 = vsel %vm2106, 1, 0
    %v2109 = vsel %vm2107, 1, 0
    %2110 = vset.pattern.permute.xlu0 0
    %2111 = vperm.xlu0 %2110, %v2108
    %v2112 = vpop.permute.xlu0 %2111
    %2113 = vset.pattern.permute.xlu0 0
    %2114 = vperm.xlu0 %2113, %v2109
    %v2115 = vpop.permute.xlu0 %2114
    %vm2116 = vcmp.eq.s32.totalorder %v2112, 1
    %vm2117 = vcmp.eq.s32.totalorder %v2115, 1
    %v2118 = vsel %vm2116, %v2102, %v1658
    %v2119 = vsel %vm2117, %v2103, %v1659
    %s2120 = scalar_lea.vmem [#allocation4], 96
    %v2121 = vld [vmem:[%s2120] sm:$0xff]
    %v2122 = vld [vmem:[%s2120 + $0x8] sm:$0xf]
    %v2123 = vld [vmem:[%s2120 + $0xc] sm:$0xff]
    %v2124 = vld [vmem:[%s2120 + $0x14] sm:$0xf]
    %v2125 = vunpack.c.l.bf16 %v2121
    %v2126 = vunpack.c.h.bf16 %v2121
    %v2127 = vunpack.c.l.bf16 %v2122
    %v2128 = vunpack.c.l.bf16 %v2123
    %v2129 = vunpack.c.h.bf16 %v2123
    %v2130 = vunpack.c.l.bf16 %v2124
    %2131 = vmatpush.msra.mxu0 %v139
    %2132 = vmatpush.msra.mxu0 %v136
    %2133 = vmatpush.msra.mxu0 %v133
    %2134 = vmatpush.msra.mxu0 %v130
    %2135 = vmatpush.msra.mxu0 %v127
    %2136 = vmatpush.msra.mxu0 %v124
    %2137 = vmatpush.msra.mxu0 %v121
    %2138 = vmatpush.msra.mxu0 %v118
    %2139 = vmatpush.msra.mxu0 %v115
    %2140 = vmatpush.msra.mxu0 %v112
    %2141 = vmatpush.msra.mxu0 %v109
    %2142 = vmatpush.msra.mxu0 %v106
    %2143 = vmatpush.msra.mxu0 %v103
    %2144 = vmatpush.msra.mxu0 %v100
    %2145 = vmatpush.msra.mxu0 %v97
    %2146 = vmatpush.msra.mxu0 %v94
    %2147 = vmatmul.f32.gmra.mxu0 %v1830
    %v2148 = vpop.f32.mrf.mxu0
    %v2149 = vadd.f32 0.0, %v2148
    %2150 = vmatmul.f32.gmra.mxu0 %v1831
    %v2151 = vpop.f32.mrf.mxu0
    %v2152 = vadd.f32 0.0, %v2151
    %2153 = vdwg.mxu0
    %2154 = vmatpush.msra.mxu0 %v140
    %2155 = vmatpush.msra.mxu0 %v137
    %2156 = vmatpush.msra.mxu0 %v134
    %2157 = vmatpush.msra.mxu0 %v131
    %2158 = vmatpush.msra.mxu0 %v128
    %2159 = vmatpush.msra.mxu0 %v125
    %2160 = vmatpush.msra.mxu0 %v122
    %2161 = vmatpush.msra.mxu0 %v119
    %2162 = vmatpush.msra.mxu0 %v116
    %2163 = vmatpush.msra.mxu0 %v113
    %2164 = vmatpush.msra.mxu0 %v110
    %2165 = vmatpush.msra.mxu0 %v107
    %2166 = vmatpush.msra.mxu0 %v104
    %2167 = vmatpush.msra.mxu0 %v101
    %2168 = vmatpush.msra.mxu0 %v98
    %2169 = vmatpush.msra.mxu0 %v95
    %2170 = vmatmul.f32.gmra.mxu0 %v1830
    %v2171 = vpop.f32.mrf.mxu0
    %v2172 = vadd.f32 0.0, %v2171
    %2173 = vmatmul.f32.gmra.mxu0 %v1831
    %v2174 = vpop.f32.mrf.mxu0
    %v2175 = vadd.f32 0.0, %v2174
    %2176 = vdwg.mxu0
    %2177 = vmatpush.msra.mxu0 %v141
    %2178 = vmatpush.msra.mxu0 %v138
    %2179 = vmatpush.msra.mxu0 %v135
    %2180 = vmatpush.msra.mxu0 %v132
    %2181 = vmatpush.msra.mxu0 %v129
    %2182 = vmatpush.msra.mxu0 %v126
    %2183 = vmatpush.msra.mxu0 %v123
    %2184 = vmatpush.msra.mxu0 %v120
    %2185 = vmatpush.msra.mxu0 %v117
    %2186 = vmatpush.msra.mxu0 %v114
    %2187 = vmatpush.msra.mxu0 %v111
    %2188 = vmatpush.msra.mxu0 %v108
    %2189 = vmatpush.msra.mxu0 %v105
    %2190 = vmatpush.msra.mxu0 %v102
    %2191 = vmatpush.msra.mxu0 %v99
    %2192 = vmatpush.msra.mxu0 %v96
    %2193 = vmatmul.f32.gmra.mxu0 %v1830
    %v2194 = vpop.f32.mrf.mxu0
    %v2195 = vadd.f32 0.0, %v2194
    %2196 = vmatmul.f32.gmra.mxu0 %v1831
    %v2197 = vpop.f32.mrf.mxu0
    %v2198 = vadd.f32 0.0, %v2197
    %2199 = vdwg.mxu0
    %v2200 = vadd.f32 %v2125, %v2149
    %v2201 = vadd.f32 %v2128, %v2152
    %v2202 = vxor.u32 %v2200, 2147483648
    %v2203 = vxor.u32 %v2201, 2147483648
    %v2204 = vmul.f32 %v2202, 1.442695
    %v2205 = vpow.pop %v2204
    %v2206 = vmul.f32 %v2203, 1.442695
    %v2207 = vpow.pop %v2206
    %v2208 = vadd.f32 %v2205, 1.0
    %v2209 = vadd.f32 %v2207, 1.0
    %v2210 = vrcp.pop %v2208
    %v2211 = vmul.f32 %v2208, %v2210
    %v2212 = vsub.f32 1.0, %v2211
    %v2213 = vmul.f32 %v2210, %v2212
    %v2214 = vadd.f32 %v2210, %v2213
    %vm2215 = vweird.f32 %v2208
    %vm2216 = vweird.f32 %v2210
    %vm2217 = vmor %vm2215, %vm2216
    %v2218 = vsel %vm2217, %v2210, %v2214
    %v2219 = vand.u32 2147483647, %v2208
    %vm2220 = vcmp.eq.f32.partialorder %v2219, 8.507059e+37
    %v2221 = vand.u32 %v2208, 2147483648
    %v2222 = vor.u32 1.1754944e-38, %v2221
    %v2223 = vsel %vm2220, %v2222, %v2218
    %v2224 = vmul.f32 1.0, %v2223
    %v2225 = vrcp.pop %v2209
    %v2226 = vmul.f32 %v2209, %v2225
    %v2227 = vsub.f32 1.0, %v2226
    %v2228 = vmul.f32 %v2225, %v2227
    %v2229 = vadd.f32 %v2225, %v2228
    %vm2230 = vweird.f32 %v2209
    %vm2231 = vweird.f32 %v2225
    %vm2232 = vmor %vm2230, %vm2231
    %v2233 = vsel %vm2232, %v2225, %v2229
    %v2234 = vand.u32 2147483647, %v2209
    %vm2235 = vcmp.eq.f32.partialorder %v2234, 8.507059e+37
    %v2236 = vand.u32 %v2209, 2147483648
    %v2237 = vor.u32 1.1754944e-38, %v2236
    %v2238 = vsel %vm2235, %v2237, %v2233
    %v2239 = vmul.f32 1.0, %v2238
    %v2240 = vadd.f32 %v2126, %v2172
    %v2241 = vadd.f32 %v2129, %v2175
    %v2242 = vxor.u32 %v2240, 2147483648
    %v2243 = vxor.u32 %v2241, 2147483648
    %v2244 = vmul.f32 %v2242, 1.442695
    %v2245 = vpow.pop %v2244
    %v2246 = vmul.f32 %v2243, 1.442695
    %v2247 = vpow.pop %v2246
    %v2248 = vadd.f32 %v2245, 1.0
    %v2249 = vadd.f32 %v2247, 1.0
    %v2250 = vrcp.pop %v2248
    %v2251 = vmul.f32 %v2248, %v2250
    %v2252 = vsub.f32 1.0, %v2251
    %v2253 = vmul.f32 %v2250, %v2252
    %v2254 = vadd.f32 %v2250, %v2253
    %vm2255 = vweird.f32 %v2248
    %vm2256 = vweird.f32 %v2250
    %vm2257 = vmor %vm2255, %vm2256
    %v2258 = vsel %vm2257, %v2250, %v2254
    %v2259 = vand.u32 2147483647, %v2248
    %vm2260 = vcmp.eq.f32.partialorder %v2259, 8.507059e+37
    %v2261 = vand.u32 %v2248, 2147483648
    %v2262 = vor.u32 1.1754944e-38, %v2261
    %v2263 = vsel %vm2260, %v2262, %v2258
    %v2264 = vmul.f32 1.0, %v2263
    %v2265 = vrcp.pop %v2249
    %v2266 = vmul.f32 %v2249, %v2265
    %v2267 = vsub.f32 1.0, %v2266
    %v2268 = vmul.f32 %v2265, %v2267
    %v2269 = vadd.f32 %v2265, %v2268
    %vm2270 = vweird.f32 %v2249
    %vm2271 = vweird.f32 %v2265
    %vm2272 = vmor %vm2270, %vm2271
    %v2273 = vsel %vm2272, %v2265, %v2269
    %v2274 = vand.u32 2147483647, %v2249
    %vm2275 = vcmp.eq.f32.partialorder %v2274, 8.507059e+37
    %v2276 = vand.u32 %v2249, 2147483648
    %v2277 = vor.u32 1.1754944e-38, %v2276
    %v2278 = vsel %vm2275, %v2277, %v2273
    %v2279 = vmul.f32 1.0, %v2278
    %v2280 = vmul.f32 %v2224, %v2195
    %v2281 = vmul.f32 %v2239, %v2198
    %v2282 = vadd.f32 %v2127, %v2280
    %v2283 = vadd.f32 %v2130, %v2281
    %v2284 = vtanh.pop %v2282
    %v2285 = vtanh.pop %v2283
    %v2286 = vsub.f32 %v1830, %v2284
    %v2287 = vsub.f32 %v1831, %v2285
    %v2288 = vmul.f32 %v2264, %v2286
    %v2289 = vmul.f32 %v2279, %v2287
    %v2290 = vadd.f32 %v2284, %v2288
    %v2291 = vadd.f32 %v2285, %v2289
    %2292 = vmatpush.msra.mxu0 %v383
    %2293 = vmatpush.msra.mxu0 %v379
    %2294 = vmatpush.msra.mxu0 %v375
    %2295 = vmatpush.msra.mxu0 %v371
    %2296 = vmatpush.msra.mxu0 %v367
    %2297 = vmatpush.msra.mxu0 %v363
    %2298 = vmatpush.msra.mxu0 %v359
    %2299 = vmatpush.msra.mxu0 %v355
    %2300 = vmatpush.msra.mxu0 %v351
    %2301 = vmatpush.msra.mxu0 %v347
    %2302 = vmatpush.msra.mxu0 %v343
    %2303 = vmatpush.msra.mxu0 %v339
    %2304 = vmatpush.msra.mxu0 %v335
    %2305 = vmatpush.msra.mxu0 %v331
    %2306 = vmatpush.msra.mxu0 %v327
    %2307 = vmatpush.msra.mxu0 %v323
    %2308 = vmatmul.f32.gmra.mxu0 %v2290
    %v2309 = vpop.f32.mrf.mxu0
    %v2310 = vadd.f32 0.0, %v2309
    %2311 = vmatmul.f32.gmra.mxu0 %v2291
    %v2312 = vpop.f32.mrf.mxu0
    %v2313 = vadd.f32 0.0, %v2312
    %2314 = vdwg.mxu0
    %2315 = vmatpush.msra.mxu0 %v447
    %2316 = vmatpush.msra.mxu0 %v443
    %2317 = vmatpush.msra.mxu0 %v439
    %2318 = vmatpush.msra.mxu0 %v435
    %2319 = vmatpush.msra.mxu0 %v431
    %2320 = vmatpush.msra.mxu0 %v427
    %2321 = vmatpush.msra.mxu0 %v423
    %2322 = vmatpush.msra.mxu0 %v419
    %2323 = vmatpush.msra.mxu0 %v415
    %2324 = vmatpush.msra.mxu0 %v411
    %2325 = vmatpush.msra.mxu0 %v407
    %2326 = vmatpush.msra.mxu0 %v403
    %2327 = vmatpush.msra.mxu0 %v399
    %2328 = vmatpush.msra.mxu0 %v395
    %2329 = vmatpush.msra.mxu0 %v391
    %2330 = vmatpush.msra.mxu0 %v387
    %2331 = vmatmul.f32.gmra.mxu0 %v2102
    %v2332 = vpop.f32.mrf.mxu0
    %v2333 = vadd.f32 %v2310, %v2332
    %2334 = vmatmul.f32.gmra.mxu0 %v2103
    %v2335 = vpop.f32.mrf.mxu0
    %v2336 = vadd.f32 %v2313, %v2335
    %2337 = vdwg.mxu0
    %2338 = vmatpush.msra.mxu0 %v384
    %2339 = vmatpush.msra.mxu0 %v380
    %2340 = vmatpush.msra.mxu0 %v376
    %2341 = vmatpush.msra.mxu0 %v372
    %2342 = vmatpush.msra.mxu0 %v368
    %2343 = vmatpush.msra.mxu0 %v364
    %2344 = vmatpush.msra.mxu0 %v360
    %2345 = vmatpush.msra.mxu0 %v356
    %2346 = vmatpush.msra.mxu0 %v352
    %2347 = vmatpush.msra.mxu0 %v348
    %2348 = vmatpush.msra.mxu0 %v344
    %2349 = vmatpush.msra.mxu0 %v340
    %2350 = vmatpush.msra.mxu0 %v336
    %2351 = vmatpush.msra.mxu0 %v332
    %2352 = vmatpush.msra.mxu0 %v328
    %2353 = vmatpush.msra.mxu0 %v324
    %2354 = vmatmul.f32.gmra.mxu0 %v2290
    %v2355 = vpop.f32.mrf.mxu0
    %v2356 = vadd.f32 0.0, %v2355
    %2357 = vmatmul.f32.gmra.mxu0 %v2291
    %v2358 = vpop.f32.mrf.mxu0
    %v2359 = vadd.f32 0.0, %v2358
    %2360 = vdwg.mxu0
    %2361 = vmatpush.msra.mxu0 %v448
    %2362 = vmatpush.msra.mxu0 %v444
    %2363 = vmatpush.msra.mxu0 %v440
    %2364 = vmatpush.msra.mxu0 %v436
    %2365 = vmatpush.msra.mxu0 %v432
    %2366 = vmatpush.msra.mxu0 %v428
    %2367 = vmatpush.msra.mxu0 %v424
    %2368 = vmatpush.msra.mxu0 %v420
    %2369 = vmatpush.msra.mxu0 %v416
    %2370 = vmatpush.msra.mxu0 %v412
    %2371 = vmatpush.msra.mxu0 %v408
    %2372 = vmatpush.msra.mxu0 %v404
    %2373 = vmatpush.msra.mxu0 %v400
    %2374 = vmatpush.msra.mxu0 %v396
    %2375 = vmatpush.msra.mxu0 %v392
    %2376 = vmatpush.msra.mxu0 %v388
    %2377 = vmatmul.f32.gmra.mxu0 %v2102
    %v2378 = vpop.f32.mrf.mxu0
    %v2379 = vadd.f32 %v2356, %v2378
    %2380 = vmatmul.f32.gmra.mxu0 %v2103
    %v2381 = vpop.f32.mrf.mxu0
    %v2382 = vadd.f32 %v2359, %v2381
    %2383 = vdwg.mxu0
    %2384 = vmatpush.msra.mxu0 %v385
    %2385 = vmatpush.msra.mxu0 %v381
    %2386 = vmatpush.msra.mxu0 %v377
    %2387 = vmatpush.msra.mxu0 %v373
    %2388 = vmatpush.msra.mxu0 %v369
    %2389 = vmatpush.msra.mxu0 %v365
    %2390 = vmatpush.msra.mxu0 %v361
    %2391 = vmatpush.msra.mxu0 %v357
    %2392 = vmatpush.msra.mxu0 %v353
    %2393 = vmatpush.msra.mxu0 %v349
    %2394 = vmatpush.msra.mxu0 %v345
    %2395 = vmatpush.msra.mxu0 %v341
    %2396 = vmatpush.msra.mxu0 %v337
    %2397 = vmatpush.msra.mxu0 %v333
    %2398 = vmatpush.msra.mxu0 %v329
    %2399 = vmatpush.msra.mxu0 %v325
    %2400 = vmatmul.f32.gmra.mxu0 %v2290
    %v2401 = vpop.f32.mrf.mxu0
    %v2402 = vadd.f32 0.0, %v2401
    %2403 = vmatmul.f32.gmra.mxu0 %v2291
    %v2404 = vpop.f32.mrf.mxu0
    %v2405 = vadd.f32 0.0, %v2404
    %2406 = vdwg.mxu0
    %2407 = vmatpush.msra.mxu0 %v449
    %2408 = vmatpush.msra.mxu0 %v445
    %2409 = vmatpush.msra.mxu0 %v441
    %2410 = vmatpush.msra.mxu0 %v437
    %2411 = vmatpush.msra.mxu0 %v433
    %2412 = vmatpush.msra.mxu0 %v429
    %2413 = vmatpush.msra.mxu0 %v425
    %2414 = vmatpush.msra.mxu0 %v421
    %2415 = vmatpush.msra.mxu0 %v417
    %2416 = vmatpush.msra.mxu0 %v413
    %2417 = vmatpush.msra.mxu0 %v409
    %2418 = vmatpush.msra.mxu0 %v405
    %2419 = vmatpush.msra.mxu0 %v401
    %2420 = vmatpush.msra.mxu0 %v397
    %2421 = vmatpush.msra.mxu0 %v393
    %2422 = vmatpush.msra.mxu0 %v389
    %2423 = vmatmul.f32.gmra.mxu0 %v2102
    %v2424 = vpop.f32.mrf.mxu0
    %v2425 = vadd.f32 %v2402, %v2424
    %2426 = vmatmul.f32.gmra.mxu0 %v2103
    %v2427 = vpop.f32.mrf.mxu0
    %v2428 = vadd.f32 %v2405, %v2427
    %2429 = vdwg.mxu0
    %2430 = vmatpush.msra.mxu0 %v386
    %2431 = vmatpush.msra.mxu0 %v382
    %2432 = vmatpush.msra.mxu0 %v378
    %2433 = vmatpush.msra.mxu0 %v374
    %2434 = vmatpush.msra.mxu0 %v370
    %2435 = vmatpush.msra.mxu0 %v366
    %2436 = vmatpush.msra.mxu0 %v362
    %2437 = vmatpush.msra.mxu0 %v358
    %2438 = vmatpush.msra.mxu0 %v354
    %2439 = vmatpush.msra.mxu0 %v350
    %2440 = vmatpush.msra.mxu0 %v346
    %2441 = vmatpush.msra.mxu0 %v342
    %2442 = vmatpush.msra.mxu0 %v338
    %2443 = vmatpush.msra.mxu0 %v334
    %2444 = vmatpush.msra.mxu0 %v330
    %2445 = vmatpush.msra.mxu0 %v326
    %2446 = vmatmul.f32.gmra.mxu0 %v2290
    %v2447 = vpop.f32.mrf.mxu0
    %v2448 = vadd.f32 0.0, %v2447
    %2449 = vmatmul.f32.gmra.mxu0 %v2291
    %v2450 = vpop.f32.mrf.mxu0
    %v2451 = vadd.f32 0.0, %v2450
    %2452 = vdwg.mxu0
    %2453 = vmatpush.msra.mxu0 %v450
    %2454 = vmatpush.msra.mxu0 %v446
    %2455 = vmatpush.msra.mxu0 %v442
    %2456 = vmatpush.msra.mxu0 %v438
    %2457 = vmatpush.msra.mxu0 %v434
    %2458 = vmatpush.msra.mxu0 %v430
    %2459 = vmatpush.msra.mxu0 %v426
    %2460 = vmatpush.msra.mxu0 %v422
    %2461 = vmatpush.msra.mxu0 %v418
    %2462 = vmatpush.msra.mxu0 %v414
    %2463 = vmatpush.msra.mxu0 %v410
    %2464 = vmatpush.msra.mxu0 %v406
    %2465 = vmatpush.msra.mxu0 %v402
    %2466 = vmatpush.msra.mxu0 %v398
    %2467 = vmatpush.msra.mxu0 %v394
    %2468 = vmatpush.msra.mxu0 %v390
    %2469 = vmatmul.f32.gmra.mxu0 %v2102
    %v2470 = vpop.f32.mrf.mxu0
    %v2471 = vadd.f32 %v2448, %v2470
    %2472 = vmatmul.f32.gmra.mxu0 %v2103
    %v2473 = vpop.f32.mrf.mxu0
    %v2474 = vadd.f32 %v2451, %v2473
    %2475 = vdwg.mxu0
    %v2476 = vxor.u32 %v2333, 2147483648
    %v2477 = vxor.u32 %v2336, 2147483648
    %v2478 = vmul.f32 %v2476, 1.442695
    %v2479 = vpow.pop %v2478
    %v2480 = vmul.f32 %v2477, 1.442695
    %v2481 = vpow.pop %v2480
    %v2482 = vadd.f32 %v2479, 1.0
    %v2483 = vadd.f32 %v2481, 1.0
    %v2484 = vrcp.pop %v2482
    %v2485 = vmul.f32 %v2482, %v2484
    %v2486 = vsub.f32 1.0, %v2485
    %v2487 = vmul.f32 %v2484, %v2486
    %v2488 = vadd.f32 %v2484, %v2487
    %vm2489 = vweird.f32 %v2482
    %vm2490 = vweird.f32 %v2484
    %vm2491 = vmor %vm2489, %vm2490
    %v2492 = vsel %vm2491, %v2484, %v2488
    %v2493 = vand.u32 2147483647, %v2482
    %vm2494 = vcmp.eq.f32.partialorder %v2493, 8.507059e+37
    %v2495 = vand.u32 %v2482, 2147483648
    %v2496 = vor.u32 1.1754944e-38, %v2495
    %v2497 = vsel %vm2494, %v2496, %v2492
    %v2498 = vmul.f32 1.0, %v2497
    %v2499 = vrcp.pop %v2483
    %v2500 = vmul.f32 %v2483, %v2499
    %v2501 = vsub.f32 1.0, %v2500
    %v2502 = vmul.f32 %v2499, %v2501
    %v2503 = vadd.f32 %v2499, %v2502
    %vm2504 = vweird.f32 %v2483
    %vm2505 = vweird.f32 %v2499
    %vm2506 = vmor %vm2504, %vm2505
    %v2507 = vsel %vm2506, %v2499, %v2503
    %v2508 = vand.u32 2147483647, %v2483
    %vm2509 = vcmp.eq.f32.partialorder %v2508, 8.507059e+37
    %v2510 = vand.u32 %v2483, 2147483648
    %v2511 = vor.u32 1.1754944e-38, %v2510
    %v2512 = vsel %vm2509, %v2511, %v2507
    %v2513 = vmul.f32 1.0, %v2512
    %v2514 = vxor.u32 %v2379, 2147483648
    %v2515 = vxor.u32 %v2382, 2147483648
    %v2516 = vmul.f32 %v2514, 1.442695
    %v2517 = vpow.pop %v2516
    %v2518 = vmul.f32 %v2515, 1.442695
    %v2519 = vpow.pop %v2518
    %v2520 = vadd.f32 %v2517, 1.0
    %v2521 = vadd.f32 %v2519, 1.0
    %v2522 = vrcp.pop %v2520
    %v2523 = vmul.f32 %v2520, %v2522
    %v2524 = vsub.f32 1.0, %v2523
    %v2525 = vmul.f32 %v2522, %v2524
    %v2526 = vadd.f32 %v2522, %v2525
    %vm2527 = vweird.f32 %v2520
    %vm2528 = vweird.f32 %v2522
    %vm2529 = vmor %vm2527, %vm2528
    %v2530 = vsel %vm2529, %v2522, %v2526
    %v2531 = vand.u32 2147483647, %v2520
    %vm2532 = vcmp.eq.f32.partialorder %v2531, 8.507059e+37
    %v2533 = vand.u32 %v2520, 2147483648
    %v2534 = vor.u32 1.1754944e-38, %v2533
    %v2535 = vsel %vm2532, %v2534, %v2530
    %v2536 = vmul.f32 1.0, %v2535
    %v2537 = vrcp.pop %v2521
    %v2538 = vmul.f32 %v2521, %v2537
    %v2539 = vsub.f32 1.0, %v2538
    %v2540 = vmul.f32 %v2537, %v2539
    %v2541 = vadd.f32 %v2537, %v2540
    %vm2542 = vweird.f32 %v2521
    %vm2543 = vweird.f32 %v2537
    %vm2544 = vmor %vm2542, %vm2543
    %v2545 = vsel %vm2544, %v2537, %v2541
    %v2546 = vand.u32 2147483647, %v2521
    %vm2547 = vcmp.eq.f32.partialorder %v2546, 8.507059e+37
    %v2548 = vand.u32 %v2521, 2147483648
    %v2549 = vor.u32 1.1754944e-38, %v2548
    %v2550 = vsel %vm2547, %v2549, %v2545
    %v2551 = vmul.f32 1.0, %v2550
    %v2552 = vmul.f32 %v2498, %v2471
    %v2553 = vmul.f32 %v2513, %v2474
    %v2554 = vadd.f32 %v2425, %v2552
    %v2555 = vadd.f32 %v2428, %v2553
    %v2556 = vtanh.pop %v2554
    %v2557 = vtanh.pop %v2555
    %v2558 = vsub.f32 %v2102, %v2556
    %v2559 = vsub.f32 %v2103, %v2557
    %v2560 = vmul.f32 %v2536, %v2558
    %v2561 = vmul.f32 %v2551, %v2559
    %v2562 = vadd.f32 %v2556, %v2560
    %v2563 = vadd.f32 %v2557, %v2561
    %s2564 = sadd.s32 %s144, 4
    %v2565 = vstv %s2564
    %vm2566 = vcmp.eq.s32.totalorder %v723, %v2565
    %vm2567 = vcmp.eq.s32.totalorder %v724, %v2565
    %v2568 = vsel %vm2566, 1, 0
    %v2569 = vsel %vm2567, 1, 0
    %2570 = vset.pattern.permute.xlu0 0
    %2571 = vperm.xlu0 %2570, %v2568
    %v2572 = vpop.permute.xlu0 %2571
    %2573 = vset.pattern.permute.xlu0 0
    %2574 = vperm.xlu0 %2573, %v2569
    %v2575 = vpop.permute.xlu0 %2574
    %vm2576 = vcmp.eq.s32.totalorder %v2572, 1
    %vm2577 = vcmp.eq.s32.totalorder %v2575, 1
    %v2578 = vsel %vm2576, %v2562, %v2118
    %v2579 = vsel %vm2577, %v2563, %v2119
    %s2580 = scalar_lea.vmem [#allocation4], 120
    %v2581 = vld [vmem:[%s2580] sm:$0xff]
    %v2582 = vld [vmem:[%s2580 + $0x8] sm:$0xf]
    %v2583 = vld [vmem:[%s2580 + $0xc] sm:$0xff]
    %v2584 = vld [vmem:[%s2580 + $0x14] sm:$0xf]
    %v2585 = vunpack.c.l.bf16 %v2581
    %v2586 = vunpack.c.h.bf16 %v2581
    %v2587 = vunpack.c.l.bf16 %v2582
    %v2588 = vunpack.c.l.bf16 %v2583
    %v2589 = vunpack.c.h.bf16 %v2583
    %v2590 = vunpack.c.l.bf16 %v2584
    %2591 = vmatpush.msra.mxu0 %v139
    %2592 = vmatpush.msra.mxu0 %v136
    %2593 = vmatpush.msra.mxu0 %v133
    %2594 = vmatpush.msra.mxu0 %v130
    %2595 = vmatpush.msra.mxu0 %v127
    %2596 = vmatpush.msra.mxu0 %v124
    %2597 = vmatpush.msra.mxu0 %v121
    %2598 = vmatpush.msra.mxu0 %v118
    %2599 = vmatpush.msra.mxu0 %v115
    %2600 = vmatpush.msra.mxu0 %v112
    %2601 = vmatpush.msra.mxu0 %v109
    %2602 = vmatpush.msra.mxu0 %v106
    %2603 = vmatpush.msra.mxu0 %v103
    %2604 = vmatpush.msra.mxu0 %v100
    %2605 = vmatpush.msra.mxu0 %v97
    %2606 = vmatpush.msra.mxu0 %v94
    %2607 = vmatmul.f32.gmra.mxu0 %v2290
    %v2608 = vpop.f32.mrf.mxu0
    %v2609 = vadd.f32 0.0, %v2608
    %2610 = vmatmul.f32.gmra.mxu0 %v2291
    %v2611 = vpop.f32.mrf.mxu0
    %v2612 = vadd.f32 0.0, %v2611
    %2613 = vdwg.mxu0
    %2614 = vmatpush.msra.mxu0 %v140
    %2615 = vmatpush.msra.mxu0 %v137
    %2616 = vmatpush.msra.mxu0 %v134
    %2617 = vmatpush.msra.mxu0 %v131
    %2618 = vmatpush.msra.mxu0 %v128
    %2619 = vmatpush.msra.mxu0 %v125
    %2620 = vmatpush.msra.mxu0 %v122
    %2621 = vmatpush.msra.mxu0 %v119
    %2622 = vmatpush.msra.mxu0 %v116
    %2623 = vmatpush.msra.mxu0 %v113
    %2624 = vmatpush.msra.mxu0 %v110
    %2625 = vmatpush.msra.mxu0 %v107
    %2626 = vmatpush.msra.mxu0 %v104
    %2627 = vmatpush.msra.mxu0 %v101
    %2628 = vmatpush.msra.mxu0 %v98
    %2629 = vmatpush.msra.mxu0 %v95
    %2630 = vmatmul.f32.gmra.mxu0 %v2290
    %v2631 = vpop.f32.mrf.mxu0
    %v2632 = vadd.f32 0.0, %v2631
    %2633 = vmatmul.f32.gmra.mxu0 %v2291
    %v2634 = vpop.f32.mrf.mxu0
    %v2635 = vadd.f32 0.0, %v2634
    %2636 = vdwg.mxu0
    %2637 = vmatpush.msra.mxu0 %v141
    %2638 = vmatpush.msra.mxu0 %v138
    %2639 = vmatpush.msra.mxu0 %v135
    %2640 = vmatpush.msra.mxu0 %v132
    %2641 = vmatpush.msra.mxu0 %v129
    %2642 = vmatpush.msra.mxu0 %v126
    %2643 = vmatpush.msra.mxu0 %v123
    %2644 = vmatpush.msra.mxu0 %v120
    %2645 = vmatpush.msra.mxu0 %v117
    %2646 = vmatpush.msra.mxu0 %v114
    %2647 = vmatpush.msra.mxu0 %v111
    %2648 = vmatpush.msra.mxu0 %v108
    %2649 = vmatpush.msra.mxu0 %v105
    %2650 = vmatpush.msra.mxu0 %v102
    %2651 = vmatpush.msra.mxu0 %v99
    %2652 = vmatpush.msra.mxu0 %v96
    %2653 = vmatmul.f32.gmra.mxu0 %v2290
    %v2654 = vpop.f32.mrf.mxu0
    %v2655 = vadd.f32 0.0, %v2654
    %2656 = vmatmul.f32.gmra.mxu0 %v2291
    %v2657 = vpop.f32.mrf.mxu0
    %v2658 = vadd.f32 0.0, %v2657
    %2659 = vdwg.mxu0
    %v2660 = vadd.f32 %v2585, %v2609
    %v2661 = vadd.f32 %v2588, %v2612
    %v2662 = vxor.u32 %v2660, 2147483648
    %v2663 = vxor.u32 %v2661, 2147483648
    %v2664 = vmul.f32 %v2662, 1.442695
    %v2665 = vpow.pop %v2664
    %v2666 = vmul.f32 %v2663, 1.442695
    %v2667 = vpow.pop %v2666
    %v2668 = vadd.f32 %v2665, 1.0
    %v2669 = vadd.f32 %v2667, 1.0
    %v2670 = vrcp.pop %v2668
    %v2671 = vmul.f32 %v2668, %v2670
    %v2672 = vsub.f32 1.0, %v2671
    %v2673 = vmul.f32 %v2670, %v2672
    %v2674 = vadd.f32 %v2670, %v2673
    %vm2675 = vweird.f32 %v2668
    %vm2676 = vweird.f32 %v2670
    %vm2677 = vmor %vm2675, %vm2676
    %v2678 = vsel %vm2677, %v2670, %v2674
    %v2679 = vand.u32 2147483647, %v2668
    %vm2680 = vcmp.eq.f32.partialorder %v2679, 8.507059e+37
    %v2681 = vand.u32 %v2668, 2147483648
    %v2682 = vor.u32 1.1754944e-38, %v2681
    %v2683 = vsel %vm2680, %v2682, %v2678
    %v2684 = vmul.f32 1.0, %v2683
    %v2685 = vrcp.pop %v2669
    %v2686 = vmul.f32 %v2669, %v2685
    %v2687 = vsub.f32 1.0, %v2686
    %v2688 = vmul.f32 %v2685, %v2687
    %v2689 = vadd.f32 %v2685, %v2688
    %vm2690 = vweird.f32 %v2669
    %vm2691 = vweird.f32 %v2685
    %vm2692 = vmor %vm2690, %vm2691
    %v2693 = vsel %vm2692, %v2685, %v2689
    %v2694 = vand.u32 2147483647, %v2669
    %vm2695 = vcmp.eq.f32.partialorder %v2694, 8.507059e+37
    %v2696 = vand.u32 %v2669, 2147483648
    %v2697 = vor.u32 1.1754944e-38, %v2696
    %v2698 = vsel %vm2695, %v2697, %v2693
    %v2699 = vmul.f32 1.0, %v2698
    %v2700 = vadd.f32 %v2586, %v2632
    %v2701 = vadd.f32 %v2589, %v2635
    %v2702 = vxor.u32 %v2700, 2147483648
    %v2703 = vxor.u32 %v2701, 2147483648
    %v2704 = vmul.f32 %v2702, 1.442695
    %v2705 = vpow.pop %v2704
    %v2706 = vmul.f32 %v2703, 1.442695
    %v2707 = vpow.pop %v2706
    %v2708 = vadd.f32 %v2705, 1.0
    %v2709 = vadd.f32 %v2707, 1.0
    %v2710 = vrcp.pop %v2708
    %v2711 = vmul.f32 %v2708, %v2710
    %v2712 = vsub.f32 1.0, %v2711
    %v2713 = vmul.f32 %v2710, %v2712
    %v2714 = vadd.f32 %v2710, %v2713
    %vm2715 = vweird.f32 %v2708
    %vm2716 = vweird.f32 %v2710
    %vm2717 = vmor %vm2715, %vm2716
    %v2718 = vsel %vm2717, %v2710, %v2714
    %v2719 = vand.u32 2147483647, %v2708
    %vm2720 = vcmp.eq.f32.partialorder %v2719, 8.507059e+37
    %v2721 = vand.u32 %v2708, 2147483648
    %v2722 = vor.u32 1.1754944e-38, %v2721
    %v2723 = vsel %vm2720, %v2722, %v2718
    %v2724 = vmul.f32 1.0, %v2723
    %v2725 = vrcp.pop %v2709
    %v2726 = vmul.f32 %v2709, %v2725
    %v2727 = vsub.f32 1.0, %v2726
    %v2728 = vmul.f32 %v2725, %v2727
    %v2729 = vadd.f32 %v2725, %v2728
    %vm2730 = vweird.f32 %v2709
    %vm2731 = vweird.f32 %v2725
    %vm2732 = vmor %vm2730, %vm2731
    %v2733 = vsel %vm2732, %v2725, %v2729
    %v2734 = vand.u32 2147483647, %v2709
    %vm2735 = vcmp.eq.f32.partialorder %v2734, 8.507059e+37
    %v2736 = vand.u32 %v2709, 2147483648
    %v2737 = vor.u32 1.1754944e-38, %v2736
    %v2738 = vsel %vm2735, %v2737, %v2733
    %v2739 = vmul.f32 1.0, %v2738
    %v2740 = vmul.f32 %v2684, %v2655
    %v2741 = vmul.f32 %v2699, %v2658
    %v2742 = vadd.f32 %v2587, %v2740
    %v2743 = vadd.f32 %v2590, %v2741
    %v2744 = vtanh.pop %v2742
    %v2745 = vtanh.pop %v2743
    %v2746 = vsub.f32 %v2290, %v2744
    %v2747 = vsub.f32 %v2291, %v2745
    %v2748 = vmul.f32 %v2724, %v2746
    %v2749 = vmul.f32 %v2739, %v2747
    %v2750 = vadd.f32 %v2744, %v2748
    %v2751 = vadd.f32 %v2745, %v2749
    %2752 = vmatpush.msra.mxu0 %v383
    %2753 = vmatpush.msra.mxu0 %v379
    %2754 = vmatpush.msra.mxu0 %v375
    %2755 = vmatpush.msra.mxu0 %v371
    %2756 = vmatpush.msra.mxu0 %v367
    %2757 = vmatpush.msra.mxu0 %v363
    %2758 = vmatpush.msra.mxu0 %v359
    %2759 = vmatpush.msra.mxu0 %v355
    %2760 = vmatpush.msra.mxu0 %v351
    %2761 = vmatpush.msra.mxu0 %v347
    %2762 = vmatpush.msra.mxu0 %v343
    %2763 = vmatpush.msra.mxu0 %v339
    %2764 = vmatpush.msra.mxu0 %v335
    %2765 = vmatpush.msra.mxu0 %v331
    %2766 = vmatpush.msra.mxu0 %v327
    %2767 = vmatpush.msra.mxu0 %v323
    %2768 = vmatmul.f32.gmra.mxu0 %v2750
    %v2769 = vpop.f32.mrf.mxu0
    %v2770 = vadd.f32 0.0, %v2769
    %2771 = vmatmul.f32.gmra.mxu0 %v2751
    %v2772 = vpop.f32.mrf.mxu0
    %v2773 = vadd.f32 0.0, %v2772
    %2774 = vdwg.mxu0
    %2775 = vmatpush.msra.mxu0 %v447
    %2776 = vmatpush.msra.mxu0 %v443
    %2777 = vmatpush.msra.mxu0 %v439
    %2778 = vmatpush.msra.mxu0 %v435
    %2779 = vmatpush.msra.mxu0 %v431
    %2780 = vmatpush.msra.mxu0 %v427
    %2781 = vmatpush.msra.mxu0 %v423
    %2782 = vmatpush.msra.mxu0 %v419
    %2783 = vmatpush.msra.mxu0 %v415
    %2784 = vmatpush.msra.mxu0 %v411
    %2785 = vmatpush.msra.mxu0 %v407
    %2786 = vmatpush.msra.mxu0 %v403
    %2787 = vmatpush.msra.mxu0 %v399
    %2788 = vmatpush.msra.mxu0 %v395
    %2789 = vmatpush.msra.mxu0 %v391
    %2790 = vmatpush.msra.mxu0 %v387
    %2791 = vmatmul.f32.gmra.mxu0 %v2562
    %v2792 = vpop.f32.mrf.mxu0
    %v2793 = vadd.f32 %v2770, %v2792
    %2794 = vmatmul.f32.gmra.mxu0 %v2563
    %v2795 = vpop.f32.mrf.mxu0
    %v2796 = vadd.f32 %v2773, %v2795
    %2797 = vdwg.mxu0
    %2798 = vmatpush.msra.mxu0 %v384
    %2799 = vmatpush.msra.mxu0 %v380
    %2800 = vmatpush.msra.mxu0 %v376
    %2801 = vmatpush.msra.mxu0 %v372
    %2802 = vmatpush.msra.mxu0 %v368
    %2803 = vmatpush.msra.mxu0 %v364
    %2804 = vmatpush.msra.mxu0 %v360
    %2805 = vmatpush.msra.mxu0 %v356
    %2806 = vmatpush.msra.mxu0 %v352
    %2807 = vmatpush.msra.mxu0 %v348
    %2808 = vmatpush.msra.mxu0 %v344
    %2809 = vmatpush.msra.mxu0 %v340
    %2810 = vmatpush.msra.mxu0 %v336
    %2811 = vmatpush.msra.mxu0 %v332
    %2812 = vmatpush.msra.mxu0 %v328
    %2813 = vmatpush.msra.mxu0 %v324
    %2814 = vmatmul.f32.gmra.mxu0 %v2750
    %v2815 = vpop.f32.mrf.mxu0
    %v2816 = vadd.f32 0.0, %v2815
    %2817 = vmatmul.f32.gmra.mxu0 %v2751
    %v2818 = vpop.f32.mrf.mxu0
    %v2819 = vadd.f32 0.0, %v2818
    %2820 = vdwg.mxu0
    %2821 = vmatpush.msra.mxu0 %v448
    %2822 = vmatpush.msra.mxu0 %v444
    %2823 = vmatpush.msra.mxu0 %v440
    %2824 = vmatpush.msra.mxu0 %v436
    %2825 = vmatpush.msra.mxu0 %v432
    %2826 = vmatpush.msra.mxu0 %v428
    %2827 = vmatpush.msra.mxu0 %v424
    %2828 = vmatpush.msra.mxu0 %v420
    %2829 = vmatpush.msra.mxu0 %v416
    %2830 = vmatpush.msra.mxu0 %v412
    %2831 = vmatpush.msra.mxu0 %v408
    %2832 = vmatpush.msra.mxu0 %v404
    %2833 = vmatpush.msra.mxu0 %v400
    %2834 = vmatpush.msra.mxu0 %v396
    %2835 = vmatpush.msra.mxu0 %v392
    %2836 = vmatpush.msra.mxu0 %v388
    %2837 = vmatmul.f32.gmra.mxu0 %v2562
    %v2838 = vpop.f32.mrf.mxu0
    %v2839 = vadd.f32 %v2816, %v2838
    %2840 = vmatmul.f32.gmra.mxu0 %v2563
    %v2841 = vpop.f32.mrf.mxu0
    %v2842 = vadd.f32 %v2819, %v2841
    %2843 = vdwg.mxu0
    %2844 = vmatpush.msra.mxu0 %v385
    %2845 = vmatpush.msra.mxu0 %v381
    %2846 = vmatpush.msra.mxu0 %v377
    %2847 = vmatpush.msra.mxu0 %v373
    %2848 = vmatpush.msra.mxu0 %v369
    %2849 = vmatpush.msra.mxu0 %v365
    %2850 = vmatpush.msra.mxu0 %v361
    %2851 = vmatpush.msra.mxu0 %v357
    %2852 = vmatpush.msra.mxu0 %v353
    %2853 = vmatpush.msra.mxu0 %v349
    %2854 = vmatpush.msra.mxu0 %v345
    %2855 = vmatpush.msra.mxu0 %v341
    %2856 = vmatpush.msra.mxu0 %v337
    %2857 = vmatpush.msra.mxu0 %v333
    %2858 = vmatpush.msra.mxu0 %v329
    %2859 = vmatpush.msra.mxu0 %v325
    %2860 = vmatmul.f32.gmra.mxu0 %v2750
    %v2861 = vpop.f32.mrf.mxu0
    %v2862 = vadd.f32 0.0, %v2861
    %2863 = vmatmul.f32.gmra.mxu0 %v2751
    %v2864 = vpop.f32.mrf.mxu0
    %v2865 = vadd.f32 0.0, %v2864
    %2866 = vdwg.mxu0
    %2867 = vmatpush.msra.mxu0 %v449
    %2868 = vmatpush.msra.mxu0 %v445
    %2869 = vmatpush.msra.mxu0 %v441
    %2870 = vmatpush.msra.mxu0 %v437
    %2871 = vmatpush.msra.mxu0 %v433
    %2872 = vmatpush.msra.mxu0 %v429
    %2873 = vmatpush.msra.mxu0 %v425
    %2874 = vmatpush.msra.mxu0 %v421
    %2875 = vmatpush.msra.mxu0 %v417
    %2876 = vmatpush.msra.mxu0 %v413
    %2877 = vmatpush.msra.mxu0 %v409
    %2878 = vmatpush.msra.mxu0 %v405
    %2879 = vmatpush.msra.mxu0 %v401
    %2880 = vmatpush.msra.mxu0 %v397
    %2881 = vmatpush.msra.mxu0 %v393
    %2882 = vmatpush.msra.mxu0 %v389
    %2883 = vmatmul.f32.gmra.mxu0 %v2562
    %v2884 = vpop.f32.mrf.mxu0
    %v2885 = vadd.f32 %v2862, %v2884
    %2886 = vmatmul.f32.gmra.mxu0 %v2563
    %v2887 = vpop.f32.mrf.mxu0
    %v2888 = vadd.f32 %v2865, %v2887
    %2889 = vdwg.mxu0
    %2890 = vmatpush.msra.mxu0 %v386
    %2891 = vmatpush.msra.mxu0 %v382
    %2892 = vmatpush.msra.mxu0 %v378
    %2893 = vmatpush.msra.mxu0 %v374
    %2894 = vmatpush.msra.mxu0 %v370
    %2895 = vmatpush.msra.mxu0 %v366
    %2896 = vmatpush.msra.mxu0 %v362
    %2897 = vmatpush.msra.mxu0 %v358
    %2898 = vmatpush.msra.mxu0 %v354
    %2899 = vmatpush.msra.mxu0 %v350
    %2900 = vmatpush.msra.mxu0 %v346
    %2901 = vmatpush.msra.mxu0 %v342
    %2902 = vmatpush.msra.mxu0 %v338
    %2903 = vmatpush.msra.mxu0 %v334
    %2904 = vmatpush.msra.mxu0 %v330
    %2905 = vmatpush.msra.mxu0 %v326
    %2906 = vmatmul.f32.gmra.mxu0 %v2750
    %v2907 = vpop.f32.mrf.mxu0
    %v2908 = vadd.f32 0.0, %v2907
    %2909 = vmatmul.f32.gmra.mxu0 %v2751
    %v2910 = vpop.f32.mrf.mxu0
    %v2911 = vadd.f32 0.0, %v2910
    %2912 = vdwg.mxu0
    %2913 = vmatpush.msra.mxu0 %v450
    %2914 = vmatpush.msra.mxu0 %v446
    %2915 = vmatpush.msra.mxu0 %v442
    %2916 = vmatpush.msra.mxu0 %v438
    %2917 = vmatpush.msra.mxu0 %v434
    %2918 = vmatpush.msra.mxu0 %v430
    %2919 = vmatpush.msra.mxu0 %v426
    %2920 = vmatpush.msra.mxu0 %v422
    %2921 = vmatpush.msra.mxu0 %v418
    %2922 = vmatpush.msra.mxu0 %v414
    %2923 = vmatpush.msra.mxu0 %v410
    %2924 = vmatpush.msra.mxu0 %v406
    %2925 = vmatpush.msra.mxu0 %v402
    %2926 = vmatpush.msra.mxu0 %v398
    %2927 = vmatpush.msra.mxu0 %v394
    %2928 = vmatpush.msra.mxu0 %v390
    %2929 = vmatmul.f32.gmra.mxu0 %v2562
    %v2930 = vpop.f32.mrf.mxu0
    %v2931 = vadd.f32 %v2908, %v2930
    %2932 = vmatmul.f32.gmra.mxu0 %v2563
    %v2933 = vpop.f32.mrf.mxu0
    %v2934 = vadd.f32 %v2911, %v2933
    %2935 = vdwg.mxu0
    %v2936 = vxor.u32 %v2793, 2147483648
    %v2937 = vxor.u32 %v2796, 2147483648
    %v2938 = vmul.f32 %v2936, 1.442695
    %v2939 = vpow.pop %v2938
    %v2940 = vmul.f32 %v2937, 1.442695
    %v2941 = vpow.pop %v2940
    %v2942 = vadd.f32 %v2939, 1.0
    %v2943 = vadd.f32 %v2941, 1.0
    %v2944 = vrcp.pop %v2942
    %v2945 = vmul.f32 %v2942, %v2944
    %v2946 = vsub.f32 1.0, %v2945
    %v2947 = vmul.f32 %v2944, %v2946
    %v2948 = vadd.f32 %v2944, %v2947
    %vm2949 = vweird.f32 %v2942
    %vm2950 = vweird.f32 %v2944
    %vm2951 = vmor %vm2949, %vm2950
    %v2952 = vsel %vm2951, %v2944, %v2948
    %v2953 = vand.u32 2147483647, %v2942
    %vm2954 = vcmp.eq.f32.partialorder %v2953, 8.507059e+37
    %v2955 = vand.u32 %v2942, 2147483648
    %v2956 = vor.u32 1.1754944e-38, %v2955
    %v2957 = vsel %vm2954, %v2956, %v2952
    %v2958 = vmul.f32 1.0, %v2957
    %v2959 = vrcp.pop %v2943
    %v2960 = vmul.f32 %v2943, %v2959
    %v2961 = vsub.f32 1.0, %v2960
    %v2962 = vmul.f32 %v2959, %v2961
    %v2963 = vadd.f32 %v2959, %v2962
    %vm2964 = vweird.f32 %v2943
    %vm2965 = vweird.f32 %v2959
    %vm2966 = vmor %vm2964, %vm2965
    %v2967 = vsel %vm2966, %v2959, %v2963
    %v2968 = vand.u32 2147483647, %v2943
    %vm2969 = vcmp.eq.f32.partialorder %v2968, 8.507059e+37
    %v2970 = vand.u32 %v2943, 2147483648
    %v2971 = vor.u32 1.1754944e-38, %v2970
    %v2972 = vsel %vm2969, %v2971, %v2967
    %v2973 = vmul.f32 1.0, %v2972
    %v2974 = vxor.u32 %v2839, 2147483648
    %v2975 = vxor.u32 %v2842, 2147483648
    %v2976 = vmul.f32 %v2974, 1.442695
    %v2977 = vpow.pop %v2976
    %v2978 = vmul.f32 %v2975, 1.442695
    %v2979 = vpow.pop %v2978
    %v2980 = vadd.f32 %v2977, 1.0
    %v2981 = vadd.f32 %v2979, 1.0
    %v2982 = vrcp.pop %v2980
    %v2983 = vmul.f32 %v2980, %v2982
    %v2984 = vsub.f32 1.0, %v2983
    %v2985 = vmul.f32 %v2982, %v2984
    %v2986 = vadd.f32 %v2982, %v2985
    %vm2987 = vweird.f32 %v2980
    %vm2988 = vweird.f32 %v2982
    %vm2989 = vmor %vm2987, %vm2988
    %v2990 = vsel %vm2989, %v2982, %v2986
    %v2991 = vand.u32 2147483647, %v2980
    %vm2992 = vcmp.eq.f32.partialorder %v2991, 8.507059e+37
    %v2993 = vand.u32 %v2980, 2147483648
    %v2994 = vor.u32 1.1754944e-38, %v2993
    %v2995 = vsel %vm2992, %v2994, %v2990
    %v2996 = vmul.f32 1.0, %v2995
    %v2997 = vrcp.pop %v2981
    %v2998 = vmul.f32 %v2981, %v2997
    %v2999 = vsub.f32 1.0, %v2998
    %v3000 = vmul.f32 %v2997, %v2999
    %v3001 = vadd.f32 %v2997, %v3000
    %vm3002 = vweird.f32 %v2981
    %vm3003 = vweird.f32 %v2997
    %vm3004 = vmor %vm3002, %vm3003
    %v3005 = vsel %vm3004, %v2997, %v3001
    %v3006 = vand.u32 2147483647, %v2981
    %vm3007 = vcmp.eq.f32.partialorder %v3006, 8.507059e+37
    %v3008 = vand.u32 %v2981, 2147483648
    %v3009 = vor.u32 1.1754944e-38, %v3008
    %v3010 = vsel %vm3007, %v3009, %v3005
    %v3011 = vmul.f32 1.0, %v3010
    %v3012 = vmul.f32 %v2958, %v2931
    %v3013 = vmul.f32 %v2973, %v2934
    %v3014 = vadd.f32 %v2885, %v3012
    %v3015 = vadd.f32 %v2888, %v3013
    %v3016 = vtanh.pop %v3014
    %v3017 = vtanh.pop %v3015
    %v3018 = vsub.f32 %v2562, %v3016
    %v3019 = vsub.f32 %v2563, %v3017
    %v3020 = vmul.f32 %v2996, %v3018
    %v3021 = vmul.f32 %v3011, %v3019
    %v3022 = vadd.f32 %v3016, %v3020
    %v3023 = vadd.f32 %v3017, %v3021
    %s3024 = sadd.s32 %s144, 5
    %v3025 = vstv %s3024
    %vm3026 = vcmp.eq.s32.totalorder %v723, %v3025
    %vm3027 = vcmp.eq.s32.totalorder %v724, %v3025
    %v3028 = vsel %vm3026, 1, 0
    %v3029 = vsel %vm3027, 1, 0
    %3030 = vset.pattern.permute.xlu0 0
    %3031 = vperm.xlu0 %3030, %v3028
    %v3032 = vpop.permute.xlu0 %3031
    %3033 = vset.pattern.permute.xlu0 0
    %3034 = vperm.xlu0 %3033, %v3029
    %v3035 = vpop.permute.xlu0 %3034
    %vm3036 = vcmp.eq.s32.totalorder %v3032, 1
    %vm3037 = vcmp.eq.s32.totalorder %v3035, 1
    %v3038 = vsel %vm3036, %v3022, %v2578
    %v3039 = vsel %vm3037, %v3023, %v2579
    %s3040 = scalar_lea.vmem [#allocation4], 144
    %v3041 = vld [vmem:[%s3040] sm:$0xff]
    %v3042 = vld [vmem:[%s3040 + $0x8] sm:$0xf]
    %v3043 = vld [vmem:[%s3040 + $0xc] sm:$0xff]
    %v3044 = vld [vmem:[%s3040 + $0x14] sm:$0xf]
    %v3045 = vunpack.c.l.bf16 %v3041
    %v3046 = vunpack.c.h.bf16 %v3041
    %v3047 = vunpack.c.l.bf16 %v3042
    %v3048 = vunpack.c.l.bf16 %v3043
    %v3049 = vunpack.c.h.bf16 %v3043
    %v3050 = vunpack.c.l.bf16 %v3044
    %3051 = vmatpush.msra.mxu0 %v139
    %3052 = vmatpush.msra.mxu0 %v136
    %3053 = vmatpush.msra.mxu0 %v133
    %3054 = vmatpush.msra.mxu0 %v130
    %3055 = vmatpush.msra.mxu0 %v127
    %3056 = vmatpush.msra.mxu0 %v124
    %3057 = vmatpush.msra.mxu0 %v121
    %3058 = vmatpush.msra.mxu0 %v118
    %3059 = vmatpush.msra.mxu0 %v115
    %3060 = vmatpush.msra.mxu0 %v112
    %3061 = vmatpush.msra.mxu0 %v109
    %3062 = vmatpush.msra.mxu0 %v106
    %3063 = vmatpush.msra.mxu0 %v103
    %3064 = vmatpush.msra.mxu0 %v100
    %3065 = vmatpush.msra.mxu0 %v97
    %3066 = vmatpush.msra.mxu0 %v94
    %3067 = vmatmul.f32.gmra.mxu0 %v2750
    %v3068 = vpop.f32.mrf.mxu0
    %v3069 = vadd.f32 0.0, %v3068
    %3070 = vmatmul.f32.gmra.mxu0 %v2751
    %v3071 = vpop.f32.mrf.mxu0
    %v3072 = vadd.f32 0.0, %v3071
    %3073 = vdwg.mxu0
    %3074 = vmatpush.msra.mxu0 %v140
    %3075 = vmatpush.msra.mxu0 %v137
    %3076 = vmatpush.msra.mxu0 %v134
    %3077 = vmatpush.msra.mxu0 %v131
    %3078 = vmatpush.msra.mxu0 %v128
    %3079 = vmatpush.msra.mxu0 %v125
    %3080 = vmatpush.msra.mxu0 %v122
    %3081 = vmatpush.msra.mxu0 %v119
    %3082 = vmatpush.msra.mxu0 %v116
    %3083 = vmatpush.msra.mxu0 %v113
    %3084 = vmatpush.msra.mxu0 %v110
    %3085 = vmatpush.msra.mxu0 %v107
    %3086 = vmatpush.msra.mxu0 %v104
    %3087 = vmatpush.msra.mxu0 %v101
    %3088 = vmatpush.msra.mxu0 %v98
    %3089 = vmatpush.msra.mxu0 %v95
    %3090 = vmatmul.f32.gmra.mxu0 %v2750
    %v3091 = vpop.f32.mrf.mxu0
    %v3092 = vadd.f32 0.0, %v3091
    %3093 = vmatmul.f32.gmra.mxu0 %v2751
    %v3094 = vpop.f32.mrf.mxu0
    %v3095 = vadd.f32 0.0, %v3094
    %3096 = vdwg.mxu0
    %3097 = vmatpush.msra.mxu0 %v141
    %3098 = vmatpush.msra.mxu0 %v138
    %3099 = vmatpush.msra.mxu0 %v135
    %3100 = vmatpush.msra.mxu0 %v132
    %3101 = vmatpush.msra.mxu0 %v129
    %3102 = vmatpush.msra.mxu0 %v126
    %3103 = vmatpush.msra.mxu0 %v123
    %3104 = vmatpush.msra.mxu0 %v120
    %3105 = vmatpush.msra.mxu0 %v117
    %3106 = vmatpush.msra.mxu0 %v114
    %3107 = vmatpush.msra.mxu0 %v111
    %3108 = vmatpush.msra.mxu0 %v108
    %3109 = vmatpush.msra.mxu0 %v105
    %3110 = vmatpush.msra.mxu0 %v102
    %3111 = vmatpush.msra.mxu0 %v99
    %3112 = vmatpush.msra.mxu0 %v96
    %3113 = vmatmul.f32.gmra.mxu0 %v2750
    %v3114 = vpop.f32.mrf.mxu0
    %v3115 = vadd.f32 0.0, %v3114
    %3116 = vmatmul.f32.gmra.mxu0 %v2751
    %v3117 = vpop.f32.mrf.mxu0
    %v3118 = vadd.f32 0.0, %v3117
    %3119 = vdwg.mxu0
    %v3120 = vadd.f32 %v3045, %v3069
    %v3121 = vadd.f32 %v3048, %v3072
    %v3122 = vxor.u32 %v3120, 2147483648
    %v3123 = vxor.u32 %v3121, 2147483648
    %v3124 = vmul.f32 %v3122, 1.442695
    %v3125 = vpow.pop %v3124
    %v3126 = vmul.f32 %v3123, 1.442695
    %v3127 = vpow.pop %v3126
    %v3128 = vadd.f32 %v3125, 1.0
    %v3129 = vadd.f32 %v3127, 1.0
    %v3130 = vrcp.pop %v3128
    %v3131 = vmul.f32 %v3128, %v3130
    %v3132 = vsub.f32 1.0, %v3131
    %v3133 = vmul.f32 %v3130, %v3132
    %v3134 = vadd.f32 %v3130, %v3133
    %vm3135 = vweird.f32 %v3128
    %vm3136 = vweird.f32 %v3130
    %vm3137 = vmor %vm3135, %vm3136
    %v3138 = vsel %vm3137, %v3130, %v3134
    %v3139 = vand.u32 2147483647, %v3128
    %vm3140 = vcmp.eq.f32.partialorder %v3139, 8.507059e+37
    %v3141 = vand.u32 %v3128, 2147483648
    %v3142 = vor.u32 1.1754944e-38, %v3141
    %v3143 = vsel %vm3140, %v3142, %v3138
    %v3144 = vmul.f32 1.0, %v3143
    %v3145 = vrcp.pop %v3129
    %v3146 = vmul.f32 %v3129, %v3145
    %v3147 = vsub.f32 1.0, %v3146
    %v3148 = vmul.f32 %v3145, %v3147
    %v3149 = vadd.f32 %v3145, %v3148
    %vm3150 = vweird.f32 %v3129
    %vm3151 = vweird.f32 %v3145
    %vm3152 = vmor %vm3150, %vm3151
    %v3153 = vsel %vm3152, %v3145, %v3149
    %v3154 = vand.u32 2147483647, %v3129
    %vm3155 = vcmp.eq.f32.partialorder %v3154, 8.507059e+37
    %v3156 = vand.u32 %v3129, 2147483648
    %v3157 = vor.u32 1.1754944e-38, %v3156
    %v3158 = vsel %vm3155, %v3157, %v3153
    %v3159 = vmul.f32 1.0, %v3158
    %v3160 = vadd.f32 %v3046, %v3092
    %v3161 = vadd.f32 %v3049, %v3095
    %v3162 = vxor.u32 %v3160, 2147483648
    %v3163 = vxor.u32 %v3161, 2147483648
    %v3164 = vmul.f32 %v3162, 1.442695
    %v3165 = vpow.pop %v3164
    %v3166 = vmul.f32 %v3163, 1.442695
    %v3167 = vpow.pop %v3166
    %v3168 = vadd.f32 %v3165, 1.0
    %v3169 = vadd.f32 %v3167, 1.0
    %v3170 = vrcp.pop %v3168
    %v3171 = vmul.f32 %v3168, %v3170
    %v3172 = vsub.f32 1.0, %v3171
    %v3173 = vmul.f32 %v3170, %v3172
    %v3174 = vadd.f32 %v3170, %v3173
    %vm3175 = vweird.f32 %v3168
    %vm3176 = vweird.f32 %v3170
    %vm3177 = vmor %vm3175, %vm3176
    %v3178 = vsel %vm3177, %v3170, %v3174
    %v3179 = vand.u32 2147483647, %v3168
    %vm3180 = vcmp.eq.f32.partialorder %v3179, 8.507059e+37
    %v3181 = vand.u32 %v3168, 2147483648
    %v3182 = vor.u32 1.1754944e-38, %v3181
    %v3183 = vsel %vm3180, %v3182, %v3178
    %v3184 = vmul.f32 1.0, %v3183
    %v3185 = vrcp.pop %v3169
    %v3186 = vmul.f32 %v3169, %v3185
    %v3187 = vsub.f32 1.0, %v3186
    %v3188 = vmul.f32 %v3185, %v3187
    %v3189 = vadd.f32 %v3185, %v3188
    %vm3190 = vweird.f32 %v3169
    %vm3191 = vweird.f32 %v3185
    %vm3192 = vmor %vm3190, %vm3191
    %v3193 = vsel %vm3192, %v3185, %v3189
    %v3194 = vand.u32 2147483647, %v3169
    %vm3195 = vcmp.eq.f32.partialorder %v3194, 8.507059e+37
    %v3196 = vand.u32 %v3169, 2147483648
    %v3197 = vor.u32 1.1754944e-38, %v3196
    %v3198 = vsel %vm3195, %v3197, %v3193
    %v3199 = vmul.f32 1.0, %v3198
    %v3200 = vmul.f32 %v3144, %v3115
    %v3201 = vmul.f32 %v3159, %v3118
    %v3202 = vadd.f32 %v3047, %v3200
    %v3203 = vadd.f32 %v3050, %v3201
    %v3204 = vtanh.pop %v3202
    %v3205 = vtanh.pop %v3203
    %v3206 = vsub.f32 %v2750, %v3204
    %v3207 = vsub.f32 %v2751, %v3205
    %v3208 = vmul.f32 %v3184, %v3206
    %v3209 = vmul.f32 %v3199, %v3207
    %v3210 = vadd.f32 %v3204, %v3208
    %v3211 = vadd.f32 %v3205, %v3209
    %3212 = vmatpush.msra.mxu0 %v383
    %3213 = vmatpush.msra.mxu0 %v379
    %3214 = vmatpush.msra.mxu0 %v375
    %3215 = vmatpush.msra.mxu0 %v371
    %3216 = vmatpush.msra.mxu0 %v367
    %3217 = vmatpush.msra.mxu0 %v363
    %3218 = vmatpush.msra.mxu0 %v359
    %3219 = vmatpush.msra.mxu0 %v355
    %3220 = vmatpush.msra.mxu0 %v351
    %3221 = vmatpush.msra.mxu0 %v347
    %3222 = vmatpush.msra.mxu0 %v343
    %3223 = vmatpush.msra.mxu0 %v339
    %3224 = vmatpush.msra.mxu0 %v335
    %3225 = vmatpush.msra.mxu0 %v331
    %3226 = vmatpush.msra.mxu0 %v327
    %3227 = vmatpush.msra.mxu0 %v323
    %3228 = vmatmul.f32.gmra.mxu0 %v3210
    %v3229 = vpop.f32.mrf.mxu0
    %v3230 = vadd.f32 0.0, %v3229
    %3231 = vmatmul.f32.gmra.mxu0 %v3211
    %v3232 = vpop.f32.mrf.mxu0
    %v3233 = vadd.f32 0.0, %v3232
    %3234 = vdwg.mxu0
    %3235 = vmatpush.msra.mxu0 %v447
    %3236 = vmatpush.msra.mxu0 %v443
    %3237 = vmatpush.msra.mxu0 %v439
    %3238 = vmatpush.msra.mxu0 %v435
    %3239 = vmatpush.msra.mxu0 %v431
    %3240 = vmatpush.msra.mxu0 %v427
    %3241 = vmatpush.msra.mxu0 %v423
    %3242 = vmatpush.msra.mxu0 %v419
    %3243 = vmatpush.msra.mxu0 %v415
    %3244 = vmatpush.msra.mxu0 %v411
    %3245 = vmatpush.msra.mxu0 %v407
    %3246 = vmatpush.msra.mxu0 %v403
    %3247 = vmatpush.msra.mxu0 %v399
    %3248 = vmatpush.msra.mxu0 %v395
    %3249 = vmatpush.msra.mxu0 %v391
    %3250 = vmatpush.msra.mxu0 %v387
    %3251 = vmatmul.f32.gmra.mxu0 %v3022
    %v3252 = vpop.f32.mrf.mxu0
    %v3253 = vadd.f32 %v3230, %v3252
    %3254 = vmatmul.f32.gmra.mxu0 %v3023
    %v3255 = vpop.f32.mrf.mxu0
    %v3256 = vadd.f32 %v3233, %v3255
    %3257 = vdwg.mxu0
    %3258 = vmatpush.msra.mxu0 %v384
    %3259 = vmatpush.msra.mxu0 %v380
    %3260 = vmatpush.msra.mxu0 %v376
    %3261 = vmatpush.msra.mxu0 %v372
    %3262 = vmatpush.msra.mxu0 %v368
    %3263 = vmatpush.msra.mxu0 %v364
    %3264 = vmatpush.msra.mxu0 %v360
    %3265 = vmatpush.msra.mxu0 %v356
    %3266 = vmatpush.msra.mxu0 %v352
    %3267 = vmatpush.msra.mxu0 %v348
    %3268 = vmatpush.msra.mxu0 %v344
    %3269 = vmatpush.msra.mxu0 %v340
    %3270 = vmatpush.msra.mxu0 %v336
    %3271 = vmatpush.msra.mxu0 %v332
    %3272 = vmatpush.msra.mxu0 %v328
    %3273 = vmatpush.msra.mxu0 %v324
    %3274 = vmatmul.f32.gmra.mxu0 %v3210
    %v3275 = vpop.f32.mrf.mxu0
    %v3276 = vadd.f32 0.0, %v3275
    %3277 = vmatmul.f32.gmra.mxu0 %v3211
    %v3278 = vpop.f32.mrf.mxu0
    %v3279 = vadd.f32 0.0, %v3278
    %3280 = vdwg.mxu0
    %3281 = vmatpush.msra.mxu0 %v448
    %3282 = vmatpush.msra.mxu0 %v444
    %3283 = vmatpush.msra.mxu0 %v440
    %3284 = vmatpush.msra.mxu0 %v436
    %3285 = vmatpush.msra.mxu0 %v432
    %3286 = vmatpush.msra.mxu0 %v428
    %3287 = vmatpush.msra.mxu0 %v424
    %3288 = vmatpush.msra.mxu0 %v420
    %3289 = vmatpush.msra.mxu0 %v416
    %3290 = vmatpush.msra.mxu0 %v412
    %3291 = vmatpush.msra.mxu0 %v408
    %3292 = vmatpush.msra.mxu0 %v404
    %3293 = vmatpush.msra.mxu0 %v400
    %3294 = vmatpush.msra.mxu0 %v396
    %3295 = vmatpush.msra.mxu0 %v392
    %3296 = vmatpush.msra.mxu0 %v388
    %3297 = vmatmul.f32.gmra.mxu0 %v3022
    %v3298 = vpop.f32.mrf.mxu0
    %v3299 = vadd.f32 %v3276, %v3298
    %3300 = vmatmul.f32.gmra.mxu0 %v3023
    %v3301 = vpop.f32.mrf.mxu0
    %v3302 = vadd.f32 %v3279, %v3301
    %3303 = vdwg.mxu0
    %3304 = vmatpush.msra.mxu0 %v385
    %3305 = vmatpush.msra.mxu0 %v381
    %3306 = vmatpush.msra.mxu0 %v377
    %3307 = vmatpush.msra.mxu0 %v373
    %3308 = vmatpush.msra.mxu0 %v369
    %3309 = vmatpush.msra.mxu0 %v365
    %3310 = vmatpush.msra.mxu0 %v361
    %3311 = vmatpush.msra.mxu0 %v357
    %3312 = vmatpush.msra.mxu0 %v353
    %3313 = vmatpush.msra.mxu0 %v349
    %3314 = vmatpush.msra.mxu0 %v345
    %3315 = vmatpush.msra.mxu0 %v341
    %3316 = vmatpush.msra.mxu0 %v337
    %3317 = vmatpush.msra.mxu0 %v333
    %3318 = vmatpush.msra.mxu0 %v329
    %3319 = vmatpush.msra.mxu0 %v325
    %3320 = vmatmul.f32.gmra.mxu0 %v3210
    %v3321 = vpop.f32.mrf.mxu0
    %v3322 = vadd.f32 0.0, %v3321
    %3323 = vmatmul.f32.gmra.mxu0 %v3211
    %v3324 = vpop.f32.mrf.mxu0
    %v3325 = vadd.f32 0.0, %v3324
    %3326 = vdwg.mxu0
    %3327 = vmatpush.msra.mxu0 %v449
    %3328 = vmatpush.msra.mxu0 %v445
    %3329 = vmatpush.msra.mxu0 %v441
    %3330 = vmatpush.msra.mxu0 %v437
    %3331 = vmatpush.msra.mxu0 %v433
    %3332 = vmatpush.msra.mxu0 %v429
    %3333 = vmatpush.msra.mxu0 %v425
    %3334 = vmatpush.msra.mxu0 %v421
    %3335 = vmatpush.msra.mxu0 %v417
    %3336 = vmatpush.msra.mxu0 %v413
    %3337 = vmatpush.msra.mxu0 %v409
    %3338 = vmatpush.msra.mxu0 %v405
    %3339 = vmatpush.msra.mxu0 %v401
    %3340 = vmatpush.msra.mxu0 %v397
    %3341 = vmatpush.msra.mxu0 %v393
    %3342 = vmatpush.msra.mxu0 %v389
    %3343 = vmatmul.f32.gmra.mxu0 %v3022
    %v3344 = vpop.f32.mrf.mxu0
    %v3345 = vadd.f32 %v3322, %v3344
    %3346 = vmatmul.f32.gmra.mxu0 %v3023
    %v3347 = vpop.f32.mrf.mxu0
    %v3348 = vadd.f32 %v3325, %v3347
    %3349 = vdwg.mxu0
    %3350 = vmatpush.msra.mxu0 %v386
    %3351 = vmatpush.msra.mxu0 %v382
    %3352 = vmatpush.msra.mxu0 %v378
    %3353 = vmatpush.msra.mxu0 %v374
    %3354 = vmatpush.msra.mxu0 %v370
    %3355 = vmatpush.msra.mxu0 %v366
    %3356 = vmatpush.msra.mxu0 %v362
    %3357 = vmatpush.msra.mxu0 %v358
    %3358 = vmatpush.msra.mxu0 %v354
    %3359 = vmatpush.msra.mxu0 %v350
    %3360 = vmatpush.msra.mxu0 %v346
    %3361 = vmatpush.msra.mxu0 %v342
    %3362 = vmatpush.msra.mxu0 %v338
    %3363 = vmatpush.msra.mxu0 %v334
    %3364 = vmatpush.msra.mxu0 %v330
    %3365 = vmatpush.msra.mxu0 %v326
    %3366 = vmatmul.f32.gmra.mxu0 %v3210
    %v3367 = vpop.f32.mrf.mxu0
    %v3368 = vadd.f32 0.0, %v3367
    %3369 = vmatmul.f32.gmra.mxu0 %v3211
    %v3370 = vpop.f32.mrf.mxu0
    %v3371 = vadd.f32 0.0, %v3370
    %3372 = vdwg.mxu0
    %3373 = vmatpush.msra.mxu0 %v450
    %3374 = vmatpush.msra.mxu0 %v446
    %3375 = vmatpush.msra.mxu0 %v442
    %3376 = vmatpush.msra.mxu0 %v438
    %3377 = vmatpush.msra.mxu0 %v434
    %3378 = vmatpush.msra.mxu0 %v430
    %3379 = vmatpush.msra.mxu0 %v426
    %3380 = vmatpush.msra.mxu0 %v422
    %3381 = vmatpush.msra.mxu0 %v418
    %3382 = vmatpush.msra.mxu0 %v414
    %3383 = vmatpush.msra.mxu0 %v410
    %3384 = vmatpush.msra.mxu0 %v406
    %3385 = vmatpush.msra.mxu0 %v402
    %3386 = vmatpush.msra.mxu0 %v398
    %3387 = vmatpush.msra.mxu0 %v394
    %3388 = vmatpush.msra.mxu0 %v390
    %3389 = vmatmul.f32.gmra.mxu0 %v3022
    %v3390 = vpop.f32.mrf.mxu0
    %v3391 = vadd.f32 %v3368, %v3390
    %3392 = vmatmul.f32.gmra.mxu0 %v3023
    %v3393 = vpop.f32.mrf.mxu0
    %v3394 = vadd.f32 %v3371, %v3393
    %3395 = vdwg.mxu0
    %v3396 = vxor.u32 %v3253, 2147483648
    %v3397 = vxor.u32 %v3256, 2147483648
    %v3398 = vmul.f32 %v3396, 1.442695
    %v3399 = vpow.pop %v3398
    %v3400 = vmul.f32 %v3397, 1.442695
    %v3401 = vpow.pop %v3400
    %v3402 = vadd.f32 %v3399, 1.0
    %v3403 = vadd.f32 %v3401, 1.0
    %v3404 = vrcp.pop %v3402
    %v3405 = vmul.f32 %v3402, %v3404
    %v3406 = vsub.f32 1.0, %v3405
    %v3407 = vmul.f32 %v3404, %v3406
    %v3408 = vadd.f32 %v3404, %v3407
    %vm3409 = vweird.f32 %v3402
    %vm3410 = vweird.f32 %v3404
    %vm3411 = vmor %vm3409, %vm3410
    %v3412 = vsel %vm3411, %v3404, %v3408
    %v3413 = vand.u32 2147483647, %v3402
    %vm3414 = vcmp.eq.f32.partialorder %v3413, 8.507059e+37
    %v3415 = vand.u32 %v3402, 2147483648
    %v3416 = vor.u32 1.1754944e-38, %v3415
    %v3417 = vsel %vm3414, %v3416, %v3412
    %v3418 = vmul.f32 1.0, %v3417
    %v3419 = vrcp.pop %v3403
    %v3420 = vmul.f32 %v3403, %v3419
    %v3421 = vsub.f32 1.0, %v3420
    %v3422 = vmul.f32 %v3419, %v3421
    %v3423 = vadd.f32 %v3419, %v3422
    %vm3424 = vweird.f32 %v3403
    %vm3425 = vweird.f32 %v3419
    %vm3426 = vmor %vm3424, %vm3425
    %v3427 = vsel %vm3426, %v3419, %v3423
    %v3428 = vand.u32 2147483647, %v3403
    %vm3429 = vcmp.eq.f32.partialorder %v3428, 8.507059e+37
    %v3430 = vand.u32 %v3403, 2147483648
    %v3431 = vor.u32 1.1754944e-38, %v3430
    %v3432 = vsel %vm3429, %v3431, %v3427
    %v3433 = vmul.f32 1.0, %v3432
    %v3434 = vxor.u32 %v3299, 2147483648
    %v3435 = vxor.u32 %v3302, 2147483648
    %v3436 = vmul.f32 %v3434, 1.442695
    %v3437 = vpow.pop %v3436
    %v3438 = vmul.f32 %v3435, 1.442695
    %v3439 = vpow.pop %v3438
    %v3440 = vadd.f32 %v3437, 1.0
    %v3441 = vadd.f32 %v3439, 1.0
    %v3442 = vrcp.pop %v3440
    %v3443 = vmul.f32 %v3440, %v3442
    %v3444 = vsub.f32 1.0, %v3443
    %v3445 = vmul.f32 %v3442, %v3444
    %v3446 = vadd.f32 %v3442, %v3445
    %vm3447 = vweird.f32 %v3440
    %vm3448 = vweird.f32 %v3442
    %vm3449 = vmor %vm3447, %vm3448
    %v3450 = vsel %vm3449, %v3442, %v3446
    %v3451 = vand.u32 2147483647, %v3440
    %vm3452 = vcmp.eq.f32.partialorder %v3451, 8.507059e+37
    %v3453 = vand.u32 %v3440, 2147483648
    %v3454 = vor.u32 1.1754944e-38, %v3453
    %v3455 = vsel %vm3452, %v3454, %v3450
    %v3456 = vmul.f32 1.0, %v3455
    %v3457 = vrcp.pop %v3441
    %v3458 = vmul.f32 %v3441, %v3457
    %v3459 = vsub.f32 1.0, %v3458
    %v3460 = vmul.f32 %v3457, %v3459
    %v3461 = vadd.f32 %v3457, %v3460
    %vm3462 = vweird.f32 %v3441
    %vm3463 = vweird.f32 %v3457
    %vm3464 = vmor %vm3462, %vm3463
    %v3465 = vsel %vm3464, %v3457, %v3461
    %v3466 = vand.u32 2147483647, %v3441
    %vm3467 = vcmp.eq.f32.partialorder %v3466, 8.507059e+37
    %v3468 = vand.u32 %v3441, 2147483648
    %v3469 = vor.u32 1.1754944e-38, %v3468
    %v3470 = vsel %vm3467, %v3469, %v3465
    %v3471 = vmul.f32 1.0, %v3470
    %v3472 = vmul.f32 %v3418, %v3391
    %v3473 = vmul.f32 %v3433, %v3394
    %v3474 = vadd.f32 %v3345, %v3472
    %v3475 = vadd.f32 %v3348, %v3473
    %v3476 = vtanh.pop %v3474
    %v3477 = vtanh.pop %v3475
    %v3478 = vsub.f32 %v3022, %v3476
    %v3479 = vsub.f32 %v3023, %v3477
    %v3480 = vmul.f32 %v3456, %v3478
    %v3481 = vmul.f32 %v3471, %v3479
    %v3482 = vadd.f32 %v3476, %v3480
    %v3483 = vadd.f32 %v3477, %v3481
    %s3484 = sadd.s32 %s144, 6
    %v3485 = vstv %s3484
    %vm3486 = vcmp.eq.s32.totalorder %v723, %v3485
    %vm3487 = vcmp.eq.s32.totalorder %v724, %v3485
    %v3488 = vsel %vm3486, 1, 0
    %v3489 = vsel %vm3487, 1, 0
    %3490 = vset.pattern.permute.xlu0 0
    %3491 = vperm.xlu0 %3490, %v3488
    %v3492 = vpop.permute.xlu0 %3491
    %3493 = vset.pattern.permute.xlu0 0
    %3494 = vperm.xlu0 %3493, %v3489
    %v3495 = vpop.permute.xlu0 %3494
    %vm3496 = vcmp.eq.s32.totalorder %v3492, 1
    %vm3497 = vcmp.eq.s32.totalorder %v3495, 1
    %v3498 = vsel %vm3496, %v3482, %v3038
    %v3499 = vsel %vm3497, %v3483, %v3039
    %s3500 = scalar_lea.vmem [#allocation4], 168
    %v3501 = vld [vmem:[%s3500] sm:$0xff]
    %v3502 = vld [vmem:[%s3500 + $0x8] sm:$0xf]
    %v3503 = vld [vmem:[%s3500 + $0xc] sm:$0xff]
    %v3504 = vld [vmem:[%s3500 + $0x14] sm:$0xf]
    %v3505 = vunpack.c.l.bf16 %v3501
    %v3506 = vunpack.c.h.bf16 %v3501
    %v3507 = vunpack.c.l.bf16 %v3502
    %v3508 = vunpack.c.l.bf16 %v3503
    %v3509 = vunpack.c.h.bf16 %v3503
    %v3510 = vunpack.c.l.bf16 %v3504
    %3511 = vmatpush.msra.mxu0 %v139
    %3512 = vmatpush.msra.mxu0 %v136
    %3513 = vmatpush.msra.mxu0 %v133
    %3514 = vmatpush.msra.mxu0 %v130
    %3515 = vmatpush.msra.mxu0 %v127
    %3516 = vmatpush.msra.mxu0 %v124
    %3517 = vmatpush.msra.mxu0 %v121
    %3518 = vmatpush.msra.mxu0 %v118
    %3519 = vmatpush.msra.mxu0 %v115
    %3520 = vmatpush.msra.mxu0 %v112
    %3521 = vmatpush.msra.mxu0 %v109
    %3522 = vmatpush.msra.mxu0 %v106
    %3523 = vmatpush.msra.mxu0 %v103
    %3524 = vmatpush.msra.mxu0 %v100
    %3525 = vmatpush.msra.mxu0 %v97
    %3526 = vmatpush.msra.mxu0 %v94
    %3527 = vmatmul.f32.gmra.mxu0 %v3210
    %v3528 = vpop.f32.mrf.mxu0
    %v3529 = vadd.f32 0.0, %v3528
    %3530 = vmatmul.f32.gmra.mxu0 %v3211
    %v3531 = vpop.f32.mrf.mxu0
    %v3532 = vadd.f32 0.0, %v3531
    %3533 = vdwg.mxu0
    %3534 = vmatpush.msra.mxu0 %v140
    %3535 = vmatpush.msra.mxu0 %v137
    %3536 = vmatpush.msra.mxu0 %v134
    %3537 = vmatpush.msra.mxu0 %v131
    %3538 = vmatpush.msra.mxu0 %v128
    %3539 = vmatpush.msra.mxu0 %v125
    %3540 = vmatpush.msra.mxu0 %v122
    %3541 = vmatpush.msra.mxu0 %v119
    %3542 = vmatpush.msra.mxu0 %v116
    %3543 = vmatpush.msra.mxu0 %v113
    %3544 = vmatpush.msra.mxu0 %v110
    %3545 = vmatpush.msra.mxu0 %v107
    %3546 = vmatpush.msra.mxu0 %v104
    %3547 = vmatpush.msra.mxu0 %v101
    %3548 = vmatpush.msra.mxu0 %v98
    %3549 = vmatpush.msra.mxu0 %v95
    %3550 = vmatmul.f32.gmra.mxu0 %v3210
    %v3551 = vpop.f32.mrf.mxu0
    %v3552 = vadd.f32 0.0, %v3551
    %3553 = vmatmul.f32.gmra.mxu0 %v3211
    %v3554 = vpop.f32.mrf.mxu0
    %v3555 = vadd.f32 0.0, %v3554
    %3556 = vdwg.mxu0
    %3557 = vmatpush.msra.mxu0 %v141
    %3558 = vmatpush.msra.mxu0 %v138
    %3559 = vmatpush.msra.mxu0 %v135
    %3560 = vmatpush.msra.mxu0 %v132
    %3561 = vmatpush.msra.mxu0 %v129
    %3562 = vmatpush.msra.mxu0 %v126
    %3563 = vmatpush.msra.mxu0 %v123
    %3564 = vmatpush.msra.mxu0 %v120
    %3565 = vmatpush.msra.mxu0 %v117
    %3566 = vmatpush.msra.mxu0 %v114
    %3567 = vmatpush.msra.mxu0 %v111
    %3568 = vmatpush.msra.mxu0 %v108
    %3569 = vmatpush.msra.mxu0 %v105
    %3570 = vmatpush.msra.mxu0 %v102
    %3571 = vmatpush.msra.mxu0 %v99
    %3572 = vmatpush.msra.mxu0 %v96
    %3573 = vmatmul.f32.gmra.mxu0 %v3210
    %v3574 = vpop.f32.mrf.mxu0
    %v3575 = vadd.f32 0.0, %v3574
    %3576 = vmatmul.f32.gmra.mxu0 %v3211
    %v3577 = vpop.f32.mrf.mxu0
    %v3578 = vadd.f32 0.0, %v3577
    %3579 = vdwg.mxu0
    %v3580 = vadd.f32 %v3505, %v3529
    %v3581 = vadd.f32 %v3508, %v3532
    %v3582 = vxor.u32 %v3580, 2147483648
    %v3583 = vxor.u32 %v3581, 2147483648
    %v3584 = vmul.f32 %v3582, 1.442695
    %v3585 = vpow.pop %v3584
    %v3586 = vmul.f32 %v3583, 1.442695
    %v3587 = vpow.pop %v3586
    %v3588 = vadd.f32 %v3585, 1.0
    %v3589 = vadd.f32 %v3587, 1.0
    %v3590 = vrcp.pop %v3588
    %v3591 = vmul.f32 %v3588, %v3590
    %v3592 = vsub.f32 1.0, %v3591
    %v3593 = vmul.f32 %v3590, %v3592
    %v3594 = vadd.f32 %v3590, %v3593
    %vm3595 = vweird.f32 %v3588
    %vm3596 = vweird.f32 %v3590
    %vm3597 = vmor %vm3595, %vm3596
    %v3598 = vsel %vm3597, %v3590, %v3594
    %v3599 = vand.u32 2147483647, %v3588
    %vm3600 = vcmp.eq.f32.partialorder %v3599, 8.507059e+37
    %v3601 = vand.u32 %v3588, 2147483648
    %v3602 = vor.u32 1.1754944e-38, %v3601
    %v3603 = vsel %vm3600, %v3602, %v3598
    %v3604 = vmul.f32 1.0, %v3603
    %v3605 = vrcp.pop %v3589
    %v3606 = vmul.f32 %v3589, %v3605
    %v3607 = vsub.f32 1.0, %v3606
    %v3608 = vmul.f32 %v3605, %v3607
    %v3609 = vadd.f32 %v3605, %v3608
    %vm3610 = vweird.f32 %v3589
    %vm3611 = vweird.f32 %v3605
    %vm3612 = vmor %vm3610, %vm3611
    %v3613 = vsel %vm3612, %v3605, %v3609
    %v3614 = vand.u32 2147483647, %v3589
    %vm3615 = vcmp.eq.f32.partialorder %v3614, 8.507059e+37
    %v3616 = vand.u32 %v3589, 2147483648
    %v3617 = vor.u32 1.1754944e-38, %v3616
    %v3618 = vsel %vm3615, %v3617, %v3613
    %v3619 = vmul.f32 1.0, %v3618
    %v3620 = vadd.f32 %v3506, %v3552
    %v3621 = vadd.f32 %v3509, %v3555
    %v3622 = vxor.u32 %v3620, 2147483648
    %v3623 = vxor.u32 %v3621, 2147483648
    %v3624 = vmul.f32 %v3622, 1.442695
    %v3625 = vpow.pop %v3624
    %v3626 = vmul.f32 %v3623, 1.442695
    %v3627 = vpow.pop %v3626
    %v3628 = vadd.f32 %v3625, 1.0
    %v3629 = vadd.f32 %v3627, 1.0
    %v3630 = vrcp.pop %v3628
    %v3631 = vmul.f32 %v3628, %v3630
    %v3632 = vsub.f32 1.0, %v3631
    %v3633 = vmul.f32 %v3630, %v3632
    %v3634 = vadd.f32 %v3630, %v3633
    %vm3635 = vweird.f32 %v3628
    %vm3636 = vweird.f32 %v3630
    %vm3637 = vmor %vm3635, %vm3636
    %v3638 = vsel %vm3637, %v3630, %v3634
    %v3639 = vand.u32 2147483647, %v3628
    %vm3640 = vcmp.eq.f32.partialorder %v3639, 8.507059e+37
    %v3641 = vand.u32 %v3628, 2147483648
    %v3642 = vor.u32 1.1754944e-38, %v3641
    %v3643 = vsel %vm3640, %v3642, %v3638
    %v3644 = vmul.f32 1.0, %v3643
    %v3645 = vrcp.pop %v3629
    %v3646 = vmul.f32 %v3629, %v3645
    %v3647 = vsub.f32 1.0, %v3646
    %v3648 = vmul.f32 %v3645, %v3647
    %v3649 = vadd.f32 %v3645, %v3648
    %vm3650 = vweird.f32 %v3629
    %vm3651 = vweird.f32 %v3645
    %vm3652 = vmor %vm3650, %vm3651
    %v3653 = vsel %vm3652, %v3645, %v3649
    %v3654 = vand.u32 2147483647, %v3629
    %vm3655 = vcmp.eq.f32.partialorder %v3654, 8.507059e+37
    %v3656 = vand.u32 %v3629, 2147483648
    %v3657 = vor.u32 1.1754944e-38, %v3656
    %v3658 = vsel %vm3655, %v3657, %v3653
    %v3659 = vmul.f32 1.0, %v3658
    %v3660 = vmul.f32 %v3604, %v3575
    %v3661 = vmul.f32 %v3619, %v3578
    %v3662 = vadd.f32 %v3507, %v3660
    %v3663 = vadd.f32 %v3510, %v3661
    %v3664 = vtanh.pop %v3662
    %v3665 = vtanh.pop %v3663
    %v3666 = vsub.f32 %v3210, %v3664
    %v3667 = vsub.f32 %v3211, %v3665
    %v3668 = vmul.f32 %v3644, %v3666
    %v3669 = vmul.f32 %v3659, %v3667
    %v3670 = vadd.f32 %v3664, %v3668
    %v3671 = vadd.f32 %v3665, %v3669
    %3672 = vmatpush.msra.mxu0 %v383
    %3673 = vmatpush.msra.mxu0 %v379
    %3674 = vmatpush.msra.mxu0 %v375
    %3675 = vmatpush.msra.mxu0 %v371
    %3676 = vmatpush.msra.mxu0 %v367
    %3677 = vmatpush.msra.mxu0 %v363
    %3678 = vmatpush.msra.mxu0 %v359
    %3679 = vmatpush.msra.mxu0 %v355
    %3680 = vmatpush.msra.mxu0 %v351
    %3681 = vmatpush.msra.mxu0 %v347
    %3682 = vmatpush.msra.mxu0 %v343
    %3683 = vmatpush.msra.mxu0 %v339
    %3684 = vmatpush.msra.mxu0 %v335
    %3685 = vmatpush.msra.mxu0 %v331
    %3686 = vmatpush.msra.mxu0 %v327
    %3687 = vmatpush.msra.mxu0 %v323
    %3688 = vmatmul.f32.gmra.mxu0 %v3670
    %v3689 = vpop.f32.mrf.mxu0
    %v3690 = vadd.f32 0.0, %v3689
    %3691 = vmatmul.f32.gmra.mxu0 %v3671
    %v3692 = vpop.f32.mrf.mxu0
    %v3693 = vadd.f32 0.0, %v3692
    %3694 = vdwg.mxu0
    %3695 = vmatpush.msra.mxu0 %v447
    %3696 = vmatpush.msra.mxu0 %v443
    %3697 = vmatpush.msra.mxu0 %v439
    %3698 = vmatpush.msra.mxu0 %v435
    %3699 = vmatpush.msra.mxu0 %v431
    %3700 = vmatpush.msra.mxu0 %v427
    %3701 = vmatpush.msra.mxu0 %v423
    %3702 = vmatpush.msra.mxu0 %v419
    %3703 = vmatpush.msra.mxu0 %v415
    %3704 = vmatpush.msra.mxu0 %v411
    %3705 = vmatpush.msra.mxu0 %v407
    %3706 = vmatpush.msra.mxu0 %v403
    %3707 = vmatpush.msra.mxu0 %v399
    %3708 = vmatpush.msra.mxu0 %v395
    %3709 = vmatpush.msra.mxu0 %v391
    %3710 = vmatpush.msra.mxu0 %v387
    %3711 = vmatmul.f32.gmra.mxu0 %v3482
    %v3712 = vpop.f32.mrf.mxu0
    %v3713 = vadd.f32 %v3690, %v3712
    %3714 = vmatmul.f32.gmra.mxu0 %v3483
    %v3715 = vpop.f32.mrf.mxu0
    %v3716 = vadd.f32 %v3693, %v3715
    %3717 = vdwg.mxu0
    %3718 = vmatpush.msra.mxu0 %v384
    %3719 = vmatpush.msra.mxu0 %v380
    %3720 = vmatpush.msra.mxu0 %v376
    %3721 = vmatpush.msra.mxu0 %v372
    %3722 = vmatpush.msra.mxu0 %v368
    %3723 = vmatpush.msra.mxu0 %v364
    %3724 = vmatpush.msra.mxu0 %v360
    %3725 = vmatpush.msra.mxu0 %v356
    %3726 = vmatpush.msra.mxu0 %v352
    %3727 = vmatpush.msra.mxu0 %v348
    %3728 = vmatpush.msra.mxu0 %v344
    %3729 = vmatpush.msra.mxu0 %v340
    %3730 = vmatpush.msra.mxu0 %v336
    %3731 = vmatpush.msra.mxu0 %v332
    %3732 = vmatpush.msra.mxu0 %v328
    %3733 = vmatpush.msra.mxu0 %v324
    %3734 = vmatmul.f32.gmra.mxu0 %v3670
    %v3735 = vpop.f32.mrf.mxu0
    %v3736 = vadd.f32 0.0, %v3735
    %3737 = vmatmul.f32.gmra.mxu0 %v3671
    %v3738 = vpop.f32.mrf.mxu0
    %v3739 = vadd.f32 0.0, %v3738
    %3740 = vdwg.mxu0
    %3741 = vmatpush.msra.mxu0 %v448
    %3742 = vmatpush.msra.mxu0 %v444
    %3743 = vmatpush.msra.mxu0 %v440
    %3744 = vmatpush.msra.mxu0 %v436
    %3745 = vmatpush.msra.mxu0 %v432
    %3746 = vmatpush.msra.mxu0 %v428
    %3747 = vmatpush.msra.mxu0 %v424
    %3748 = vmatpush.msra.mxu0 %v420
    %3749 = vmatpush.msra.mxu0 %v416
    %3750 = vmatpush.msra.mxu0 %v412
    %3751 = vmatpush.msra.mxu0 %v408
    %3752 = vmatpush.msra.mxu0 %v404
    %3753 = vmatpush.msra.mxu0 %v400
    %3754 = vmatpush.msra.mxu0 %v396
    %3755 = vmatpush.msra.mxu0 %v392
    %3756 = vmatpush.msra.mxu0 %v388
    %3757 = vmatmul.f32.gmra.mxu0 %v3482
    %v3758 = vpop.f32.mrf.mxu0
    %v3759 = vadd.f32 %v3736, %v3758
    %3760 = vmatmul.f32.gmra.mxu0 %v3483
    %v3761 = vpop.f32.mrf.mxu0
    %v3762 = vadd.f32 %v3739, %v3761
    %3763 = vdwg.mxu0
    %3764 = vmatpush.msra.mxu0 %v385
    %3765 = vmatpush.msra.mxu0 %v381
    %3766 = vmatpush.msra.mxu0 %v377
    %3767 = vmatpush.msra.mxu0 %v373
    %3768 = vmatpush.msra.mxu0 %v369
    %3769 = vmatpush.msra.mxu0 %v365
    %3770 = vmatpush.msra.mxu0 %v361
    %3771 = vmatpush.msra.mxu0 %v357
    %3772 = vmatpush.msra.mxu0 %v353
    %3773 = vmatpush.msra.mxu0 %v349
    %3774 = vmatpush.msra.mxu0 %v345
    %3775 = vmatpush.msra.mxu0 %v341
    %3776 = vmatpush.msra.mxu0 %v337
    %3777 = vmatpush.msra.mxu0 %v333
    %3778 = vmatpush.msra.mxu0 %v329
    %3779 = vmatpush.msra.mxu0 %v325
    %3780 = vmatmul.f32.gmra.mxu0 %v3670
    %v3781 = vpop.f32.mrf.mxu0
    %v3782 = vadd.f32 0.0, %v3781
    %3783 = vmatmul.f32.gmra.mxu0 %v3671
    %v3784 = vpop.f32.mrf.mxu0
    %v3785 = vadd.f32 0.0, %v3784
    %3786 = vdwg.mxu0
    %3787 = vmatpush.msra.mxu0 %v449
    %3788 = vmatpush.msra.mxu0 %v445
    %3789 = vmatpush.msra.mxu0 %v441
    %3790 = vmatpush.msra.mxu0 %v437
    %3791 = vmatpush.msra.mxu0 %v433
    %3792 = vmatpush.msra.mxu0 %v429
    %3793 = vmatpush.msra.mxu0 %v425
    %3794 = vmatpush.msra.mxu0 %v421
    %3795 = vmatpush.msra.mxu0 %v417
    %3796 = vmatpush.msra.mxu0 %v413
    %3797 = vmatpush.msra.mxu0 %v409
    %3798 = vmatpush.msra.mxu0 %v405
    %3799 = vmatpush.msra.mxu0 %v401
    %3800 = vmatpush.msra.mxu0 %v397
    %3801 = vmatpush.msra.mxu0 %v393
    %3802 = vmatpush.msra.mxu0 %v389
    %3803 = vmatmul.f32.gmra.mxu0 %v3482
    %v3804 = vpop.f32.mrf.mxu0
    %v3805 = vadd.f32 %v3782, %v3804
    %3806 = vmatmul.f32.gmra.mxu0 %v3483
    %v3807 = vpop.f32.mrf.mxu0
    %v3808 = vadd.f32 %v3785, %v3807
    %3809 = vdwg.mxu0
    %3810 = vmatpush.msra.mxu0 %v386
    %3811 = vmatpush.msra.mxu0 %v382
    %3812 = vmatpush.msra.mxu0 %v378
    %3813 = vmatpush.msra.mxu0 %v374
    %3814 = vmatpush.msra.mxu0 %v370
    %3815 = vmatpush.msra.mxu0 %v366
    %3816 = vmatpush.msra.mxu0 %v362
    %3817 = vmatpush.msra.mxu0 %v358
    %3818 = vmatpush.msra.mxu0 %v354
    %3819 = vmatpush.msra.mxu0 %v350
    %3820 = vmatpush.msra.mxu0 %v346
    %3821 = vmatpush.msra.mxu0 %v342
    %3822 = vmatpush.msra.mxu0 %v338
    %3823 = vmatpush.msra.mxu0 %v334
    %3824 = vmatpush.msra.mxu0 %v330
    %3825 = vmatpush.msra.mxu0 %v326
    %3826 = vmatmul.f32.gmra.mxu0 %v3670
    %v3827 = vpop.f32.mrf.mxu0
    %v3828 = vadd.f32 0.0, %v3827
    %3829 = vmatmul.f32.gmra.mxu0 %v3671
    %v3830 = vpop.f32.mrf.mxu0
    %v3831 = vadd.f32 0.0, %v3830
    %3832 = vdwg.mxu0
    %3833 = vmatpush.msra.mxu0 %v450
    %3834 = vmatpush.msra.mxu0 %v446
    %3835 = vmatpush.msra.mxu0 %v442
    %3836 = vmatpush.msra.mxu0 %v438
    %3837 = vmatpush.msra.mxu0 %v434
    %3838 = vmatpush.msra.mxu0 %v430
    %3839 = vmatpush.msra.mxu0 %v426
    %3840 = vmatpush.msra.mxu0 %v422
    %3841 = vmatpush.msra.mxu0 %v418
    %3842 = vmatpush.msra.mxu0 %v414
    %3843 = vmatpush.msra.mxu0 %v410
    %3844 = vmatpush.msra.mxu0 %v406
    %3845 = vmatpush.msra.mxu0 %v402
    %3846 = vmatpush.msra.mxu0 %v398
    %3847 = vmatpush.msra.mxu0 %v394
    %3848 = vmatpush.msra.mxu0 %v390
    %3849 = vmatmul.f32.gmra.mxu0 %v3482
    %v3850 = vpop.f32.mrf.mxu0
    %v3851 = vadd.f32 %v3828, %v3850
    %3852 = vmatmul.f32.gmra.mxu0 %v3483
    %v3853 = vpop.f32.mrf.mxu0
    %v3854 = vadd.f32 %v3831, %v3853
    %3855 = vdwg.mxu0
    %v3856 = vxor.u32 %v3713, 2147483648
    %v3857 = vxor.u32 %v3716, 2147483648
    %v3858 = vmul.f32 %v3856, 1.442695
    %v3859 = vpow.pop %v3858
    %v3860 = vmul.f32 %v3857, 1.442695
    %v3861 = vpow.pop %v3860
    %v3862 = vadd.f32 %v3859, 1.0
    %v3863 = vadd.f32 %v3861, 1.0
    %v3864 = vrcp.pop %v3862
    %v3865 = vmul.f32 %v3862, %v3864
    %v3866 = vsub.f32 1.0, %v3865
    %v3867 = vmul.f32 %v3864, %v3866
    %v3868 = vadd.f32 %v3864, %v3867
    %vm3869 = vweird.f32 %v3862
    %vm3870 = vweird.f32 %v3864
    %vm3871 = vmor %vm3869, %vm3870
    %v3872 = vsel %vm3871, %v3864, %v3868
    %v3873 = vand.u32 2147483647, %v3862
    %vm3874 = vcmp.eq.f32.partialorder %v3873, 8.507059e+37
    %v3875 = vand.u32 %v3862, 2147483648
    %v3876 = vor.u32 1.1754944e-38, %v3875
    %v3877 = vsel %vm3874, %v3876, %v3872
    %v3878 = vmul.f32 1.0, %v3877
    %v3879 = vrcp.pop %v3863
    %v3880 = vmul.f32 %v3863, %v3879
    %v3881 = vsub.f32 1.0, %v3880
    %v3882 = vmul.f32 %v3879, %v3881
    %v3883 = vadd.f32 %v3879, %v3882
    %vm3884 = vweird.f32 %v3863
    %vm3885 = vweird.f32 %v3879
    %vm3886 = vmor %vm3884, %vm3885
    %v3887 = vsel %vm3886, %v3879, %v3883
    %v3888 = vand.u32 2147483647, %v3863
    %vm3889 = vcmp.eq.f32.partialorder %v3888, 8.507059e+37
    %v3890 = vand.u32 %v3863, 2147483648
    %v3891 = vor.u32 1.1754944e-38, %v3890
    %v3892 = vsel %vm3889, %v3891, %v3887
    %v3893 = vmul.f32 1.0, %v3892
    %v3894 = vxor.u32 %v3759, 2147483648
    %v3895 = vxor.u32 %v3762, 2147483648
    %v3896 = vmul.f32 %v3894, 1.442695
    %v3897 = vpow.pop %v3896
    %v3898 = vmul.f32 %v3895, 1.442695
    %v3899 = vpow.pop %v3898
    %v3900 = vadd.f32 %v3897, 1.0
    %v3901 = vadd.f32 %v3899, 1.0
    %v3902 = vrcp.pop %v3900
    %v3903 = vmul.f32 %v3900, %v3902
    %v3904 = vsub.f32 1.0, %v3903
    %v3905 = vmul.f32 %v3902, %v3904
    %v3906 = vadd.f32 %v3902, %v3905
    %vm3907 = vweird.f32 %v3900
    %vm3908 = vweird.f32 %v3902
    %vm3909 = vmor %vm3907, %vm3908
    %v3910 = vsel %vm3909, %v3902, %v3906
    %v3911 = vand.u32 2147483647, %v3900
    %vm3912 = vcmp.eq.f32.partialorder %v3911, 8.507059e+37
    %v3913 = vand.u32 %v3900, 2147483648
    %v3914 = vor.u32 1.1754944e-38, %v3913
    %v3915 = vsel %vm3912, %v3914, %v3910
    %v3916 = vmul.f32 1.0, %v3915
    %v3917 = vrcp.pop %v3901
    %v3918 = vmul.f32 %v3901, %v3917
    %v3919 = vsub.f32 1.0, %v3918
    %v3920 = vmul.f32 %v3917, %v3919
    %v3921 = vadd.f32 %v3917, %v3920
    %vm3922 = vweird.f32 %v3901
    %vm3923 = vweird.f32 %v3917
    %vm3924 = vmor %vm3922, %vm3923
    %v3925 = vsel %vm3924, %v3917, %v3921
    %v3926 = vand.u32 2147483647, %v3901
    %vm3927 = vcmp.eq.f32.partialorder %v3926, 8.507059e+37
    %v3928 = vand.u32 %v3901, 2147483648
    %v3929 = vor.u32 1.1754944e-38, %v3928
    %v3930 = vsel %vm3927, %v3929, %v3925
    %v3931 = vmul.f32 1.0, %v3930
    %v3932 = vmul.f32 %v3878, %v3851
    %v3933 = vmul.f32 %v3893, %v3854
    %v3934 = vadd.f32 %v3805, %v3932
    %v3935 = vadd.f32 %v3808, %v3933
    %v3936 = vtanh.pop %v3934
    %v3937 = vtanh.pop %v3935
    %v3938 = vsub.f32 %v3482, %v3936
    %v3939 = vsub.f32 %v3483, %v3937
    %v3940 = vmul.f32 %v3916, %v3938
    %v3941 = vmul.f32 %v3931, %v3939
    %v3942 = vadd.f32 %v3936, %v3940
    %v3943 = vadd.f32 %v3937, %v3941
    %s3944 = sadd.s32 %s144, 7
    %v3945 = vstv %s3944
    %vm3946 = vcmp.eq.s32.totalorder %v723, %v3945
    %vm3947 = vcmp.eq.s32.totalorder %v724, %v3945
    %v3948 = vsel %vm3946, 1, 0
    %v3949 = vsel %vm3947, 1, 0
    %3950 = vset.pattern.permute.xlu0 0
    %3951 = vperm.xlu0 %3950, %v3948
    %v3952 = vpop.permute.xlu0 %3951
    %3953 = vset.pattern.permute.xlu0 0
    %3954 = vperm.xlu0 %3953, %v3949
    %v3955 = vpop.permute.xlu0 %3954
    %vm3956 = vcmp.eq.s32.totalorder %v3952, 1
    %vm3957 = vcmp.eq.s32.totalorder %v3955, 1
    %v3958 = vsel %vm3956, %v3942, %v3498
    %v3959 = vsel %vm3957, %v3943, %v3499
    %3960 = vst [vmem:[#allocation2] sm:$0xff] %v3670
    %3961 = vst [vmem:[#allocation2 + $0x8] sm:$0xff] %v3671
    %3962 = vst [vmem:[%s147] sm:$0xff] %v3942
    %3963 = vst [vmem:[%s147 + $0x8] sm:$0xff] %v3943
    %3964 = vst [vmem:[#allocation3] sm:$0xff] %v3958
    %3965 = vst [vmem:[#allocation3 + $0x8] sm:$0xff] %v3959
    // Predicated region
    $region46: #{tpu_custom_call.1} parent=1 // pred_check
      %p3966 = pneg %p74
    $region47: #{tpu_custom_call.1} parent=1 // pred_check_branch
      %3968 = sbr.rel (%p3966) target = $region49
    $region48: #{tpu_custom_call.1} parent=1 // pred_region
      %v3969 = vlaneseq
      %v3970 = vand.u32 %v3969, 127
      %vm3971 = vcmp.lt.s32.totalorder %v3970, 64
      %v3972 = vsel %vm3971, 1, 0
      %v3973 = vcvt.s32.f32 %v3972
      %3974 = vadd.xlane.f32.xlu0 %v3958
      %v3975 = vpop.xlane.xlu0 %3974
      %3976 = vadd.xlane.f32.xlu0 %v3959
      %v3977 = vpop.xlane.xlu0 %3976
      %v3978 = vmul.f32 %v3975, 0.015625
      %v3979 = vmul.f32 %v3977, 0.015625
      %v3980 = vsub.f32 %v3958, %v3978
      %v3981 = vsub.f32 %v3959, %v3979
      %v3982 = vmul.f32 %v3980, %v3973
      %v3983 = vmul.f32 %v3981, %v3973
      %v3984 = vmul.f32 %v3982, %v3982
      %v3985 = vmul.f32 %v3983, %v3983
      %3986 = vadd.xlane.f32.xlu0 %v3984
      %v3987 = vpop.xlane.xlu0 %3986
      %3988 = vadd.xlane.f32.xlu0 %v3985
      %v3989 = vpop.xlane.xlu0 %3988
      %v3990 = vmul.f32 %v3987, 0.015625
      %v3991 = vmul.f32 %v3989, 0.015625
      %v3992 = vadd.f32 %v3990, 1e-05
      %v3993 = vadd.f32 %v3991, 1e-05
      %v3994 = vrsqrt.pop %v3992
      %v3995 = vmul.f32 %v3994, %v3992
      %v3996 = vmul.f32 %v3995, %v3994
      %v3997 = vmul.f32 0.5, %v3996
      %v3998 = vsub.f32 1.5, %v3997
      %v3999 = vmul.f32 %v3994, %v3998
      %vm4000 = vweird.f32 %v3992
      %vm4001 = vweird.f32 %v3994
      %vm4002 = vmor %vm4000, %vm4001
      %v4003 = vsel %vm4002, %v3994, %v3999
      %v4004 = vrsqrt.pop %v3993
      %v4005 = vmul.f32 %v4004, %v3993
      %v4006 = vmul.f32 %v4005, %v4004
      %v4007 = vmul.f32 0.5, %v4006
      %v4008 = vsub.f32 1.5, %v4007
      %v4009 = vmul.f32 %v4004, %v4008
      %vm4010 = vweird.f32 %v3993
      %vm4011 = vweird.f32 %v4004
      %vm4012 = vmor %vm4010, %vm4011
      %v4013 = vsel %vm4012, %v4004, %v4009
      %v4014 = vmul.f32 %v3982, %v4003
      %v4015 = vmul.f32 %v3983, %v4013
      %v4016 = vld [vmem:[%s4] sm:$0x1]
      %v4018 = vperm.slane %v4016, 0
      %v4020 = vmul.f32 %v4014, %v4018
      %v4021 = vmul.f32 %v4015, %v4018
      %v4022 = vld [vmem:[%s5] sm:$0x1]
      %v4024 = vperm.slane %v4022, 0
      %v4026 = vadd.f32 %v4020, %v4024
      %v4027 = vadd.f32 %v4021, %v4024
      %4028 = vst [vmem:[#allocation10] sm:$0xff] %v4026
      %4029 = vst [vmem:[#allocation10 + $0x8] sm:$0xff] %v4027
    $region49: #{tpu_custom_call.1} parent=1 // pred_fallthru
      _
    // Predicated region
    $region50: #{tpu_custom_call.1} parent=1 // pred_check
      _
    $region51: #{tpu_custom_call.1} parent=1 // pred_check_branch
      %4031 = sbr.rel (0) target = $region53
    $region52: #{tpu_custom_call.1} parent=1 // pred_region
      %4033 = vsyncadd [#allocation6], 0
      %s4034 = sshll.u32 [#allocation10], 4
      %s4035 = int_to_ptr.vmem [resolvable:$true] %s4034
      %s4036 = sshll.u32 %s7, 4
      %s4037 = int_to_ptr.hbm [resolvable:$true] %s4036
      %4042 = dma.vmem_to_hbm [thread:$0]  %s4035, 256, %s4037, [#allocation6], 128, 128, 8
    $region53: #{tpu_custom_call.1} parent=1 // pred_fallthru
      _
    // Predicated region
    $region54: #{tpu_custom_call.1} parent=1 // pred_check
      _
    $region55: #{tpu_custom_call.1} parent=1 // pred_check_branch
      %4044 = sbr.rel (0) target = $region57
    $region56: #{tpu_custom_call.1} parent=1 // pred_region
      %4046 = dma.done [#allocation6], 256
    $region57: #{tpu_custom_call.1} parent=1 // pred_fallthru
      _
    %4047 = vsyncpa [#allocation5], 1
    %4048 = vsyncpa [#allocation8], 1
    %4049 = vsyncpa [#allocation6], 1

</llo_original>
